<compile_context>
chip_gen: v7x
topology: tpu7x:2x2x1
jax: 0.10.0
libtpu: 0.0.40
codegen_flags: <defaults>
</compile_context>

<pallas_src>
import functools

import numpy as np
import jax
import jax.numpy as jnp
from jax import lax
from jax.experimental import pallas as pl
from jax.experimental.pallas import tpu as pltpu

_VMEM = pl.BlockSpec(memory_space=pltpu.MemorySpace.VMEM)
_HIGHEST = jax.lax.Precision.HIGHEST
_TAPS = ((0, 0), (0, 1), (1, 0), (1, 1))   # 2x2 kernel taps (ky, kx)


# ----------------------------------------------------------------------------
# Fused Pallas kernel: conv1+pool1 -> conv2+pool2 -> fc1 -> fc2 -> fc3
# ----------------------------------------------------------------------------
def _net_fused_kernel(x_ref, w1_ref, b1_ref, w2_ref, b2_ref,
                      fc1w_ref, fc1b_ref, fc2w_ref, fc2b_ref,
                      fc3w_ref, fc3b_ref, o_ref, *, H, W):
    f32 = jnp.float32
    N = x_ref.shape[0]

    x = x_ref[...]            # (N, H*W)  flattened single-channel image
    w1 = w1_ref[...]          # (4, 32)   conv1 weight, tap-major
    b1 = b1_ref[...]          # (1, 32)
    c1 = w1.shape[1]

    p1h, p1w = (H + 1) // 2, (W + 1) // 2   # pool1 output spatial extent

    def conv1_relu(i, j):
        # conv1 (padding=1) output at (i, j); input pixel = (i+ky-1, j+kx-1).
        acc = jnp.broadcast_to(b1, (N, c1))
        for t, (ky, kx) in enumerate(_TAPS):
            si, sj = i + ky - 1, j + kx - 1
            if 0 <= si < H and 0 <= sj < W:          # out-of-range taps hit zero padding
                pix = x[:, si * W + sj: si * W + sj + 1]        # (N, 1)
                acc = acc + pix * w1[t: t + 1, :]               # VPU broadcast FMA
        return jnp.maximum(acc, 0.0)

    # --- conv1 + ReLU + 2x2 max-pool (floor mode), fully unrolled ------------
    p1 = {}
    for pi in range(p1h):
        for pj in range(p1w):
            p1[(pi, pj)] = jnp.maximum(
                jnp.maximum(conv1_relu(2 * pi, 2 * pj),
                            conv1_relu(2 * pi, 2 * pj + 1)),
                jnp.maximum(conv1_relu(2 * pi + 1, 2 * pj),
                            conv1_relu(2 * pi + 1, 2 * pj + 1)))

    # --- conv2 + ReLU + 2x2 max-pool: single in-kernel im2col matmul on MXU ---
    # Only the 4 conv2 output positions feeding pool2's 1x1 output are needed.
    zero_tap = jnp.zeros((N, c1), f32)
    rows = []
    for oi in range(2):
        for oj in range(2):
            row = []
            for (ky, kx) in _TAPS:
                si, sj = oi + ky - 1, oj + kx - 1
                row.append(p1[(si, sj)] if (0 <= si < p1h and 0 <= sj < p1w)
                           else zero_tap)
            rows.append(jnp.concatenate(row, axis=-1))           # (N, 128)
    col = jnp.concatenate(rows, axis=0)                          # (4N, 128)
    h2 = jnp.dot(col, w2_ref[...], preferred_element_type=f32,
                 precision=_HIGHEST) + b2_ref[...]
    h2 = jnp.maximum(h2, 0.0)                                    # (4N, 64)
    feat = jnp.maximum(jnp.maximum(h2[0:N], h2[N:2 * N]),
                       jnp.maximum(h2[2 * N:3 * N], h2[3 * N:4 * N]))  # (N, 64)
    # feat == torch x.view(-1, 64): post-pool2 spatial is 1x1, so channel order
    # matches directly (no transpose needed).

    # --- fc1 -> fc2 -> fc3 (weights zero-padded to 128 lanes, lane-dense) ----
    h = jnp.dot(feat, fc1w_ref[...], preferred_element_type=f32,
                precision=_HIGHEST) + fc1b_ref[...]
    h = jnp.maximum(h, 0.0)
    h = jnp.dot(h, fc2w_ref[...], preferred_element_type=f32,
                precision=_HIGHEST) + fc2b_ref[...]
    h = jnp.maximum(h, 0.0)
    out = jnp.dot(h, fc3w_ref[...], preferred_element_type=f32,
                  precision=_HIGHEST) + fc3b_ref[...]
    o_ref[...] = out.astype(o_ref.dtype)                         # (N, 128) lane-dense store


# ----------------------------------------------------------------------------
# Wrapper: layout plumbing only (weight reshapes / lane padding, output slice)
# ----------------------------------------------------------------------------
def _pad2d(w, rows, cols):
    out = jnp.zeros((rows, cols), jnp.float32)
    return out.at[: w.shape[0], : w.shape[1]].set(w)


def net_forward(x_nchw, params):
    """Forward pass of Net. Input x is NCHW float32, returns (N, 10) logits."""
    N, cin, H, W = x_nchw.shape
    assert cin == 1, "Net.conv1 expects a single input channel"
    p1h, p1w = (H + 1) // 2, (W + 1) // 2
    # fc1 = Linear(64*1*1, ...) => the post-pool2 feature map must be 1x1.
    assert (p1h + 1) // 2 == 1 and (p1w + 1) // 2 == 1, "x.view(-1,64) needs 1x1 post-pool2"

    x2d = x_nchw.reshape(N, H * W)                               # Cin==1: pure reshape

    # conv1 weight (32,1,2,2) -> (tap, cout); conv2 weight (64,32,2,2) -> (tap*cin, cout).
    w1 = jnp.transpose(params["conv1_w"].reshape(32, 4), (1, 0))  # (4, 32)
    b1 = params["conv1_b"].reshape(1, 32)
    w2 = jnp.transpose(params["conv2_w"], (2, 3, 1, 0)).reshape(4 * 32, 64)
    b2 = params["conv2_b"].reshape(1, 64)

    # Zero-pad the MLP to 128 output lanes (sliced back below; padded rows/cols
    # are mathematically inert since the matching activations/biases are zero).
    fc1w = _pad2d(params["fc1_w"], 64, 128)
    fc1b = _pad2d(params["fc1_b"].reshape(1, -1), 1, 128)
    fc2w = _pad2d(params["fc2_w"], 128, 128)
    fc2b = _pad2d(params["fc2_b"].reshape(1, -1), 1, 128)
    fc3w = _pad2d(params["fc3_w"], 128, 128)
    fc3b = _pad2d(params["fc3_b"].reshape(1, -1), 1, 128)

    out_padded = pl.pallas_call(
        functools.partial(_net_fused_kernel, H=H, W=W),
        out_shape=jax.ShapeDtypeStruct((N, 128), jnp.float32),
        in_specs=[_VMEM] * 11,
        out_specs=_VMEM,
        compiler_params=pltpu.CompilerParams(vmem_limit_bytes=8 * 1024 * 1024),
    )(x2d, w1, b1, w2, b2, fc1w, fc1b, fc2w, fc2b, fc3w, fc3b)
    return out_padded[:, :10]


# ----------------------------------------------------------------------------
# Pure-JAX reference (for correctness check)
# ----------------------------------------------------------------------------
def net_reference(x, p):
    def conv(x, w, b):
        y = lax.conv_general_dilated(x, w, (1, 1), ((1, 1), (1, 1)),
                                     dimension_numbers=("NCHW", "OIHW", "NCHW"),
                                     precision=_HIGHEST)
        return y + b[None, :, None, None]

    def pool(x):
        return lax.reduce_window(x, -jnp.inf, lax.max, (1, 1, 2, 2), (1, 1, 2, 2), "VALID")

    x = pool(jax.nn.relu(conv(x, p["conv1_w"], p["conv1_b"])))
    x = pool(jax.nn.relu(conv(x, p["conv2_w"], p["conv2_b"])))
    x = x.reshape(-1, 64)
    x = jax.nn.relu(jnp.dot(x, p["fc1_w"], precision=_HIGHEST) + p["fc1_b"])
    x = jax.nn.relu(jnp.dot(x, p["fc2_w"], precision=_HIGHEST) + p["fc2_b"])
    return jnp.dot(x, p["fc3_w"], precision=_HIGHEST) + p["fc3_b"]


# ----------------------------------------------------------------------------
# Main
# ----------------------------------------------------------------------------
def make_params(key):
    ks = jax.random.split(key, 10)
    s = 0.1
    return {
        "conv1_w": s * jax.random.normal(ks[0], (32, 1, 2, 2), jnp.float32),
        "conv1_b": s * jax.random.normal(ks[1], (32,), jnp.float32),
        "conv2_w": s * jax.random.normal(ks[2], (64, 32, 2, 2), jnp.float32),
        "conv2_b": s * jax.random.normal(ks[3], (64,), jnp.float32),
        # Linear weights stored as (in, out); forward uses x @ W + b.
        "fc1_w": s * jax.random.normal(ks[4], (64, 120), jnp.float32),
        "fc1_b": s * jax.random.normal(ks[5], (120,), jnp.float32),
        "fc2_w": s * jax.random.normal(ks[6], (120, 84), jnp.float32),
        "fc2_b": s * jax.random.normal(ks[7], (84,), jnp.float32),
        "fc3_w": s * jax.random.normal(ks[8], (84, 10), jnp.float32),
        "fc3_b": s * jax.random.normal(ks[9], (10,), jnp.float32),
    }


if __name__ == "__main__":
    key = jax.random.PRNGKey(0)
    k_x, k_p = jax.random.split(key)
    # Input 4x4 spatial: conv1(pad1,k2)->5x5, pool->2x2, conv2->3x3, pool->1x1,
    # so the flatten to 64 features matches fc1's expected input exactly.
    x = jax.random.normal(k_x, (2, 1, 4, 4), jnp.float32)
    params = make_params(k_p)

    fwd = jax.jit(net_forward)
    out = jax.block_until_ready(fwd(x, params))
    ref = jax.block_until_ready(net_reference(x, params))

    assert out.shape == (2, 10), out.shape
    assert np.allclose(np.asarray(out), np.asarray(ref), rtol=1e-3, atol=1e-3), (
        "mismatch vs reference")
    print("KERNEL_OK")
</pallas_src>

<mosaic_0001>
module attributes {stable_mosaic.version = 11 : i64} {
  func.func @_net_fused_kernel(%arg0: memref<2x16xf32, #tpu.memory_space<vmem>>, %arg1: memref<4x32xf32, #tpu.memory_space<vmem>>, %arg2: memref<1x32xf32, #tpu.memory_space<vmem>>, %arg3: memref<128x64xf32, #tpu.memory_space<vmem>>, %arg4: memref<1x64xf32, #tpu.memory_space<vmem>>, %arg5: memref<64x128xf32, #tpu.memory_space<vmem>>, %arg6: memref<1x128xf32, #tpu.memory_space<vmem>>, %arg7: memref<128x128xf32, #tpu.memory_space<vmem>>, %arg8: memref<1x128xf32, #tpu.memory_space<vmem>>, %arg9: memref<128x128xf32, #tpu.memory_space<vmem>>, %arg10: memref<1x128xf32, #tpu.memory_space<vmem>>, %arg11: memref<2x128xf32, #tpu.memory_space<vmem>>) attributes {dimension_semantics = [], scalar_prefetch = 0 : i64, scratch_operands = 0 : i64, tpu.core_type = #tpu.core_type<tc>} {
    %c0 = arith.constant 0 : index
    %c0_0 = arith.constant 0 : index
    %0 = vector.load %arg0[%c0, %c0_0] : memref<2x16xf32, #tpu.memory_space<vmem>>, vector<2x16xf32>
    %c0_1 = arith.constant 0 : index
    %c0_2 = arith.constant 0 : index
    %1 = vector.load %arg1[%c0_1, %c0_2] : memref<4x32xf32, #tpu.memory_space<vmem>>, vector<4x32xf32>
    %c0_3 = arith.constant 0 : index
    %c0_4 = arith.constant 0 : index
    %2 = vector.load %arg2[%c0_3, %c0_4] : memref<1x32xf32, #tpu.memory_space<vmem>>, vector<1x32xf32>
    %3 = vector.shape_cast %2 : vector<1x32xf32> to vector<1x32xf32>
    %4 = vector.broadcast %3 : vector<1x32xf32> to vector<2x32xf32>
    %5 = vector.extract_strided_slice %0 {offsets = [0, 0], sizes = [2, 1], strides = [1, 1]} : vector<2x16xf32> to vector<2x1xf32>
    %6 = vector.extract_strided_slice %1 {offsets = [3, 0], sizes = [1, 32], strides = [1, 1]} : vector<4x32xf32> to vector<1x32xf32>
    %7 = vector.broadcast %5 : vector<2x1xf32> to vector<2x32xf32>
    %8 = vector.broadcast %6 : vector<1x32xf32> to vector<2x32xf32>
    %9 = arith.mulf %7, %8 : vector<2x32xf32>
    %10 = arith.addf %4, %9 : vector<2x32xf32>
    %cst = arith.constant 0.000000e+00 : f32
    %11 = vector.broadcast %cst : f32 to vector<2x32xf32>
    %12 = arith.maximumf %10, %11 : vector<2x32xf32>
    %13 = vector.shape_cast %2 : vector<1x32xf32> to vector<1x32xf32>
    %14 = vector.broadcast %13 : vector<1x32xf32> to vector<2x32xf32>
    %15 = vector.extract_strided_slice %0 {offsets = [0, 0], sizes = [2, 1], strides = [1, 1]} : vector<2x16xf32> to vector<2x1xf32>
    %16 = vector.extract_strided_slice %1 {offsets = [2, 0], sizes = [1, 32], strides = [1, 1]} : vector<4x32xf32> to vector<1x32xf32>
    %17 = vector.broadcast %15 : vector<2x1xf32> to vector<2x32xf32>
    %18 = vector.broadcast %16 : vector<1x32xf32> to vector<2x32xf32>
    %19 = arith.mulf %17, %18 : vector<2x32xf32>
    %20 = arith.addf %14, %19 : vector<2x32xf32>
    %21 = vector.extract_strided_slice %0 {offsets = [0, 1], sizes = [2, 1], strides = [1, 1]} : vector<2x16xf32> to vector<2x1xf32>
    %22 = vector.extract_strided_slice %1 {offsets = [3, 0], sizes = [1, 32], strides = [1, 1]} : vector<4x32xf32> to vector<1x32xf32>
    %23 = vector.broadcast %21 : vector<2x1xf32> to vector<2x32xf32>
    %24 = vector.broadcast %22 : vector<1x32xf32> to vector<2x32xf32>
    %25 = arith.mulf %23, %24 : vector<2x32xf32>
    %26 = arith.addf %20, %25 : vector<2x32xf32>
    %cst_5 = arith.constant 0.000000e+00 : f32
    %27 = vector.broadcast %cst_5 : f32 to vector<2x32xf32>
    %28 = arith.maximumf %26, %27 : vector<2x32xf32>
    %29 = arith.maximumf %12, %28 : vector<2x32xf32>
    %30 = vector.shape_cast %2 : vector<1x32xf32> to vector<1x32xf32>
    %31 = vector.broadcast %30 : vector<1x32xf32> to vector<2x32xf32>
    %32 = vector.extract_strided_slice %0 {offsets = [0, 0], sizes = [2, 1], strides = [1, 1]} : vector<2x16xf32> to vector<2x1xf32>
    %33 = vector.extract_strided_slice %1 {offsets = [1, 0], sizes = [1, 32], strides = [1, 1]} : vector<4x32xf32> to vector<1x32xf32>
    %34 = vector.broadcast %32 : vector<2x1xf32> to vector<2x32xf32>
    %35 = vector.broadcast %33 : vector<1x32xf32> to vector<2x32xf32>
    %36 = arith.mulf %34, %35 : vector<2x32xf32>
    %37 = arith.addf %31, %36 : vector<2x32xf32>
    %38 = vector.extract_strided_slice %0 {offsets = [0, 4], sizes = [2, 1], strides = [1, 1]} : vector<2x16xf32> to vector<2x1xf32>
    %39 = vector.extract_strided_slice %1 {offsets = [3, 0], sizes = [1, 32], strides = [1, 1]} : vector<4x32xf32> to vector<1x32xf32>
    %40 = vector.broadcast %38 : vector<2x1xf32> to vector<2x32xf32>
    %41 = vector.broadcast %39 : vector<1x32xf32> to vector<2x32xf32>
    %42 = arith.mulf %40, %41 : vector<2x32xf32>
    %43 = arith.addf %37, %42 : vector<2x32xf32>
    %cst_6 = arith.constant 0.000000e+00 : f32
    %44 = vector.broadcast %cst_6 : f32 to vector<2x32xf32>
    %45 = arith.maximumf %43, %44 : vector<2x32xf32>
    %46 = vector.shape_cast %2 : vector<1x32xf32> to vector<1x32xf32>
    %47 = vector.broadcast %46 : vector<1x32xf32> to vector<2x32xf32>
    %48 = vector.extract_strided_slice %0 {offsets = [0, 0], sizes = [2, 1], strides = [1, 1]} : vector<2x16xf32> to vector<2x1xf32>
    %49 = vector.extract_strided_slice %1 {offsets = [0, 0], sizes = [1, 32], strides = [1, 1]} : vector<4x32xf32> to vector<1x32xf32>
    %50 = vector.broadcast %48 : vector<2x1xf32> to vector<2x32xf32>
    %51 = vector.broadcast %49 : vector<1x32xf32> to vector<2x32xf32>
    %52 = arith.mulf %50, %51 : vector<2x32xf32>
    %53 = arith.addf %47, %52 : vector<2x32xf32>
    %54 = vector.extract_strided_slice %0 {offsets = [0, 1], sizes = [2, 1], strides = [1, 1]} : vector<2x16xf32> to vector<2x1xf32>
    %55 = vector.extract_strided_slice %1 {offsets = [1, 0], sizes = [1, 32], strides = [1, 1]} : vector<4x32xf32> to vector<1x32xf32>
    %56 = vector.broadcast %54 : vector<2x1xf32> to vector<2x32xf32>
    %57 = vector.broadcast %55 : vector<1x32xf32> to vector<2x32xf32>
    %58 = arith.mulf %56, %57 : vector<2x32xf32>
    %59 = arith.addf %53, %58 : vector<2x32xf32>
    %60 = vector.extract_strided_slice %0 {offsets = [0, 4], sizes = [2, 1], strides = [1, 1]} : vector<2x16xf32> to vector<2x1xf32>
    %61 = vector.extract_strided_slice %1 {offsets = [2, 0], sizes = [1, 32], strides = [1, 1]} : vector<4x32xf32> to vector<1x32xf32>
    %62 = vector.broadcast %60 : vector<2x1xf32> to vector<2x32xf32>
    %63 = vector.broadcast %61 : vector<1x32xf32> to vector<2x32xf32>
    %64 = arith.mulf %62, %63 : vector<2x32xf32>
    %65 = arith.addf %59, %64 : vector<2x32xf32>
    %66 = vector.extract_strided_slice %0 {offsets = [0, 5], sizes = [2, 1], strides = [1, 1]} : vector<2x16xf32> to vector<2x1xf32>
    %67 = vector.extract_strided_slice %1 {offsets = [3, 0], sizes = [1, 32], strides = [1, 1]} : vector<4x32xf32> to vector<1x32xf32>
    %68 = vector.broadcast %66 : vector<2x1xf32> to vector<2x32xf32>
    %69 = vector.broadcast %67 : vector<1x32xf32> to vector<2x32xf32>
    %70 = arith.mulf %68, %69 : vector<2x32xf32>
    %71 = arith.addf %65, %70 : vector<2x32xf32>
    %cst_7 = arith.constant 0.000000e+00 : f32
    %72 = vector.broadcast %cst_7 : f32 to vector<2x32xf32>
    %73 = arith.maximumf %71, %72 : vector<2x32xf32>
    %74 = arith.maximumf %45, %73 : vector<2x32xf32>
    %75 = arith.maximumf %29, %74 : vector<2x32xf32>
    %76 = vector.shape_cast %2 : vector<1x32xf32> to vector<1x32xf32>
    %77 = vector.broadcast %76 : vector<1x32xf32> to vector<2x32xf32>
    %78 = vector.extract_strided_slice %0 {offsets = [0, 1], sizes = [2, 1], strides = [1, 1]} : vector<2x16xf32> to vector<2x1xf32>
    %79 = vector.extract_strided_slice %1 {offsets = [2, 0], sizes = [1, 32], strides = [1, 1]} : vector<4x32xf32> to vector<1x32xf32>
    %80 = vector.broadcast %78 : vector<2x1xf32> to vector<2x32xf32>
    %81 = vector.broadcast %79 : vector<1x32xf32> to vector<2x32xf32>
    %82 = arith.mulf %80, %81 : vector<2x32xf32>
    %83 = arith.addf %77, %82 : vector<2x32xf32>
    %84 = vector.extract_strided_slice %0 {offsets = [0, 2], sizes = [2, 1], strides = [1, 1]} : vector<2x16xf32> to vector<2x1xf32>
    %85 = vector.extract_strided_slice %1 {offsets = [3, 0], sizes = [1, 32], strides = [1, 1]} : vector<4x32xf32> to vector<1x32xf32>
    %86 = vector.broadcast %84 : vector<2x1xf32> to vector<2x32xf32>
    %87 = vector.broadcast %85 : vector<1x32xf32> to vector<2x32xf32>
    %88 = arith.mulf %86, %87 : vector<2x32xf32>
    %89 = arith.addf %83, %88 : vector<2x32xf32>
    %cst_8 = arith.constant 0.000000e+00 : f32
    %90 = vector.broadcast %cst_8 : f32 to vector<2x32xf32>
    %91 = arith.maximumf %89, %90 : vector<2x32xf32>
    %92 = vector.shape_cast %2 : vector<1x32xf32> to vector<1x32xf32>
    %93 = vector.broadcast %92 : vector<1x32xf32> to vector<2x32xf32>
    %94 = vector.extract_strided_slice %0 {offsets = [0, 2], sizes = [2, 1], strides = [1, 1]} : vector<2x16xf32> to vector<2x1xf32>
    %95 = vector.extract_strided_slice %1 {offsets = [2, 0], sizes = [1, 32], strides = [1, 1]} : vector<4x32xf32> to vector<1x32xf32>
    %96 = vector.broadcast %94 : vector<2x1xf32> to vector<2x32xf32>
    %97 = vector.broadcast %95 : vector<1x32xf32> to vector<2x32xf32>
    %98 = arith.mulf %96, %97 : vector<2x32xf32>
    %99 = arith.addf %93, %98 : vector<2x32xf32>
    %100 = vector.extract_strided_slice %0 {offsets = [0, 3], sizes = [2, 1], strides = [1, 1]} : vector<2x16xf32> to vector<2x1xf32>
    %101 = vector.extract_strided_slice %1 {offsets = [3, 0], sizes = [1, 32], strides = [1, 1]} : vector<4x32xf32> to vector<1x32xf32>
    %102 = vector.broadcast %100 : vector<2x1xf32> to vector<2x32xf32>
    %103 = vector.broadcast %101 : vector<1x32xf32> to vector<2x32xf32>
    %104 = arith.mulf %102, %103 : vector<2x32xf32>
    %105 = arith.addf %99, %104 : vector<2x32xf32>
    %cst_9 = arith.constant 0.000000e+00 : f32
    %106 = vector.broadcast %cst_9 : f32 to vector<2x32xf32>
    %107 = arith.maximumf %105, %106 : vector<2x32xf32>
    %108 = arith.maximumf %91, %107 : vector<2x32xf32>
    %109 = vector.shape_cast %2 : vector<1x32xf32> to vector<1x32xf32>
    %110 = vector.broadcast %109 : vector<1x32xf32> to vector<2x32xf32>
    %111 = vector.extract_strided_slice %0 {offsets = [0, 1], sizes = [2, 1], strides = [1, 1]} : vector<2x16xf32> to vector<2x1xf32>
    %112 = vector.extract_strided_slice %1 {offsets = [0, 0], sizes = [1, 32], strides = [1, 1]} : vector<4x32xf32> to vector<1x32xf32>
    %113 = vector.broadcast %111 : vector<2x1xf32> to vector<2x32xf32>
    %114 = vector.broadcast %112 : vector<1x32xf32> to vector<2x32xf32>
    %115 = arith.mulf %113, %114 : vector<2x32xf32>
    %116 = arith.addf %110, %115 : vector<2x32xf32>
    %117 = vector.extract_strided_slice %0 {offsets = [0, 2], sizes = [2, 1], strides = [1, 1]} : vector<2x16xf32> to vector<2x1xf32>
    %118 = vector.extract_strided_slice %1 {offsets = [1, 0], sizes = [1, 32], strides = [1, 1]} : vector<4x32xf32> to vector<1x32xf32>
    %119 = vector.broadcast %117 : vector<2x1xf32> to vector<2x32xf32>
    %120 = vector.broadcast %118 : vector<1x32xf32> to vector<2x32xf32>
    %121 = arith.mulf %119, %120 : vector<2x32xf32>
    %122 = arith.addf %116, %121 : vector<2x32xf32>
    %123 = vector.extract_strided_slice %0 {offsets = [0, 5], sizes = [2, 1], strides = [1, 1]} : vector<2x16xf32> to vector<2x1xf32>
    %124 = vector.extract_strided_slice %1 {offsets = [2, 0], sizes = [1, 32], strides = [1, 1]} : vector<4x32xf32> to vector<1x32xf32>
    %125 = vector.broadcast %123 : vector<2x1xf32> to vector<2x32xf32>
    %126 = vector.broadcast %124 : vector<1x32xf32> to vector<2x32xf32>
    %127 = arith.mulf %125, %126 : vector<2x32xf32>
    %128 = arith.addf %122, %127 : vector<2x32xf32>
    %129 = vector.extract_strided_slice %0 {offsets = [0, 6], sizes = [2, 1], strides = [1, 1]} : vector<2x16xf32> to vector<2x1xf32>
    %130 = vector.extract_strided_slice %1 {offsets = [3, 0], sizes = [1, 32], strides = [1, 1]} : vector<4x32xf32> to vector<1x32xf32>
    %131 = vector.broadcast %129 : vector<2x1xf32> to vector<2x32xf32>
    %132 = vector.broadcast %130 : vector<1x32xf32> to vector<2x32xf32>
    %133 = arith.mulf %131, %132 : vector<2x32xf32>
    %134 = arith.addf %128, %133 : vector<2x32xf32>
    %cst_10 = arith.constant 0.000000e+00 : f32
    %135 = vector.broadcast %cst_10 : f32 to vector<2x32xf32>
    %136 = arith.maximumf %134, %135 : vector<2x32xf32>
    %137 = vector.shape_cast %2 : vector<1x32xf32> to vector<1x32xf32>
    %138 = vector.broadcast %137 : vector<1x32xf32> to vector<2x32xf32>
    %139 = vector.extract_strided_slice %0 {offsets = [0, 2], sizes = [2, 1], strides = [1, 1]} : vector<2x16xf32> to vector<2x1xf32>
    %140 = vector.extract_strided_slice %1 {offsets = [0, 0], sizes = [1, 32], strides = [1, 1]} : vector<4x32xf32> to vector<1x32xf32>
    %141 = vector.broadcast %139 : vector<2x1xf32> to vector<2x32xf32>
    %142 = vector.broadcast %140 : vector<1x32xf32> to vector<2x32xf32>
    %143 = arith.mulf %141, %142 : vector<2x32xf32>
    %144 = arith.addf %138, %143 : vector<2x32xf32>
    %145 = vector.extract_strided_slice %0 {offsets = [0, 3], sizes = [2, 1], strides = [1, 1]} : vector<2x16xf32> to vector<2x1xf32>
    %146 = vector.extract_strided_slice %1 {offsets = [1, 0], sizes = [1, 32], strides = [1, 1]} : vector<4x32xf32> to vector<1x32xf32>
    %147 = vector.broadcast %145 : vector<2x1xf32> to vector<2x32xf32>
    %148 = vector.broadcast %146 : vector<1x32xf32> to vector<2x32xf32>
    %149 = arith.mulf %147, %148 : vector<2x32xf32>
    %150 = arith.addf %144, %149 : vector<2x32xf32>
    %151 = vector.extract_strided_slice %0 {offsets = [0, 6], sizes = [2, 1], strides = [1, 1]} : vector<2x16xf32> to vector<2x1xf32>
    %152 = vector.extract_strided_slice %1 {offsets = [2, 0], sizes = [1, 32], strides = [1, 1]} : vector<4x32xf32> to vector<1x32xf32>
    %153 = vector.broadcast %151 : vector<2x1xf32> to vector<2x32xf32>
    %154 = vector.broadcast %152 : vector<1x32xf32> to vector<2x32xf32>
    %155 = arith.mulf %153, %154 : vector<2x32xf32>
    %156 = arith.addf %150, %155 : vector<2x32xf32>
    %157 = vector.extract_strided_slice %0 {offsets = [0, 7], sizes = [2, 1], strides = [1, 1]} : vector<2x16xf32> to vector<2x1xf32>
    %158 = vector.extract_strided_slice %1 {offsets = [3, 0], sizes = [1, 32], strides = [1, 1]} : vector<4x32xf32> to vector<1x32xf32>
    %159 = vector.broadcast %157 : vector<2x1xf32> to vector<2x32xf32>
    %160 = vector.broadcast %158 : vector<1x32xf32> to vector<2x32xf32>
    %161 = arith.mulf %159, %160 : vector<2x32xf32>
    %162 = arith.addf %156, %161 : vector<2x32xf32>
    %cst_11 = arith.constant 0.000000e+00 : f32
    %163 = vector.broadcast %cst_11 : f32 to vector<2x32xf32>
    %164 = arith.maximumf %162, %163 : vector<2x32xf32>
    %165 = arith.maximumf %136, %164 : vector<2x32xf32>
    %166 = arith.maximumf %108, %165 : vector<2x32xf32>
    %167 = vector.shape_cast %2 : vector<1x32xf32> to vector<1x32xf32>
    %168 = vector.broadcast %167 : vector<1x32xf32> to vector<2x32xf32>
    %169 = vector.extract_strided_slice %0 {offsets = [0, 4], sizes = [2, 1], strides = [1, 1]} : vector<2x16xf32> to vector<2x1xf32>
    %170 = vector.extract_strided_slice %1 {offsets = [1, 0], sizes = [1, 32], strides = [1, 1]} : vector<4x32xf32> to vector<1x32xf32>
    %171 = vector.broadcast %169 : vector<2x1xf32> to vector<2x32xf32>
    %172 = vector.broadcast %170 : vector<1x32xf32> to vector<2x32xf32>
    %173 = arith.mulf %171, %172 : vector<2x32xf32>
    %174 = arith.addf %168, %173 : vector<2x32xf32>
    %175 = vector.extract_strided_slice %0 {offsets = [0, 8], sizes = [2, 1], strides = [1, 1]} : vector<2x16xf32> to vector<2x1xf32>
    %176 = vector.extract_strided_slice %1 {offsets = [3, 0], sizes = [1, 32], strides = [1, 1]} : vector<4x32xf32> to vector<1x32xf32>
    %177 = vector.broadcast %175 : vector<2x1xf32> to vector<2x32xf32>
    %178 = vector.broadcast %176 : vector<1x32xf32> to vector<2x32xf32>
    %179 = arith.mulf %177, %178 : vector<2x32xf32>
    %180 = arith.addf %174, %179 : vector<2x32xf32>
    %cst_12 = arith.constant 0.000000e+00 : f32
    %181 = vector.broadcast %cst_12 : f32 to vector<2x32xf32>
    %182 = arith.maximumf %180, %181 : vector<2x32xf32>
    %183 = vector.shape_cast %2 : vector<1x32xf32> to vector<1x32xf32>
    %184 = vector.broadcast %183 : vector<1x32xf32> to vector<2x32xf32>
    %185 = vector.extract_strided_slice %0 {offsets = [0, 4], sizes = [2, 1], strides = [1, 1]} : vector<2x16xf32> to vector<2x1xf32>
    %186 = vector.extract_strided_slice %1 {offsets = [0, 0], sizes = [1, 32], strides = [1, 1]} : vector<4x32xf32> to vector<1x32xf32>
    %187 = vector.broadcast %185 : vector<2x1xf32> to vector<2x32xf32>
    %188 = vector.broadcast %186 : vector<1x32xf32> to vector<2x32xf32>
    %189 = arith.mulf %187, %188 : vector<2x32xf32>
    %190 = arith.addf %184, %189 : vector<2x32xf32>
    %191 = vector.extract_strided_slice %0 {offsets = [0, 5], sizes = [2, 1], strides = [1, 1]} : vector<2x16xf32> to vector<2x1xf32>
    %192 = vector.extract_strided_slice %1 {offsets = [1, 0], sizes = [1, 32], strides = [1, 1]} : vector<4x32xf32> to vector<1x32xf32>
    %193 = vector.broadcast %191 : vector<2x1xf32> to vector<2x32xf32>
    %194 = vector.broadcast %192 : vector<1x32xf32> to vector<2x32xf32>
    %195 = arith.mulf %193, %194 : vector<2x32xf32>
    %196 = arith.addf %190, %195 : vector<2x32xf32>
    %197 = vector.extract_strided_slice %0 {offsets = [0, 8], sizes = [2, 1], strides = [1, 1]} : vector<2x16xf32> to vector<2x1xf32>
    %198 = vector.extract_strided_slice %1 {offsets = [2, 0], sizes = [1, 32], strides = [1, 1]} : vector<4x32xf32> to vector<1x32xf32>
    %199 = vector.broadcast %197 : vector<2x1xf32> to vector<2x32xf32>
    %200 = vector.broadcast %198 : vector<1x32xf32> to vector<2x32xf32>
    %201 = arith.mulf %199, %200 : vector<2x32xf32>
    %202 = arith.addf %196, %201 : vector<2x32xf32>
    %203 = vector.extract_strided_slice %0 {offsets = [0, 9], sizes = [2, 1], strides = [1, 1]} : vector<2x16xf32> to vector<2x1xf32>
    %204 = vector.extract_strided_slice %1 {offsets = [3, 0], sizes = [1, 32], strides = [1, 1]} : vector<4x32xf32> to vector<1x32xf32>
    %205 = vector.broadcast %203 : vector<2x1xf32> to vector<2x32xf32>
    %206 = vector.broadcast %204 : vector<1x32xf32> to vector<2x32xf32>
    %207 = arith.mulf %205, %206 : vector<2x32xf32>
    %208 = arith.addf %202, %207 : vector<2x32xf32>
    %cst_13 = arith.constant 0.000000e+00 : f32
    %209 = vector.broadcast %cst_13 : f32 to vector<2x32xf32>
    %210 = arith.maximumf %208, %209 : vector<2x32xf32>
    %211 = arith.maximumf %182, %210 : vector<2x32xf32>
    %212 = vector.shape_cast %2 : vector<1x32xf32> to vector<1x32xf32>
    %213 = vector.broadcast %212 : vector<1x32xf32> to vector<2x32xf32>
    %214 = vector.extract_strided_slice %0 {offsets = [0, 8], sizes = [2, 1], strides = [1, 1]} : vector<2x16xf32> to vector<2x1xf32>
    %215 = vector.extract_strided_slice %1 {offsets = [1, 0], sizes = [1, 32], strides = [1, 1]} : vector<4x32xf32> to vector<1x32xf32>
    %216 = vector.broadcast %214 : vector<2x1xf32> to vector<2x32xf32>
    %217 = vector.broadcast %215 : vector<1x32xf32> to vector<2x32xf32>
    %218 = arith.mulf %216, %217 : vector<2x32xf32>
    %219 = arith.addf %213, %218 : vector<2x32xf32>
    %220 = vector.extract_strided_slice %0 {offsets = [0, 12], sizes = [2, 1], strides = [1, 1]} : vector<2x16xf32> to vector<2x1xf32>
    %221 = vector.extract_strided_slice %1 {offsets = [3, 0], sizes = [1, 32], strides = [1, 1]} : vector<4x32xf32> to vector<1x32xf32>
    %222 = vector.broadcast %220 : vector<2x1xf32> to vector<2x32xf32>
    %223 = vector.broadcast %221 : vector<1x32xf32> to vector<2x32xf32>
    %224 = arith.mulf %222, %223 : vector<2x32xf32>
    %225 = arith.addf %219, %224 : vector<2x32xf32>
    %cst_14 = arith.constant 0.000000e+00 : f32
    %226 = vector.broadcast %cst_14 : f32 to vector<2x32xf32>
    %227 = arith.maximumf %225, %226 : vector<2x32xf32>
    %228 = vector.shape_cast %2 : vector<1x32xf32> to vector<1x32xf32>
    %229 = vector.broadcast %228 : vector<1x32xf32> to vector<2x32xf32>
    %230 = vector.extract_strided_slice %0 {offsets = [0, 8], sizes = [2, 1], strides = [1, 1]} : vector<2x16xf32> to vector<2x1xf32>
    %231 = vector.extract_strided_slice %1 {offsets = [0, 0], sizes = [1, 32], strides = [1, 1]} : vector<4x32xf32> to vector<1x32xf32>
    %232 = vector.broadcast %230 : vector<2x1xf32> to vector<2x32xf32>
    %233 = vector.broadcast %231 : vector<1x32xf32> to vector<2x32xf32>
    %234 = arith.mulf %232, %233 : vector<2x32xf32>
    %235 = arith.addf %229, %234 : vector<2x32xf32>
    %236 = vector.extract_strided_slice %0 {offsets = [0, 9], sizes = [2, 1], strides = [1, 1]} : vector<2x16xf32> to vector<2x1xf32>
    %237 = vector.extract_strided_slice %1 {offsets = [1, 0], sizes = [1, 32], strides = [1, 1]} : vector<4x32xf32> to vector<1x32xf32>
    %238 = vector.broadcast %236 : vector<2x1xf32> to vector<2x32xf32>
    %239 = vector.broadcast %237 : vector<1x32xf32> to vector<2x32xf32>
    %240 = arith.mulf %238, %239 : vector<2x32xf32>
    %241 = arith.addf %235, %240 : vector<2x32xf32>
    %242 = vector.extract_strided_slice %0 {offsets = [0, 12], sizes = [2, 1], strides = [1, 1]} : vector<2x16xf32> to vector<2x1xf32>
    %243 = vector.extract_strided_slice %1 {offsets = [2, 0], sizes = [1, 32], strides = [1, 1]} : vector<4x32xf32> to vector<1x32xf32>
    %244 = vector.broadcast %242 : vector<2x1xf32> to vector<2x32xf32>
    %245 = vector.broadcast %243 : vector<1x32xf32> to vector<2x32xf32>
    %246 = arith.mulf %244, %245 : vector<2x32xf32>
    %247 = arith.addf %241, %246 : vector<2x32xf32>
    %248 = vector.extract_strided_slice %0 {offsets = [0, 13], sizes = [2, 1], strides = [1, 1]} : vector<2x16xf32> to vector<2x1xf32>
    %249 = vector.extract_strided_slice %1 {offsets = [3, 0], sizes = [1, 32], strides = [1, 1]} : vector<4x32xf32> to vector<1x32xf32>
    %250 = vector.broadcast %248 : vector<2x1xf32> to vector<2x32xf32>
    %251 = vector.broadcast %249 : vector<1x32xf32> to vector<2x32xf32>
    %252 = arith.mulf %250, %251 : vector<2x32xf32>
    %253 = arith.addf %247, %252 : vector<2x32xf32>
    %cst_15 = arith.constant 0.000000e+00 : f32
    %254 = vector.broadcast %cst_15 : f32 to vector<2x32xf32>
    %255 = arith.maximumf %253, %254 : vector<2x32xf32>
    %256 = arith.maximumf %227, %255 : vector<2x32xf32>
    %257 = arith.maximumf %211, %256 : vector<2x32xf32>
    %258 = vector.shape_cast %2 : vector<1x32xf32> to vector<1x32xf32>
    %259 = vector.broadcast %258 : vector<1x32xf32> to vector<2x32xf32>
    %260 = vector.extract_strided_slice %0 {offsets = [0, 5], sizes = [2, 1], strides = [1, 1]} : vector<2x16xf32> to vector<2x1xf32>
    %261 = vector.extract_strided_slice %1 {offsets = [0, 0], sizes = [1, 32], strides = [1, 1]} : vector<4x32xf32> to vector<1x32xf32>
    %262 = vector.broadcast %260 : vector<2x1xf32> to vector<2x32xf32>
    %263 = vector.broadcast %261 : vector<1x32xf32> to vector<2x32xf32>
    %264 = arith.mulf %262, %263 : vector<2x32xf32>
    %265 = arith.addf %259, %264 : vector<2x32xf32>
    %266 = vector.extract_strided_slice %0 {offsets = [0, 6], sizes = [2, 1], strides = [1, 1]} : vector<2x16xf32> to vector<2x1xf32>
    %267 = vector.extract_strided_slice %1 {offsets = [1, 0], sizes = [1, 32], strides = [1, 1]} : vector<4x32xf32> to vector<1x32xf32>
    %268 = vector.broadcast %266 : vector<2x1xf32> to vector<2x32xf32>
    %269 = vector.broadcast %267 : vector<1x32xf32> to vector<2x32xf32>
    %270 = arith.mulf %268, %269 : vector<2x32xf32>
    %271 = arith.addf %265, %270 : vector<2x32xf32>
    %272 = vector.extract_strided_slice %0 {offsets = [0, 9], sizes = [2, 1], strides = [1, 1]} : vector<2x16xf32> to vector<2x1xf32>
    %273 = vector.extract_strided_slice %1 {offsets = [2, 0], sizes = [1, 32], strides = [1, 1]} : vector<4x32xf32> to vector<1x32xf32>
    %274 = vector.broadcast %272 : vector<2x1xf32> to vector<2x32xf32>
    %275 = vector.broadcast %273 : vector<1x32xf32> to vector<2x32xf32>
    %276 = arith.mulf %274, %275 : vector<2x32xf32>
    %277 = arith.addf %271, %276 : vector<2x32xf32>
    %278 = vector.extract_strided_slice %0 {offsets = [0, 10], sizes = [2, 1], strides = [1, 1]} : vector<2x16xf32> to vector<2x1xf32>
    %279 = vector.extract_strided_slice %1 {offsets = [3, 0], sizes = [1, 32], strides = [1, 1]} : vector<4x32xf32> to vector<1x32xf32>
    %280 = vector.broadcast %278 : vector<2x1xf32> to vector<2x32xf32>
    %281 = vector.broadcast %279 : vector<1x32xf32> to vector<2x32xf32>
    %282 = arith.mulf %280, %281 : vector<2x32xf32>
    %283 = arith.addf %277, %282 : vector<2x32xf32>
    %cst_16 = arith.constant 0.000000e+00 : f32
    %284 = vector.broadcast %cst_16 : f32 to vector<2x32xf32>
    %285 = arith.maximumf %283, %284 : vector<2x32xf32>
    %286 = vector.shape_cast %2 : vector<1x32xf32> to vector<1x32xf32>
    %287 = vector.broadcast %286 : vector<1x32xf32> to vector<2x32xf32>
    %288 = vector.extract_strided_slice %0 {offsets = [0, 6], sizes = [2, 1], strides = [1, 1]} : vector<2x16xf32> to vector<2x1xf32>
    %289 = vector.extract_strided_slice %1 {offsets = [0, 0], sizes = [1, 32], strides = [1, 1]} : vector<4x32xf32> to vector<1x32xf32>
    %290 = vector.broadcast %288 : vector<2x1xf32> to vector<2x32xf32>
    %291 = vector.broadcast %289 : vector<1x32xf32> to vector<2x32xf32>
    %292 = arith.mulf %290, %291 : vector<2x32xf32>
    %293 = arith.addf %287, %292 : vector<2x32xf32>
    %294 = vector.extract_strided_slice %0 {offsets = [0, 7], sizes = [2, 1], strides = [1, 1]} : vector<2x16xf32> to vector<2x1xf32>
    %295 = vector.extract_strided_slice %1 {offsets = [1, 0], sizes = [1, 32], strides = [1, 1]} : vector<4x32xf32> to vector<1x32xf32>
    %296 = vector.broadcast %294 : vector<2x1xf32> to vector<2x32xf32>
    %297 = vector.broadcast %295 : vector<1x32xf32> to vector<2x32xf32>
    %298 = arith.mulf %296, %297 : vector<2x32xf32>
    %299 = arith.addf %293, %298 : vector<2x32xf32>
    %300 = vector.extract_strided_slice %0 {offsets = [0, 10], sizes = [2, 1], strides = [1, 1]} : vector<2x16xf32> to vector<2x1xf32>
    %301 = vector.extract_strided_slice %1 {offsets = [2, 0], sizes = [1, 32], strides = [1, 1]} : vector<4x32xf32> to vector<1x32xf32>
    %302 = vector.broadcast %300 : vector<2x1xf32> to vector<2x32xf32>
    %303 = vector.broadcast %301 : vector<1x32xf32> to vector<2x32xf32>
    %304 = arith.mulf %302, %303 : vector<2x32xf32>
    %305 = arith.addf %299, %304 : vector<2x32xf32>
    %306 = vector.extract_strided_slice %0 {offsets = [0, 11], sizes = [2, 1], strides = [1, 1]} : vector<2x16xf32> to vector<2x1xf32>
    %307 = vector.extract_strided_slice %1 {offsets = [3, 0], sizes = [1, 32], strides = [1, 1]} : vector<4x32xf32> to vector<1x32xf32>
    %308 = vector.broadcast %306 : vector<2x1xf32> to vector<2x32xf32>
    %309 = vector.broadcast %307 : vector<1x32xf32> to vector<2x32xf32>
    %310 = arith.mulf %308, %309 : vector<2x32xf32>
    %311 = arith.addf %305, %310 : vector<2x32xf32>
    %cst_17 = arith.constant 0.000000e+00 : f32
    %312 = vector.broadcast %cst_17 : f32 to vector<2x32xf32>
    %313 = arith.maximumf %311, %312 : vector<2x32xf32>
    %314 = arith.maximumf %285, %313 : vector<2x32xf32>
    %315 = vector.shape_cast %2 : vector<1x32xf32> to vector<1x32xf32>
    %316 = vector.broadcast %315 : vector<1x32xf32> to vector<2x32xf32>
    %317 = vector.extract_strided_slice %0 {offsets = [0, 9], sizes = [2, 1], strides = [1, 1]} : vector<2x16xf32> to vector<2x1xf32>
    %318 = vector.extract_strided_slice %1 {offsets = [0, 0], sizes = [1, 32], strides = [1, 1]} : vector<4x32xf32> to vector<1x32xf32>
    %319 = vector.broadcast %317 : vector<2x1xf32> to vector<2x32xf32>
    %320 = vector.broadcast %318 : vector<1x32xf32> to vector<2x32xf32>
    %321 = arith.mulf %319, %320 : vector<2x32xf32>
    %322 = arith.addf %316, %321 : vector<2x32xf32>
    %323 = vector.extract_strided_slice %0 {offsets = [0, 10], sizes = [2, 1], strides = [1, 1]} : vector<2x16xf32> to vector<2x1xf32>
    %324 = vector.extract_strided_slice %1 {offsets = [1, 0], sizes = [1, 32], strides = [1, 1]} : vector<4x32xf32> to vector<1x32xf32>
    %325 = vector.broadcast %323 : vector<2x1xf32> to vector<2x32xf32>
    %326 = vector.broadcast %324 : vector<1x32xf32> to vector<2x32xf32>
    %327 = arith.mulf %325, %326 : vector<2x32xf32>
    %328 = arith.addf %322, %327 : vector<2x32xf32>
    %329 = vector.extract_strided_slice %0 {offsets = [0, 13], sizes = [2, 1], strides = [1, 1]} : vector<2x16xf32> to vector<2x1xf32>
    %330 = vector.extract_strided_slice %1 {offsets = [2, 0], sizes = [1, 32], strides = [1, 1]} : vector<4x32xf32> to vector<1x32xf32>
    %331 = vector.broadcast %329 : vector<2x1xf32> to vector<2x32xf32>
    %332 = vector.broadcast %330 : vector<1x32xf32> to vector<2x32xf32>
    %333 = arith.mulf %331, %332 : vector<2x32xf32>
    %334 = arith.addf %328, %333 : vector<2x32xf32>
    %335 = vector.extract_strided_slice %0 {offsets = [0, 14], sizes = [2, 1], strides = [1, 1]} : vector<2x16xf32> to vector<2x1xf32>
    %336 = vector.extract_strided_slice %1 {offsets = [3, 0], sizes = [1, 32], strides = [1, 1]} : vector<4x32xf32> to vector<1x32xf32>
    %337 = vector.broadcast %335 : vector<2x1xf32> to vector<2x32xf32>
    %338 = vector.broadcast %336 : vector<1x32xf32> to vector<2x32xf32>
    %339 = arith.mulf %337, %338 : vector<2x32xf32>
    %340 = arith.addf %334, %339 : vector<2x32xf32>
    %cst_18 = arith.constant 0.000000e+00 : f32
    %341 = vector.broadcast %cst_18 : f32 to vector<2x32xf32>
    %342 = arith.maximumf %340, %341 : vector<2x32xf32>
    %343 = vector.shape_cast %2 : vector<1x32xf32> to vector<1x32xf32>
    %344 = vector.broadcast %343 : vector<1x32xf32> to vector<2x32xf32>
    %345 = vector.extract_strided_slice %0 {offsets = [0, 10], sizes = [2, 1], strides = [1, 1]} : vector<2x16xf32> to vector<2x1xf32>
    %346 = vector.extract_strided_slice %1 {offsets = [0, 0], sizes = [1, 32], strides = [1, 1]} : vector<4x32xf32> to vector<1x32xf32>
    %347 = vector.broadcast %345 : vector<2x1xf32> to vector<2x32xf32>
    %348 = vector.broadcast %346 : vector<1x32xf32> to vector<2x32xf32>
    %349 = arith.mulf %347, %348 : vector<2x32xf32>
    %350 = arith.addf %344, %349 : vector<2x32xf32>
    %351 = vector.extract_strided_slice %0 {offsets = [0, 11], sizes = [2, 1], strides = [1, 1]} : vector<2x16xf32> to vector<2x1xf32>
    %352 = vector.extract_strided_slice %1 {offsets = [1, 0], sizes = [1, 32], strides = [1, 1]} : vector<4x32xf32> to vector<1x32xf32>
    %353 = vector.broadcast %351 : vector<2x1xf32> to vector<2x32xf32>
    %354 = vector.broadcast %352 : vector<1x32xf32> to vector<2x32xf32>
    %355 = arith.mulf %353, %354 : vector<2x32xf32>
    %356 = arith.addf %350, %355 : vector<2x32xf32>
    %357 = vector.extract_strided_slice %0 {offsets = [0, 14], sizes = [2, 1], strides = [1, 1]} : vector<2x16xf32> to vector<2x1xf32>
    %358 = vector.extract_strided_slice %1 {offsets = [2, 0], sizes = [1, 32], strides = [1, 1]} : vector<4x32xf32> to vector<1x32xf32>
    %359 = vector.broadcast %357 : vector<2x1xf32> to vector<2x32xf32>
    %360 = vector.broadcast %358 : vector<1x32xf32> to vector<2x32xf32>
    %361 = arith.mulf %359, %360 : vector<2x32xf32>
    %362 = arith.addf %356, %361 : vector<2x32xf32>
    %363 = vector.extract_strided_slice %0 {offsets = [0, 15], sizes = [2, 1], strides = [1, 1]} : vector<2x16xf32> to vector<2x1xf32>
    %364 = vector.extract_strided_slice %1 {offsets = [3, 0], sizes = [1, 32], strides = [1, 1]} : vector<4x32xf32> to vector<1x32xf32>
    %365 = vector.broadcast %363 : vector<2x1xf32> to vector<2x32xf32>
    %366 = vector.broadcast %364 : vector<1x32xf32> to vector<2x32xf32>
    %367 = arith.mulf %365, %366 : vector<2x32xf32>
    %368 = arith.addf %362, %367 : vector<2x32xf32>
    %cst_19 = arith.constant 0.000000e+00 : f32
    %369 = vector.broadcast %cst_19 : f32 to vector<2x32xf32>
    %370 = arith.maximumf %368, %369 : vector<2x32xf32>
    %371 = arith.maximumf %342, %370 : vector<2x32xf32>
    %372 = arith.maximumf %314, %371 : vector<2x32xf32>
    %cst_20 = arith.constant 0.000000e+00 : f32
    %373 = vector.broadcast %cst_20 : f32 to vector<2x32xf32>
    %374 = tpu.concatenate %373, %373, %373, %75 in 1 : vector<2x32xf32>, vector<2x32xf32>, vector<2x32xf32>, vector<2x32xf32> -> vector<2x128xf32>
    %375 = tpu.concatenate %373, %373, %75, %166 in 1 : vector<2x32xf32>, vector<2x32xf32>, vector<2x32xf32>, vector<2x32xf32> -> vector<2x128xf32>
    %376 = tpu.concatenate %373, %75, %373, %257 in 1 : vector<2x32xf32>, vector<2x32xf32>, vector<2x32xf32>, vector<2x32xf32> -> vector<2x128xf32>
    %377 = tpu.concatenate %75, %166, %257, %372 in 1 : vector<2x32xf32>, vector<2x32xf32>, vector<2x32xf32>, vector<2x32xf32> -> vector<2x128xf32>
    %378 = tpu.concatenate %374, %375, %376, %377 in 0 : vector<2x128xf32>, vector<2x128xf32>, vector<2x128xf32>, vector<2x128xf32> -> vector<8x128xf32>
    %c0_21 = arith.constant 0 : index
    %c0_22 = arith.constant 0 : index
    %379 = vector.load %arg3[%c0_21, %c0_22] : memref<128x64xf32, #tpu.memory_space<vmem>>, vector<128x64xf32>
    %cst_23 = arith.constant dense<0.000000e+00> : vector<8x64xf32>
    %380 = tpu.matmul %378, %379, %cst_23 {dimension_numbers = #tpu.dot_dimension_numbers<[1], [0], [0], [1], [0, 0, 1, 1], [], []>, precision = #tpu.contract_precision<fp32>} : vector<8x128xf32>, vector<128x64xf32>, vector<8x64xf32> -> vector<8x64xf32>
    %c0_24 = arith.constant 0 : index
    %c0_25 = arith.constant 0 : index
    %381 = vector.load %arg4[%c0_24, %c0_25] : memref<1x64xf32, #tpu.memory_space<vmem>>, vector<1x64xf32>
    %382 = vector.broadcast %381 : vector<1x64xf32> to vector<8x64xf32>
    %383 = arith.addf %380, %382 : vector<8x64xf32>
    %cst_26 = arith.constant 0.000000e+00 : f32
    %384 = vector.broadcast %cst_26 : f32 to vector<8x64xf32>
    %385 = arith.maximumf %383, %384 : vector<8x64xf32>
    %386 = vector.extract_strided_slice %385 {offsets = [0, 0], sizes = [2, 64], strides = [1, 1]} : vector<8x64xf32> to vector<2x64xf32>
    %387 = vector.extract_strided_slice %385 {offsets = [2, 0], sizes = [2, 64], strides = [1, 1]} : vector<8x64xf32> to vector<2x64xf32>
    %388 = arith.maximumf %386, %387 : vector<2x64xf32>
    %389 = vector.extract_strided_slice %385 {offsets = [4, 0], sizes = [2, 64], strides = [1, 1]} : vector<8x64xf32> to vector<2x64xf32>
    %390 = vector.extract_strided_slice %385 {offsets = [6, 0], sizes = [2, 64], strides = [1, 1]} : vector<8x64xf32> to vector<2x64xf32>
    %391 = arith.maximumf %389, %390 : vector<2x64xf32>
    %392 = arith.maximumf %388, %391 : vector<2x64xf32>
    %c0_27 = arith.constant 0 : index
    %c0_28 = arith.constant 0 : index
    %393 = vector.load %arg5[%c0_27, %c0_28] : memref<64x128xf32, #tpu.memory_space<vmem>>, vector<64x128xf32>
    %cst_29 = arith.constant dense<0.000000e+00> : vector<2x128xf32>
    %394 = tpu.matmul %392, %393, %cst_29 {dimension_numbers = #tpu.dot_dimension_numbers<[1], [0], [0], [1], [0, 0, 1, 1], [], []>, precision = #tpu.contract_precision<fp32>} : vector<2x64xf32>, vector<64x128xf32>, vector<2x128xf32> -> vector<2x128xf32>
    %c0_30 = arith.constant 0 : index
    %c0_31 = arith.constant 0 : index
    %395 = vector.load %arg6[%c0_30, %c0_31] : memref<1x128xf32, #tpu.memory_space<vmem>>, vector<1x128xf32>
    %396 = vector.broadcast %395 : vector<1x128xf32> to vector<2x128xf32>
    %397 = arith.addf %394, %396 : vector<2x128xf32>
    %cst_32 = arith.constant 0.000000e+00 : f32
    %398 = vector.broadcast %cst_32 : f32 to vector<2x128xf32>
    %399 = arith.maximumf %397, %398 : vector<2x128xf32>
    %c0_33 = arith.constant 0 : index
    %c0_34 = arith.constant 0 : index
    %400 = vector.load %arg7[%c0_33, %c0_34] : memref<128x128xf32, #tpu.memory_space<vmem>>, vector<128x128xf32>
    %cst_35 = arith.constant dense<0.000000e+00> : vector<2x128xf32>
    %401 = tpu.matmul %399, %400, %cst_35 {dimension_numbers = #tpu.dot_dimension_numbers<[1], [0], [0], [1], [0, 0, 1, 1], [], []>, precision = #tpu.contract_precision<fp32>} : vector<2x128xf32>, vector<128x128xf32>, vector<2x128xf32> -> vector<2x128xf32>
    %c0_36 = arith.constant 0 : index
    %c0_37 = arith.constant 0 : index
    %402 = vector.load %arg8[%c0_36, %c0_37] : memref<1x128xf32, #tpu.memory_space<vmem>>, vector<1x128xf32>
    %403 = vector.broadcast %402 : vector<1x128xf32> to vector<2x128xf32>
    %404 = arith.addf %401, %403 : vector<2x128xf32>
    %cst_38 = arith.constant 0.000000e+00 : f32
    %405 = vector.broadcast %cst_38 : f32 to vector<2x128xf32>
    %406 = arith.maximumf %404, %405 : vector<2x128xf32>
    %c0_39 = arith.constant 0 : index
    %c0_40 = arith.constant 0 : index
    %407 = vector.load %arg9[%c0_39, %c0_40] : memref<128x128xf32, #tpu.memory_space<vmem>>, vector<128x128xf32>
    %cst_41 = arith.constant dense<0.000000e+00> : vector<2x128xf32>
    %408 = tpu.matmul %406, %407, %cst_41 {dimension_numbers = #tpu.dot_dimension_numbers<[1], [0], [0], [1], [0, 0, 1, 1], [], []>, precision = #tpu.contract_precision<fp32>} : vector<2x128xf32>, vector<128x128xf32>, vector<2x128xf32> -> vector<2x128xf32>
    %c0_42 = arith.constant 0 : index
    %c0_43 = arith.constant 0 : index
    %409 = vector.load %arg10[%c0_42, %c0_43] : memref<1x128xf32, #tpu.memory_space<vmem>>, vector<1x128xf32>
    %410 = vector.broadcast %409 : vector<1x128xf32> to vector<2x128xf32>
    %411 = arith.addf %408, %410 : vector<2x128xf32>
    %c0_44 = arith.constant 0 : index
    %c0_45 = arith.constant 0 : index
    %412 = vector.load %arg11[%c0_44, %c0_45] : memref<2x128xf32, #tpu.memory_space<vmem>>, vector<2x128xf32>
    tpu.vector_store %arg11[%c0_44, %c0_45], %411 {strides = array<i32>} : memref<2x128xf32, #tpu.memory_space<vmem>>, vector<2x128xf32>,
    return
  }
}

</mosaic_0001>

<llo_original>
// kernel: net_forward.1
$region0: #{net_forward.1}
  #allocation0 [shape = 'u32[]', space=smem, size = 0x4, offset = 0x4, fixed_abs, tag = 'smem constant byte address 0x4 - core index']
  #allocation1 [shape = 'u32[144,128]{1,0:T(1,128)}', space=vmem, size = 0x12000, scoped, tag = 'internal scratch']
  %s0 = inlined_call_operand.vmem [shape: f32[2,16], index: 0, kind: input, shape index: {}]
  %s1 = inlined_call_operand.vmem [shape: f32[4,32], index: 1, kind: input, shape index: {}]
  %s2 = inlined_call_operand.vmem [shape: f32[1,32], index: 2, kind: input, shape index: {}]
  %s3 = inlined_call_operand.vmem [shape: f32[128,64], index: 3, kind: input, shape index: {}]
  %s4 = inlined_call_operand.vmem [shape: f32[1,64], index: 4, kind: input, shape index: {}]
  %s5 = inlined_call_operand.vmem [shape: f32[64,128], index: 5, kind: input, shape index: {}]
  %s6 = inlined_call_operand.vmem [shape: f32[1,128], index: 6, kind: input, shape index: {}]
  %s7 = inlined_call_operand.vmem [shape: f32[128,128], index: 7, kind: input, shape index: {}]
  %s8 = inlined_call_operand.vmem [shape: f32[1,128], index: 8, kind: input, shape index: {}]
  %s9 = inlined_call_operand.vmem [shape: f32[128,128], index: 9, kind: input, shape index: {}]
  %s10 = inlined_call_operand.vmem [shape: f32[1,128], index: 10, kind: input, shape index: {}]
  %s11 = inlined_call_operand.hbm [shape: f32[2,128], index: 11, kind: output, shape index: {}]
  %s12 = sld [smem:[#allocation0]]
  $region54: #{net_forward.1} parent=0
    _
  %s14 = ssub.s32 1, %s12
  %s15 = scalar_select 0, %s14, %s12
  $region1: #{net_forward.1} parent=0
    #allocation2 [shape = 'u8[1024]{0}', space=vmem, size = 0x400, scoped, tag = 'output window, operand 0, single buffered']
    #allocation3 [shape = 's32[1]{0}', space=sflag, size = 0x4, scoped, tag = 'scoped memory for net_forward.1']
    %16 = vsyncpa [#allocation3], 0
    // Predicated region
    $region2: #{net_forward.1} parent=1 // pred_check
      _
    $region3: #{net_forward.1} parent=1 // pred_check_branch
      %18 = sbr.rel (0) target = $region5
    $region4: #{net_forward.1} parent=1 // pred_region
      _
    $region5: #{net_forward.1} parent=1 // pred_fallthru
      _
    // Predicated region
    $region6: #{net_forward.1} parent=1 // pred_check
      _
    $region7: #{net_forward.1} parent=1 // pred_check_branch
      %20 = sbr.rel (0) target = $region9
    $region8: #{net_forward.1} parent=1 // pred_region
      _
    $region9: #{net_forward.1} parent=1 // pred_fallthru
      _
    // Predicated region
    $region10: #{net_forward.1} parent=1 // pred_check
      _
    $region11: #{net_forward.1} parent=1 // pred_check_branch
      %22 = sbr.rel (0) target = $region13
    $region12: #{net_forward.1} parent=1 // pred_region
      _
    $region13: #{net_forward.1} parent=1 // pred_fallthru
      _
    // Predicated region
    $region14: #{net_forward.1} parent=1 // pred_check
      _
    $region15: #{net_forward.1} parent=1 // pred_check_branch
      %24 = sbr.rel (0) target = $region17
    $region16: #{net_forward.1} parent=1 // pred_region
      _
    $region17: #{net_forward.1} parent=1 // pred_fallthru
      _
    // Predicated region
    $region18: #{net_forward.1} parent=1 // pred_check
      _
    $region19: #{net_forward.1} parent=1 // pred_check_branch
      %26 = sbr.rel (0) target = $region21
    $region20: #{net_forward.1} parent=1 // pred_region
      _
    $region21: #{net_forward.1} parent=1 // pred_fallthru
      _
    // Predicated region
    $region22: #{net_forward.1} parent=1 // pred_check
      _
    $region23: #{net_forward.1} parent=1 // pred_check_branch
      %28 = sbr.rel (0) target = $region25
    $region24: #{net_forward.1} parent=1 // pred_region
      _
    $region25: #{net_forward.1} parent=1 // pred_fallthru
      _
    // Predicated region
    $region26: #{net_forward.1} parent=1 // pred_check
      _
    $region27: #{net_forward.1} parent=1 // pred_check_branch
      %30 = sbr.rel (0) target = $region29
    $region28: #{net_forward.1} parent=1 // pred_region
      _
    $region29: #{net_forward.1} parent=1 // pred_fallthru
      _
    // Predicated region
    $region30: #{net_forward.1} parent=1 // pred_check
      _
    $region31: #{net_forward.1} parent=1 // pred_check_branch
      %32 = sbr.rel (0) target = $region33
    $region32: #{net_forward.1} parent=1 // pred_region
      _
    $region33: #{net_forward.1} parent=1 // pred_fallthru
      _
    // Predicated region
    $region34: #{net_forward.1} parent=1 // pred_check
      _
    $region35: #{net_forward.1} parent=1 // pred_check_branch
      %34 = sbr.rel (0) target = $region37
    $region36: #{net_forward.1} parent=1 // pred_region
      _
    $region37: #{net_forward.1} parent=1 // pred_fallthru
      _
    // Predicated region
    $region38: #{net_forward.1} parent=1 // pred_check
      _
    $region39: #{net_forward.1} parent=1 // pred_check_branch
      %36 = sbr.rel (0) target = $region41
    $region40: #{net_forward.1} parent=1 // pred_region
      _
    $region41: #{net_forward.1} parent=1 // pred_fallthru
      _
    // Predicated region
    $region42: #{net_forward.1} parent=1 // pred_check
      _
    $region43: #{net_forward.1} parent=1 // pred_check_branch
      %38 = sbr.rel (0) target = $region45
    $region44: #{net_forward.1} parent=1 // pred_region
      _
    $region45: #{net_forward.1} parent=1 // pred_fallthru
      _
    %v39 = vld [vmem:[%s0] sm:$0x3]
    %v40 = vld [vmem:[%s1] sm:$0xf]
    %v41 = vld [vmem:[%s2] sm:$0x1]
    %v43 = vlaneseq
    %v44 = vshrl.u32 %v43, 7
    %v45 = vsub.s32 0, %v44
    %v46 = vrot.slane %v41, %v45
    %49 = vset.pattern.permute.xlu0 0
    %50 = vperm.xlu0 %49, %v39
    %v51 = vpop.permute.xlu0 %50
    %v53 = vlaneseq
    %v54 = vshrl.u32 %v53, 7
    %v55 = vsub.s32 3, %v54
    %v56 = vrot.slane %v40, %v55
    %v57 = vmul.f32 %v51, %v56
    %v58 = vadd.f32 %v46, %v57
    %v59 = vmax.f32 %v58, 0.0
    %v60 = vlaneseq
    %v61 = vshrl.u32 %v60, 7
    %v62 = vsub.s32 2, %v61
    %v63 = vrot.slane %v40, %v62
    %v64 = vmul.f32 %v51, %v63
    %v65 = vadd.f32 %v46, %v64
    %66 = vset.pattern.permute.xlu0 1
    %67 = vperm.xlu0 %66, %v39
    %v68 = vpop.permute.xlu0 %67
    %v70 = vmul.f32 %v68, %v56
    %v71 = vadd.f32 %v65, %v70
    %v72 = vmax.f32 %v71, 0.0
    %v73 = vmax.f32 %v59, %v72
    %v74 = vlaneseq
    %v75 = vshrl.u32 %v74, 7
    %v76 = vsub.s32 1, %v75
    %v77 = vrot.slane %v40, %v76
    %v78 = vmul.f32 %v51, %v77
    %v79 = vadd.f32 %v46, %v78
    %80 = vset.pattern.permute.xlu0 4
    %81 = vperm.xlu0 %80, %v39
    %v82 = vpop.permute.xlu0 %81
    %v84 = vmul.f32 %v82, %v56
    %v85 = vadd.f32 %v79, %v84
    %v86 = vmax.f32 %v85, 0.0
    %v87 = vlaneseq
    %v88 = vshrl.u32 %v87, 7
    %v89 = vsub.s32 0, %v88
    %v90 = vrot.slane %v40, %v89
    %v91 = vmul.f32 %v51, %v90
    %v92 = vadd.f32 %v46, %v91
    %v93 = vmul.f32 %v68, %v77
    %v94 = vadd.f32 %v92, %v93
    %v95 = vmul.f32 %v82, %v63
    %v96 = vadd.f32 %v94, %v95
    %97 = vset.pattern.permute.xlu0 5
    %98 = vperm.xlu0 %97, %v39
    %v99 = vpop.permute.xlu0 %98
    %v101 = vmul.f32 %v99, %v56
    %v102 = vadd.f32 %v96, %v101
    %v103 = vmax.f32 %v102, 0.0
    %v104 = vmax.f32 %v86, %v103
    %v105 = vmax.f32 %v73, %v104
    %v106 = vmul.f32 %v68, %v63
    %v107 = vadd.f32 %v46, %v106
    %108 = vset.pattern.permute.xlu0 2
    %109 = vperm.xlu0 %108, %v39
    %v110 = vpop.permute.xlu0 %109
    %v112 = vmul.f32 %v110, %v56
    %v113 = vadd.f32 %v107, %v112
    %v114 = vmax.f32 %v113, 0.0
    %v115 = vmul.f32 %v110, %v63
    %v116 = vadd.f32 %v46, %v115
    %117 = vset.pattern.permute.xlu0 3
    %118 = vperm.xlu0 %117, %v39
    %v119 = vpop.permute.xlu0 %118
    %v121 = vmul.f32 %v119, %v56
    %v122 = vadd.f32 %v116, %v121
    %v123 = vmax.f32 %v122, 0.0
    %v124 = vmax.f32 %v114, %v123
    %v125 = vmul.f32 %v68, %v90
    %v126 = vadd.f32 %v46, %v125
    %v127 = vmul.f32 %v110, %v77
    %v128 = vadd.f32 %v126, %v127
    %v129 = vmul.f32 %v99, %v63
    %v130 = vadd.f32 %v128, %v129
    %131 = vset.pattern.permute.xlu0 6
    %132 = vperm.xlu0 %131, %v39
    %v133 = vpop.permute.xlu0 %132
    %v135 = vmul.f32 %v133, %v56
    %v136 = vadd.f32 %v130, %v135
    %v137 = vmax.f32 %v136, 0.0
    %v138 = vmul.f32 %v110, %v90
    %v139 = vadd.f32 %v46, %v138
    %v140 = vmul.f32 %v119, %v77
    %v141 = vadd.f32 %v139, %v140
    %v142 = vmul.f32 %v133, %v63
    %v143 = vadd.f32 %v141, %v142
    %144 = vset.pattern.permute.xlu0 7
    %145 = vperm.xlu0 %144, %v39
    %v146 = vpop.permute.xlu0 %145
    %v148 = vmul.f32 %v146, %v56
    %v149 = vadd.f32 %v143, %v148
    %v150 = vmax.f32 %v149, 0.0
    %v151 = vmax.f32 %v137, %v150
    %v152 = vmax.f32 %v124, %v151
    %v153 = vmul.f32 %v82, %v77
    %v154 = vadd.f32 %v46, %v153
    %155 = vset.pattern.permute.xlu0 8
    %156 = vperm.xlu0 %155, %v39
    %v157 = vpop.permute.xlu0 %156
    %v159 = vmul.f32 %v157, %v56
    %v160 = vadd.f32 %v154, %v159
    %v161 = vmax.f32 %v160, 0.0
    %v162 = vmul.f32 %v82, %v90
    %v163 = vadd.f32 %v46, %v162
    %v164 = vmul.f32 %v99, %v77
    %v165 = vadd.f32 %v163, %v164
    %v166 = vmul.f32 %v157, %v63
    %v167 = vadd.f32 %v165, %v166
    %168 = vset.pattern.permute.xlu0 9
    %169 = vperm.xlu0 %168, %v39
    %v170 = vpop.permute.xlu0 %169
    %v172 = vmul.f32 %v170, %v56
    %v173 = vadd.f32 %v167, %v172
    %v174 = vmax.f32 %v173, 0.0
    %v175 = vmax.f32 %v161, %v174
    %v176 = vmul.f32 %v157, %v77
    %v177 = vadd.f32 %v46, %v176
    %178 = vset.pattern.permute.xlu0 12
    %179 = vperm.xlu0 %178, %v39
    %v180 = vpop.permute.xlu0 %179
    %v182 = vmul.f32 %v180, %v56
    %v183 = vadd.f32 %v177, %v182
    %v184 = vmax.f32 %v183, 0.0
    %v185 = vmul.f32 %v157, %v90
    %v186 = vadd.f32 %v46, %v185
    %v187 = vmul.f32 %v170, %v77
    %v188 = vadd.f32 %v186, %v187
    %v189 = vmul.f32 %v180, %v63
    %v190 = vadd.f32 %v188, %v189
    %191 = vset.pattern.permute.xlu0 13
    %192 = vperm.xlu0 %191, %v39
    %v193 = vpop.permute.xlu0 %192
    %v195 = vmul.f32 %v193, %v56
    %v196 = vadd.f32 %v190, %v195
    %v197 = vmax.f32 %v196, 0.0
    %v198 = vmax.f32 %v184, %v197
    %v199 = vmax.f32 %v175, %v198
    %v200 = vmul.f32 %v99, %v90
    %v201 = vadd.f32 %v46, %v200
    %v202 = vmul.f32 %v133, %v77
    %v203 = vadd.f32 %v201, %v202
    %v204 = vmul.f32 %v170, %v63
    %v205 = vadd.f32 %v203, %v204
    %206 = vset.pattern.permute.xlu0 10
    %207 = vperm.xlu0 %206, %v39
    %v208 = vpop.permute.xlu0 %207
    %v210 = vmul.f32 %v208, %v56
    %v211 = vadd.f32 %v205, %v210
    %v212 = vmax.f32 %v211, 0.0
    %v213 = vmul.f32 %v133, %v90
    %v214 = vadd.f32 %v46, %v213
    %v215 = vmul.f32 %v146, %v77
    %v216 = vadd.f32 %v214, %v215
    %v217 = vmul.f32 %v208, %v63
    %v218 = vadd.f32 %v216, %v217
    %219 = vset.pattern.permute.xlu0 11
    %220 = vperm.xlu0 %219, %v39
    %v221 = vpop.permute.xlu0 %220
    %v223 = vmul.f32 %v221, %v56
    %v224 = vadd.f32 %v218, %v223
    %v225 = vmax.f32 %v224, 0.0
    %v226 = vmax.f32 %v212, %v225
    %v227 = vmul.f32 %v170, %v90
    %v228 = vadd.f32 %v46, %v227
    %v229 = vmul.f32 %v208, %v77
    %v230 = vadd.f32 %v228, %v229
    %v231 = vmul.f32 %v193, %v63
    %v232 = vadd.f32 %v230, %v231
    %233 = vset.pattern.permute.xlu0 14
    %234 = vperm.xlu0 %233, %v39
    %v235 = vpop.permute.xlu0 %234
    %v237 = vmul.f32 %v235, %v56
    %v238 = vadd.f32 %v232, %v237
    %v239 = vmax.f32 %v238, 0.0
    %v240 = vmul.f32 %v208, %v90
    %v241 = vadd.f32 %v46, %v240
    %v242 = vmul.f32 %v221, %v77
    %v243 = vadd.f32 %v241, %v242
    %v244 = vmul.f32 %v235, %v63
    %v245 = vadd.f32 %v243, %v244
    %246 = vset.pattern.permute.xlu0 15
    %247 = vperm.xlu0 %246, %v39
    %v248 = vpop.permute.xlu0 %247
    %v250 = vmul.f32 %v248, %v56
    %v251 = vadd.f32 %v245, %v250
    %v252 = vmax.f32 %v251, 0.0
    %v253 = vmax.f32 %v239, %v252
    %v254 = vmax.f32 %v226, %v253
    %256 = vrot.lane.b32.xlu0 %v105, 96
    %v257 = vpop.permute.xlu0 %256
    %vm259 = vcmask 785408
    %v260 = vsel %vm259, 0.0, %v257
    %261 = vrot.lane.b32.xlu0 %v105, 64
    %v262 = vpop.permute.xlu0 %261
    %265 = vrot.lane.b32.xlu0 %v152, 96
    %v266 = vpop.permute.xlu0 %265
    %vm268 = vcmask 523264
    %v269 = vsel %vm268, 0.0, %v262
    %v270 = vsel %vm259, %v269, %v266
    %271 = vrot.lane.b32.xlu0 %v105, 32
    %v272 = vpop.permute.xlu0 %271
    %275 = vrot.lane.b32.xlu0 %v199, 96
    %v276 = vpop.permute.xlu0 %275
    %vm278 = vcmask 261120
    %v279 = vsel %vm278, 0.0, %v272
    %v280 = vsel %vm268, %v279, 0.0
    %v281 = vsel %vm259, %v280, %v276
    %282 = vrot.lane.b32.xlu0 %v152, 32
    %v283 = vpop.permute.xlu0 %282
    %285 = vrot.lane.b32.xlu0 %v199, 64
    %v286 = vpop.permute.xlu0 %285
    %289 = vrot.lane.b32.xlu0 %v254, 96
    %v290 = vpop.permute.xlu0 %289
    %v292 = vsel %vm278, %v105, %v283
    %v293 = vsel %vm268, %v292, %v286
    %v294 = vsel %vm259, %v293, %v290
    %v296 = vrot.slane %v270, 6
    %v299 = vrot.slane %v281, 4
    %v302 = vrot.slane %v294, 2
    %vm304 = vcmask 1041408
    %v305 = vsel %vm304, %v260, %v296
    %vm306 = vcmask 1043456
    %v307 = vsel %vm306, %v305, %v299
    %vm308 = vcmask 1045504
    %v309 = vsel %vm308, %v307, %v302
    %v310 = vld [vmem:[%s3] sm:$0xff]
    %v311 = vld [vmem:[%s3 + $0x8] sm:$0xff]
    %v312 = vld [vmem:[%s3 + $0x10] sm:$0xff]
    %v313 = vld [vmem:[%s3 + $0x18] sm:$0xff]
    %v314 = vld [vmem:[%s3 + $0x20] sm:$0xff]
    %v315 = vld [vmem:[%s3 + $0x28] sm:$0xff]
    %v316 = vld [vmem:[%s3 + $0x30] sm:$0xff]
    %v317 = vld [vmem:[%s3 + $0x38] sm:$0xff]
    %v318 = vld [vmem:[%s3 + $0x40] sm:$0xff]
    %v319 = vld [vmem:[%s3 + $0x48] sm:$0xff]
    %v320 = vld [vmem:[%s3 + $0x50] sm:$0xff]
    %v321 = vld [vmem:[%s3 + $0x58] sm:$0xff]
    %v322 = vld [vmem:[%s3 + $0x60] sm:$0xff]
    %v323 = vld [vmem:[%s3 + $0x68] sm:$0xff]
    %v324 = vld [vmem:[%s3 + $0x70] sm:$0xff]
    %v325 = vld [vmem:[%s3 + $0x78] sm:$0xff]
    %v326 = vld [vmem:[%s4] sm:$0x1]
    %v328 = vlaneseq
    %v329 = vshrl.u32 %v328, 7
    %v330 = vsub.s32 0, %v329
    %v331 = vrot.slane %v326, %v330
    %333 = vmatprep.subr.mxu0 0.0
    %v334 = vand.u32 %v310, 4294901760
    %335 = vmatpush1.msra.mxu0 %v334
    %336 = vmatprep.subr.mxu0 0.0
    %v337 = vand.u32 %v311, 4294901760
    %338 = vmatpush1.msra.mxu0 %v337
    %339 = vmatprep.subr.mxu0 0.0
    %v340 = vand.u32 %v312, 4294901760
    %341 = vmatpush1.msra.mxu0 %v340
    %342 = vmatprep.subr.mxu0 0.0
    %v343 = vand.u32 %v313, 4294901760
    %344 = vmatpush1.msra.mxu0 %v343
    %345 = vmatprep.subr.mxu0 0.0
    %v346 = vand.u32 %v314, 4294901760
    %347 = vmatpush1.msra.mxu0 %v346
    %348 = vmatprep.subr.mxu0 0.0
    %v349 = vand.u32 %v315, 4294901760
    %350 = vmatpush1.msra.mxu0 %v349
    %351 = vmatprep.subr.mxu0 0.0
    %v352 = vand.u32 %v316, 4294901760
    %353 = vmatpush1.msra.mxu0 %v352
    %354 = vmatprep.subr.mxu0 0.0
    %v355 = vand.u32 %v317, 4294901760
    %356 = vmatpush1.msra.mxu0 %v355
    %357 = vmatprep.subr.mxu0 0.0
    %v358 = vand.u32 %v318, 4294901760
    %359 = vmatpush1.msra.mxu0 %v358
    %360 = vmatprep.subr.mxu0 0.0
    %v361 = vand.u32 %v319, 4294901760
    %362 = vmatpush1.msra.mxu0 %v361
    %363 = vmatprep.subr.mxu0 0.0
    %v364 = vand.u32 %v320, 4294901760
    %365 = vmatpush1.msra.mxu0 %v364
    %366 = vmatprep.subr.mxu0 0.0
    %v367 = vand.u32 %v321, 4294901760
    %368 = vmatpush1.msra.mxu0 %v367
    %369 = vmatprep.subr.mxu0 0.0
    %v370 = vand.u32 %v322, 4294901760
    %371 = vmatpush1.msra.mxu0 %v370
    %372 = vmatprep.subr.mxu0 0.0
    %v373 = vand.u32 %v323, 4294901760
    %374 = vmatpush1.msra.mxu0 %v373
    %375 = vmatprep.subr.mxu0 0.0
    %v376 = vand.u32 %v324, 4294901760
    %377 = vmatpush1.msra.mxu0 %v376
    %378 = vmatprep.subr.mxu0 0.0
    %v379 = vand.u32 %v325, 4294901760
    %380 = vmatpush1.msra.mxu0 %v379
    %381 = vmatprep.subr.mxu0 0.0
    %382 = vmatpush1.msra.mxu0 0.0
    %383 = vmatprep.subr.mxu0 0.0
    %384 = vmatpush1.msra.mxu0 0.0
    %385 = vmatprep.subr.mxu0 0.0
    %386 = vmatpush1.msra.mxu0 0.0
    %387 = vmatprep.subr.mxu0 0.0
    %388 = vmatpush1.msra.mxu0 0.0
    %389 = vmatprep.subr.mxu0 0.0
    %390 = vmatpush1.msra.mxu0 0.0
    %391 = vmatprep.subr.mxu0 0.0
    %392 = vmatpush1.msra.mxu0 0.0
    %393 = vmatprep.subr.mxu0 0.0
    %394 = vmatpush1.msra.mxu0 0.0
    %395 = vmatprep.subr.mxu0 0.0
    %396 = vmatpush1.msra.mxu0 0.0
    %397 = vmatprep.subr.mxu0 0.0
    %398 = vmatpush1.msra.mxu0 0.0
    %399 = vmatprep.subr.mxu0 0.0
    %400 = vmatpush1.msra.mxu0 0.0
    %401 = vmatprep.subr.mxu0 0.0
    %402 = vmatpush1.msra.mxu0 0.0
    %403 = vmatprep.subr.mxu0 0.0
    %404 = vmatpush1.msra.mxu0 0.0
    %405 = vmatprep.subr.mxu0 0.0
    %406 = vmatpush1.msra.mxu0 0.0
    %407 = vmatprep.subr.mxu0 0.0
    %408 = vmatpush1.msra.mxu0 0.0
    %409 = vmatprep.subr.mxu0 0.0
    %410 = vmatpush1.msra.mxu0 0.0
    %411 = vmatprep.subr.mxu0 0.0
    %412 = vmatpush1.msra.mxu0 0.0
    %413 = vmatprep.mubr.f32.mxu0 0.0
    %v414 = vand.u32 %v309, 4294901760
    %v415 = vsub.f32 %v309, %v414
    %v416 = vand.u32 %v415, 4294901760
    %v417 = vsub.f32 %v415, %v416
    %v418 = vand.u32 %v417, 4294901760
    %419 = vmatmul.mubr.f32.gmra.mrb[0].mxu0 %v418
    %v420 = vpop.f32.mrb[0].mxu0
    %v421 = vadd.f32 %v331, %v420
    %v422 = vpop.f32.mrb[0].mxu0
    %423 = vdwg.mxu0
    %424 = vmatprep.subr.mxu0 0.0
    %v425 = vand.u32 %v310, 4294901760
    %v426 = vsub.f32 %v310, %v425
    %v427 = vand.u32 %v426, 4294901760
    %v428 = vsub.f32 %v426, %v427
    %v429 = vand.u32 %v428, 4294901760
    %430 = vmatpush1.msra.mxu0 %v429
    %431 = vmatprep.subr.mxu0 0.0
    %v432 = vand.u32 %v311, 4294901760
    %v433 = vsub.f32 %v311, %v432
    %v434 = vand.u32 %v433, 4294901760
    %v435 = vsub.f32 %v433, %v434
    %v436 = vand.u32 %v435, 4294901760
    %437 = vmatpush1.msra.mxu0 %v436
    %438 = vmatprep.subr.mxu0 0.0
    %v439 = vand.u32 %v312, 4294901760
    %v440 = vsub.f32 %v312, %v439
    %v441 = vand.u32 %v440, 4294901760
    %v442 = vsub.f32 %v440, %v441
    %v443 = vand.u32 %v442, 4294901760
    %444 = vmatpush1.msra.mxu0 %v443
    %445 = vmatprep.subr.mxu0 0.0
    %v446 = vand.u32 %v313, 4294901760
    %v447 = vsub.f32 %v313, %v446
    %v448 = vand.u32 %v447, 4294901760
    %v449 = vsub.f32 %v447, %v448
    %v450 = vand.u32 %v449, 4294901760
    %451 = vmatpush1.msra.mxu0 %v450
    %452 = vmatprep.subr.mxu0 0.0
    %v453 = vand.u32 %v314, 4294901760
    %v454 = vsub.f32 %v314, %v453
    %v455 = vand.u32 %v454, 4294901760
    %v456 = vsub.f32 %v454, %v455
    %v457 = vand.u32 %v456, 4294901760
    %458 = vmatpush1.msra.mxu0 %v457
    %459 = vmatprep.subr.mxu0 0.0
    %v460 = vand.u32 %v315, 4294901760
    %v461 = vsub.f32 %v315, %v460
    %v462 = vand.u32 %v461, 4294901760
    %v463 = vsub.f32 %v461, %v462
    %v464 = vand.u32 %v463, 4294901760
    %465 = vmatpush1.msra.mxu0 %v464
    %466 = vmatprep.subr.mxu0 0.0
    %v467 = vand.u32 %v316, 4294901760
    %v468 = vsub.f32 %v316, %v467
    %v469 = vand.u32 %v468, 4294901760
    %v470 = vsub.f32 %v468, %v469
    %v471 = vand.u32 %v470, 4294901760
    %472 = vmatpush1.msra.mxu0 %v471
    %473 = vmatprep.subr.mxu0 0.0
    %v474 = vand.u32 %v317, 4294901760
    %v475 = vsub.f32 %v317, %v474
    %v476 = vand.u32 %v475, 4294901760
    %v477 = vsub.f32 %v475, %v476
    %v478 = vand.u32 %v477, 4294901760
    %479 = vmatpush1.msra.mxu0 %v478
    %480 = vmatprep.subr.mxu0 0.0
    %v481 = vand.u32 %v318, 4294901760
    %v482 = vsub.f32 %v318, %v481
    %v483 = vand.u32 %v482, 4294901760
    %v484 = vsub.f32 %v482, %v483
    %v485 = vand.u32 %v484, 4294901760
    %486 = vmatpush1.msra.mxu0 %v485
    %487 = vmatprep.subr.mxu0 0.0
    %v488 = vand.u32 %v319, 4294901760
    %v489 = vsub.f32 %v319, %v488
    %v490 = vand.u32 %v489, 4294901760
    %v491 = vsub.f32 %v489, %v490
    %v492 = vand.u32 %v491, 4294901760
    %493 = vmatpush1.msra.mxu0 %v492
    %494 = vmatprep.subr.mxu0 0.0
    %v495 = vand.u32 %v320, 4294901760
    %v496 = vsub.f32 %v320, %v495
    %v497 = vand.u32 %v496, 4294901760
    %v498 = vsub.f32 %v496, %v497
    %v499 = vand.u32 %v498, 4294901760
    %500 = vmatpush1.msra.mxu0 %v499
    %501 = vmatprep.subr.mxu0 0.0
    %v502 = vand.u32 %v321, 4294901760
    %v503 = vsub.f32 %v321, %v502
    %v504 = vand.u32 %v503, 4294901760
    %v505 = vsub.f32 %v503, %v504
    %v506 = vand.u32 %v505, 4294901760
    %507 = vmatpush1.msra.mxu0 %v506
    %508 = vmatprep.subr.mxu0 0.0
    %v509 = vand.u32 %v322, 4294901760
    %v510 = vsub.f32 %v322, %v509
    %v511 = vand.u32 %v510, 4294901760
    %v512 = vsub.f32 %v510, %v511
    %v513 = vand.u32 %v512, 4294901760
    %514 = vmatpush1.msra.mxu0 %v513
    %515 = vmatprep.subr.mxu0 0.0
    %v516 = vand.u32 %v323, 4294901760
    %v517 = vsub.f32 %v323, %v516
    %v518 = vand.u32 %v517, 4294901760
    %v519 = vsub.f32 %v517, %v518
    %v520 = vand.u32 %v519, 4294901760
    %521 = vmatpush1.msra.mxu0 %v520
    %522 = vmatprep.subr.mxu0 0.0
    %v523 = vand.u32 %v324, 4294901760
    %v524 = vsub.f32 %v324, %v523
    %v525 = vand.u32 %v524, 4294901760
    %v526 = vsub.f32 %v524, %v525
    %v527 = vand.u32 %v526, 4294901760
    %528 = vmatpush1.msra.mxu0 %v527
    %529 = vmatprep.subr.mxu0 0.0
    %v530 = vand.u32 %v325, 4294901760
    %v531 = vsub.f32 %v325, %v530
    %v532 = vand.u32 %v531, 4294901760
    %v533 = vsub.f32 %v531, %v532
    %v534 = vand.u32 %v533, 4294901760
    %535 = vmatpush1.msra.mxu0 %v534
    %536 = vmatprep.subr.mxu0 0.0
    %537 = vmatpush1.msra.mxu0 0.0
    %538 = vmatprep.subr.mxu0 0.0
    %539 = vmatpush1.msra.mxu0 0.0
    %540 = vmatprep.subr.mxu0 0.0
    %541 = vmatpush1.msra.mxu0 0.0
    %542 = vmatprep.subr.mxu0 0.0
    %543 = vmatpush1.msra.mxu0 0.0
    %544 = vmatprep.subr.mxu0 0.0
    %545 = vmatpush1.msra.mxu0 0.0
    %546 = vmatprep.subr.mxu0 0.0
    %547 = vmatpush1.msra.mxu0 0.0
    %548 = vmatprep.subr.mxu0 0.0
    %549 = vmatpush1.msra.mxu0 0.0
    %550 = vmatprep.subr.mxu0 0.0
    %551 = vmatpush1.msra.mxu0 0.0
    %552 = vmatprep.subr.mxu0 0.0
    %553 = vmatpush1.msra.mxu0 0.0
    %554 = vmatprep.subr.mxu0 0.0
    %555 = vmatpush1.msra.mxu0 0.0
    %556 = vmatprep.subr.mxu0 0.0
    %557 = vmatpush1.msra.mxu0 0.0
    %558 = vmatprep.subr.mxu0 0.0
    %559 = vmatpush1.msra.mxu0 0.0
    %560 = vmatprep.subr.mxu0 0.0
    %561 = vmatpush1.msra.mxu0 0.0
    %562 = vmatprep.subr.mxu0 0.0
    %563 = vmatpush1.msra.mxu0 0.0
    %564 = vmatprep.subr.mxu0 0.0
    %565 = vmatpush1.msra.mxu0 0.0
    %566 = vmatprep.subr.mxu0 0.0
    %567 = vmatpush1.msra.mxu0 0.0
    %568 = vmatprep.mubr.f32.mxu0 0.0
    %v569 = vand.u32 %v309, 4294901760
    %570 = vmatmul.mubr.f32.gmra.mrb[0].mxu0 %v569
    %v571 = vpop.f32.mrb[0].mxu0
    %v572 = vadd.f32 %v421, %v571
    %v573 = vpop.f32.mrb[0].mxu0
    %574 = vdwg.mxu0
    %575 = vmatprep.subr.mxu0 0.0
    %v576 = vand.u32 %v310, 4294901760
    %v577 = vsub.f32 %v310, %v576
    %578 = vmatpush1.msra.mxu0 %v577
    %579 = vmatprep.subr.mxu0 0.0
    %v580 = vand.u32 %v311, 4294901760
    %v581 = vsub.f32 %v311, %v580
    %582 = vmatpush1.msra.mxu0 %v581
    %583 = vmatprep.subr.mxu0 0.0
    %v584 = vand.u32 %v312, 4294901760
    %v585 = vsub.f32 %v312, %v584
    %586 = vmatpush1.msra.mxu0 %v585
    %587 = vmatprep.subr.mxu0 0.0
    %v588 = vand.u32 %v313, 4294901760
    %v589 = vsub.f32 %v313, %v588
    %590 = vmatpush1.msra.mxu0 %v589
    %591 = vmatprep.subr.mxu0 0.0
    %v592 = vand.u32 %v314, 4294901760
    %v593 = vsub.f32 %v314, %v592
    %594 = vmatpush1.msra.mxu0 %v593
    %595 = vmatprep.subr.mxu0 0.0
    %v596 = vand.u32 %v315, 4294901760
    %v597 = vsub.f32 %v315, %v596
    %598 = vmatpush1.msra.mxu0 %v597
    %599 = vmatprep.subr.mxu0 0.0
    %v600 = vand.u32 %v316, 4294901760
    %v601 = vsub.f32 %v316, %v600
    %602 = vmatpush1.msra.mxu0 %v601
    %603 = vmatprep.subr.mxu0 0.0
    %v604 = vand.u32 %v317, 4294901760
    %v605 = vsub.f32 %v317, %v604
    %606 = vmatpush1.msra.mxu0 %v605
    %607 = vmatprep.subr.mxu0 0.0
    %v608 = vand.u32 %v318, 4294901760
    %v609 = vsub.f32 %v318, %v608
    %610 = vmatpush1.msra.mxu0 %v609
    %611 = vmatprep.subr.mxu0 0.0
    %v612 = vand.u32 %v319, 4294901760
    %v613 = vsub.f32 %v319, %v612
    %614 = vmatpush1.msra.mxu0 %v613
    %615 = vmatprep.subr.mxu0 0.0
    %v616 = vand.u32 %v320, 4294901760
    %v617 = vsub.f32 %v320, %v616
    %618 = vmatpush1.msra.mxu0 %v617
    %619 = vmatprep.subr.mxu0 0.0
    %v620 = vand.u32 %v321, 4294901760
    %v621 = vsub.f32 %v321, %v620
    %622 = vmatpush1.msra.mxu0 %v621
    %623 = vmatprep.subr.mxu0 0.0
    %v624 = vand.u32 %v322, 4294901760
    %v625 = vsub.f32 %v322, %v624
    %626 = vmatpush1.msra.mxu0 %v625
    %627 = vmatprep.subr.mxu0 0.0
    %v628 = vand.u32 %v323, 4294901760
    %v629 = vsub.f32 %v323, %v628
    %630 = vmatpush1.msra.mxu0 %v629
    %631 = vmatprep.subr.mxu0 0.0
    %v632 = vand.u32 %v324, 4294901760
    %v633 = vsub.f32 %v324, %v632
    %634 = vmatpush1.msra.mxu0 %v633
    %635 = vmatprep.subr.mxu0 0.0
    %v636 = vand.u32 %v325, 4294901760
    %v637 = vsub.f32 %v325, %v636
    %638 = vmatpush1.msra.mxu0 %v637
    %639 = vmatprep.subr.mxu0 0.0
    %640 = vmatpush1.msra.mxu0 0.0
    %641 = vmatprep.subr.mxu0 0.0
    %642 = vmatpush1.msra.mxu0 0.0
    %643 = vmatprep.subr.mxu0 0.0
    %644 = vmatpush1.msra.mxu0 0.0
    %645 = vmatprep.subr.mxu0 0.0
    %646 = vmatpush1.msra.mxu0 0.0
    %647 = vmatprep.subr.mxu0 0.0
    %648 = vmatpush1.msra.mxu0 0.0
    %649 = vmatprep.subr.mxu0 0.0
    %650 = vmatpush1.msra.mxu0 0.0
    %651 = vmatprep.subr.mxu0 0.0
    %652 = vmatpush1.msra.mxu0 0.0
    %653 = vmatprep.subr.mxu0 0.0
    %654 = vmatpush1.msra.mxu0 0.0
    %655 = vmatprep.subr.mxu0 0.0
    %656 = vmatpush1.msra.mxu0 0.0
    %657 = vmatprep.subr.mxu0 0.0
    %658 = vmatpush1.msra.mxu0 0.0
    %659 = vmatprep.subr.mxu0 0.0
    %660 = vmatpush1.msra.mxu0 0.0
    %661 = vmatprep.subr.mxu0 0.0
    %662 = vmatpush1.msra.mxu0 0.0
    %663 = vmatprep.subr.mxu0 0.0
    %664 = vmatpush1.msra.mxu0 0.0
    %665 = vmatprep.subr.mxu0 0.0
    %666 = vmatpush1.msra.mxu0 0.0
    %667 = vmatprep.subr.mxu0 0.0
    %668 = vmatpush1.msra.mxu0 0.0
    %669 = vmatprep.subr.mxu0 0.0
    %670 = vmatpush1.msra.mxu0 0.0
    %671 = vmatprep.mubr.f32.mxu0 0.0
    %v672 = vand.u32 %v309, 4294901760
    %v673 = vsub.f32 %v309, %v672
    %674 = vmatmul.mubr.f32.gmra.mrb[0].mxu0 %v673
    %v675 = vpop.f32.mrb[0].mxu0
    %v676 = vadd.f32 %v572, %v675
    %v677 = vpop.f32.mrb[0].mxu0
    %678 = vdwg.mxu0
    %679 = vmatprep.subr.mxu0 0.0
    %v680 = vand.u32 %v310, 4294901760
    %681 = vmatpush1.msra.mxu0 %v680
    %682 = vmatprep.subr.mxu0 0.0
    %v683 = vand.u32 %v311, 4294901760
    %684 = vmatpush1.msra.mxu0 %v683
    %685 = vmatprep.subr.mxu0 0.0
    %v686 = vand.u32 %v312, 4294901760
    %687 = vmatpush1.msra.mxu0 %v686
    %688 = vmatprep.subr.mxu0 0.0
    %v689 = vand.u32 %v313, 4294901760
    %690 = vmatpush1.msra.mxu0 %v689
    %691 = vmatprep.subr.mxu0 0.0
    %v692 = vand.u32 %v314, 4294901760
    %693 = vmatpush1.msra.mxu0 %v692
    %694 = vmatprep.subr.mxu0 0.0
    %v695 = vand.u32 %v315, 4294901760
    %696 = vmatpush1.msra.mxu0 %v695
    %697 = vmatprep.subr.mxu0 0.0
    %v698 = vand.u32 %v316, 4294901760
    %699 = vmatpush1.msra.mxu0 %v698
    %700 = vmatprep.subr.mxu0 0.0
    %v701 = vand.u32 %v317, 4294901760
    %702 = vmatpush1.msra.mxu0 %v701
    %703 = vmatprep.subr.mxu0 0.0
    %v704 = vand.u32 %v318, 4294901760
    %705 = vmatpush1.msra.mxu0 %v704
    %706 = vmatprep.subr.mxu0 0.0
    %v707 = vand.u32 %v319, 4294901760
    %708 = vmatpush1.msra.mxu0 %v707
    %709 = vmatprep.subr.mxu0 0.0
    %v710 = vand.u32 %v320, 4294901760
    %711 = vmatpush1.msra.mxu0 %v710
    %712 = vmatprep.subr.mxu0 0.0
    %v713 = vand.u32 %v321, 4294901760
    %714 = vmatpush1.msra.mxu0 %v713
    %715 = vmatprep.subr.mxu0 0.0
    %v716 = vand.u32 %v322, 4294901760
    %717 = vmatpush1.msra.mxu0 %v716
    %718 = vmatprep.subr.mxu0 0.0
    %v719 = vand.u32 %v323, 4294901760
    %720 = vmatpush1.msra.mxu0 %v719
    %721 = vmatprep.subr.mxu0 0.0
    %v722 = vand.u32 %v324, 4294901760
    %723 = vmatpush1.msra.mxu0 %v722
    %724 = vmatprep.subr.mxu0 0.0
    %v725 = vand.u32 %v325, 4294901760
    %726 = vmatpush1.msra.mxu0 %v725
    %727 = vmatprep.subr.mxu0 0.0
    %728 = vmatpush1.msra.mxu0 0.0
    %729 = vmatprep.subr.mxu0 0.0
    %730 = vmatpush1.msra.mxu0 0.0
    %731 = vmatprep.subr.mxu0 0.0
    %732 = vmatpush1.msra.mxu0 0.0
    %733 = vmatprep.subr.mxu0 0.0
    %734 = vmatpush1.msra.mxu0 0.0
    %735 = vmatprep.subr.mxu0 0.0
    %736 = vmatpush1.msra.mxu0 0.0
    %737 = vmatprep.subr.mxu0 0.0
    %738 = vmatpush1.msra.mxu0 0.0
    %739 = vmatprep.subr.mxu0 0.0
    %740 = vmatpush1.msra.mxu0 0.0
    %741 = vmatprep.subr.mxu0 0.0
    %742 = vmatpush1.msra.mxu0 0.0
    %743 = vmatprep.subr.mxu0 0.0
    %744 = vmatpush1.msra.mxu0 0.0
    %745 = vmatprep.subr.mxu0 0.0
    %746 = vmatpush1.msra.mxu0 0.0
    %747 = vmatprep.subr.mxu0 0.0
    %748 = vmatpush1.msra.mxu0 0.0
    %749 = vmatprep.subr.mxu0 0.0
    %750 = vmatpush1.msra.mxu0 0.0
    %751 = vmatprep.subr.mxu0 0.0
    %752 = vmatpush1.msra.mxu0 0.0
    %753 = vmatprep.subr.mxu0 0.0
    %754 = vmatpush1.msra.mxu0 0.0
    %755 = vmatprep.subr.mxu0 0.0
    %756 = vmatpush1.msra.mxu0 0.0
    %757 = vmatprep.subr.mxu0 0.0
    %758 = vmatpush1.msra.mxu0 0.0
    %759 = vmatprep.mubr.f32.mxu0 0.0
    %v760 = vand.u32 %v309, 4294901760
    %v761 = vsub.f32 %v309, %v760
    %v762 = vand.u32 %v761, 4294901760
    %763 = vmatmul.mubr.f32.gmra.mrb[0].mxu0 %v762
    %v764 = vpop.f32.mrb[0].mxu0
    %v765 = vadd.f32 %v676, %v764
    %v766 = vpop.f32.mrb[0].mxu0
    %767 = vdwg.mxu0
    %768 = vmatprep.subr.mxu0 0.0
    %v769 = vand.u32 %v310, 4294901760
    %v770 = vsub.f32 %v310, %v769
    %v771 = vand.u32 %v770, 4294901760
    %772 = vmatpush1.msra.mxu0 %v771
    %773 = vmatprep.subr.mxu0 0.0
    %v774 = vand.u32 %v311, 4294901760
    %v775 = vsub.f32 %v311, %v774
    %v776 = vand.u32 %v775, 4294901760
    %777 = vmatpush1.msra.mxu0 %v776
    %778 = vmatprep.subr.mxu0 0.0
    %v779 = vand.u32 %v312, 4294901760
    %v780 = vsub.f32 %v312, %v779
    %v781 = vand.u32 %v780, 4294901760
    %782 = vmatpush1.msra.mxu0 %v781
    %783 = vmatprep.subr.mxu0 0.0
    %v784 = vand.u32 %v313, 4294901760
    %v785 = vsub.f32 %v313, %v784
    %v786 = vand.u32 %v785, 4294901760
    %787 = vmatpush1.msra.mxu0 %v786
    %788 = vmatprep.subr.mxu0 0.0
    %v789 = vand.u32 %v314, 4294901760
    %v790 = vsub.f32 %v314, %v789
    %v791 = vand.u32 %v790, 4294901760
    %792 = vmatpush1.msra.mxu0 %v791
    %793 = vmatprep.subr.mxu0 0.0
    %v794 = vand.u32 %v315, 4294901760
    %v795 = vsub.f32 %v315, %v794
    %v796 = vand.u32 %v795, 4294901760
    %797 = vmatpush1.msra.mxu0 %v796
    %798 = vmatprep.subr.mxu0 0.0
    %v799 = vand.u32 %v316, 4294901760
    %v800 = vsub.f32 %v316, %v799
    %v801 = vand.u32 %v800, 4294901760
    %802 = vmatpush1.msra.mxu0 %v801
    %803 = vmatprep.subr.mxu0 0.0
    %v804 = vand.u32 %v317, 4294901760
    %v805 = vsub.f32 %v317, %v804
    %v806 = vand.u32 %v805, 4294901760
    %807 = vmatpush1.msra.mxu0 %v806
    %808 = vmatprep.subr.mxu0 0.0
    %v809 = vand.u32 %v318, 4294901760
    %v810 = vsub.f32 %v318, %v809
    %v811 = vand.u32 %v810, 4294901760
    %812 = vmatpush1.msra.mxu0 %v811
    %813 = vmatprep.subr.mxu0 0.0
    %v814 = vand.u32 %v319, 4294901760
    %v815 = vsub.f32 %v319, %v814
    %v816 = vand.u32 %v815, 4294901760
    %817 = vmatpush1.msra.mxu0 %v816
    %818 = vmatprep.subr.mxu0 0.0
    %v819 = vand.u32 %v320, 4294901760
    %v820 = vsub.f32 %v320, %v819
    %v821 = vand.u32 %v820, 4294901760
    %822 = vmatpush1.msra.mxu0 %v821
    %823 = vmatprep.subr.mxu0 0.0
    %v824 = vand.u32 %v321, 4294901760
    %v825 = vsub.f32 %v321, %v824
    %v826 = vand.u32 %v825, 4294901760
    %827 = vmatpush1.msra.mxu0 %v826
    %828 = vmatprep.subr.mxu0 0.0
    %v829 = vand.u32 %v322, 4294901760
    %v830 = vsub.f32 %v322, %v829
    %v831 = vand.u32 %v830, 4294901760
    %832 = vmatpush1.msra.mxu0 %v831
    %833 = vmatprep.subr.mxu0 0.0
    %v834 = vand.u32 %v323, 4294901760
    %v835 = vsub.f32 %v323, %v834
    %v836 = vand.u32 %v835, 4294901760
    %837 = vmatpush1.msra.mxu0 %v836
    %838 = vmatprep.subr.mxu0 0.0
    %v839 = vand.u32 %v324, 4294901760
    %v840 = vsub.f32 %v324, %v839
    %v841 = vand.u32 %v840, 4294901760
    %842 = vmatpush1.msra.mxu0 %v841
    %843 = vmatprep.subr.mxu0 0.0
    %v844 = vand.u32 %v325, 4294901760
    %v845 = vsub.f32 %v325, %v844
    %v846 = vand.u32 %v845, 4294901760
    %847 = vmatpush1.msra.mxu0 %v846
    %848 = vmatprep.subr.mxu0 0.0
    %849 = vmatpush1.msra.mxu0 0.0
    %850 = vmatprep.subr.mxu0 0.0
    %851 = vmatpush1.msra.mxu0 0.0
    %852 = vmatprep.subr.mxu0 0.0
    %853 = vmatpush1.msra.mxu0 0.0
    %854 = vmatprep.subr.mxu0 0.0
    %855 = vmatpush1.msra.mxu0 0.0
    %856 = vmatprep.subr.mxu0 0.0
    %857 = vmatpush1.msra.mxu0 0.0
    %858 = vmatprep.subr.mxu0 0.0
    %859 = vmatpush1.msra.mxu0 0.0
    %860 = vmatprep.subr.mxu0 0.0
    %861 = vmatpush1.msra.mxu0 0.0
    %862 = vmatprep.subr.mxu0 0.0
    %863 = vmatpush1.msra.mxu0 0.0
    %864 = vmatprep.subr.mxu0 0.0
    %865 = vmatpush1.msra.mxu0 0.0
    %866 = vmatprep.subr.mxu0 0.0
    %867 = vmatpush1.msra.mxu0 0.0
    %868 = vmatprep.subr.mxu0 0.0
    %869 = vmatpush1.msra.mxu0 0.0
    %870 = vmatprep.subr.mxu0 0.0
    %871 = vmatpush1.msra.mxu0 0.0
    %872 = vmatprep.subr.mxu0 0.0
    %873 = vmatpush1.msra.mxu0 0.0
    %874 = vmatprep.subr.mxu0 0.0
    %875 = vmatpush1.msra.mxu0 0.0
    %876 = vmatprep.subr.mxu0 0.0
    %877 = vmatpush1.msra.mxu0 0.0
    %878 = vmatprep.subr.mxu0 0.0
    %879 = vmatpush1.msra.mxu0 0.0
    %880 = vmatprep.mubr.f32.mxu0 0.0
    %v881 = vand.u32 %v309, 4294901760
    %882 = vmatmul.mubr.f32.gmra.mrb[0].mxu0 %v881
    %v883 = vpop.f32.mrb[0].mxu0
    %v884 = vadd.f32 %v765, %v883
    %v885 = vpop.f32.mrb[0].mxu0
    %886 = vdwg.mxu0
    %887 = vmatprep.subr.mxu0 0.0
    %v888 = vand.u32 %v310, 4294901760
    %889 = vmatpush1.msra.mxu0 %v888
    %890 = vmatprep.subr.mxu0 0.0
    %v891 = vand.u32 %v311, 4294901760
    %892 = vmatpush1.msra.mxu0 %v891
    %893 = vmatprep.subr.mxu0 0.0
    %v894 = vand.u32 %v312, 4294901760
    %895 = vmatpush1.msra.mxu0 %v894
    %896 = vmatprep.subr.mxu0 0.0
    %v897 = vand.u32 %v313, 4294901760
    %898 = vmatpush1.msra.mxu0 %v897
    %899 = vmatprep.subr.mxu0 0.0
    %v900 = vand.u32 %v314, 4294901760
    %901 = vmatpush1.msra.mxu0 %v900
    %902 = vmatprep.subr.mxu0 0.0
    %v903 = vand.u32 %v315, 4294901760
    %904 = vmatpush1.msra.mxu0 %v903
    %905 = vmatprep.subr.mxu0 0.0
    %v906 = vand.u32 %v316, 4294901760
    %907 = vmatpush1.msra.mxu0 %v906
    %908 = vmatprep.subr.mxu0 0.0
    %v909 = vand.u32 %v317, 4294901760
    %910 = vmatpush1.msra.mxu0 %v909
    %911 = vmatprep.subr.mxu0 0.0
    %v912 = vand.u32 %v318, 4294901760
    %913 = vmatpush1.msra.mxu0 %v912
    %914 = vmatprep.subr.mxu0 0.0
    %v915 = vand.u32 %v319, 4294901760
    %916 = vmatpush1.msra.mxu0 %v915
    %917 = vmatprep.subr.mxu0 0.0
    %v918 = vand.u32 %v320, 4294901760
    %919 = vmatpush1.msra.mxu0 %v918
    %920 = vmatprep.subr.mxu0 0.0
    %v921 = vand.u32 %v321, 4294901760
    %922 = vmatpush1.msra.mxu0 %v921
    %923 = vmatprep.subr.mxu0 0.0
    %v924 = vand.u32 %v322, 4294901760
    %925 = vmatpush1.msra.mxu0 %v924
    %926 = vmatprep.subr.mxu0 0.0
    %v927 = vand.u32 %v323, 4294901760
    %928 = vmatpush1.msra.mxu0 %v927
    %929 = vmatprep.subr.mxu0 0.0
    %v930 = vand.u32 %v324, 4294901760
    %931 = vmatpush1.msra.mxu0 %v930
    %932 = vmatprep.subr.mxu0 0.0
    %v933 = vand.u32 %v325, 4294901760
    %934 = vmatpush1.msra.mxu0 %v933
    %935 = vmatprep.subr.mxu0 0.0
    %936 = vmatpush1.msra.mxu0 0.0
    %937 = vmatprep.subr.mxu0 0.0
    %938 = vmatpush1.msra.mxu0 0.0
    %939 = vmatprep.subr.mxu0 0.0
    %940 = vmatpush1.msra.mxu0 0.0
    %941 = vmatprep.subr.mxu0 0.0
    %942 = vmatpush1.msra.mxu0 0.0
    %943 = vmatprep.subr.mxu0 0.0
    %944 = vmatpush1.msra.mxu0 0.0
    %945 = vmatprep.subr.mxu0 0.0
    %946 = vmatpush1.msra.mxu0 0.0
    %947 = vmatprep.subr.mxu0 0.0
    %948 = vmatpush1.msra.mxu0 0.0
    %949 = vmatprep.subr.mxu0 0.0
    %950 = vmatpush1.msra.mxu0 0.0
    %951 = vmatprep.subr.mxu0 0.0
    %952 = vmatpush1.msra.mxu0 0.0
    %953 = vmatprep.subr.mxu0 0.0
    %954 = vmatpush1.msra.mxu0 0.0
    %955 = vmatprep.subr.mxu0 0.0
    %956 = vmatpush1.msra.mxu0 0.0
    %957 = vmatprep.subr.mxu0 0.0
    %958 = vmatpush1.msra.mxu0 0.0
    %959 = vmatprep.subr.mxu0 0.0
    %960 = vmatpush1.msra.mxu0 0.0
    %961 = vmatprep.subr.mxu0 0.0
    %962 = vmatpush1.msra.mxu0 0.0
    %963 = vmatprep.subr.mxu0 0.0
    %964 = vmatpush1.msra.mxu0 0.0
    %965 = vmatprep.subr.mxu0 0.0
    %966 = vmatpush1.msra.mxu0 0.0
    %967 = vmatprep.mubr.f32.mxu0 0.0
    %v968 = vand.u32 %v309, 4294901760
    %969 = vmatmul.mubr.f32.gmra.mrb[0].mxu0 %v968
    %v970 = vpop.f32.mrb[0].mxu0
    %v971 = vadd.f32 %v884, %v970
    %v972 = vpop.f32.mrb[0].mxu0
    %973 = vdwg.mxu0
    %v974 = vmax.f32 %v971, 0.0
    %v976 = vrot.slane %v974, 2
    %v978 = vmax.f32 %v974, %v976
    %v980 = vrot.slane %v978, 4
    %v982 = vmax.f32 %v978, %v980
    %v983 = vld [vmem:[%s5] sm:$0xff]
    %v984 = vld [vmem:[%s5 + $0x8] sm:$0xff]
    %v985 = vld [vmem:[%s5 + $0x10] sm:$0xff]
    %v986 = vld [vmem:[%s5 + $0x18] sm:$0xff]
    %v987 = vld [vmem:[%s5 + $0x20] sm:$0xff]
    %v988 = vld [vmem:[%s5 + $0x28] sm:$0xff]
    %v989 = vld [vmem:[%s5 + $0x30] sm:$0xff]
    %v990 = vld [vmem:[%s5 + $0x38] sm:$0xff]
    %v991 = vld [vmem:[%s6] sm:$0x1]
    %v993 = vlaneseq
    %v994 = vshrl.u32 %v993, 7
    %v995 = vsub.s32 0, %v994
    %v996 = vrot.slane %v991, %v995
    %v999 = vsel %vm268, %v982, 0
    %1001 = vmatprep.subr.mxu0 0.0
    %v1002 = vand.u32 %v983, 4294901760
    %1003 = vmatpush1.msra.mxu0 %v1002
    %1004 = vmatprep.subr.mxu0 0.0
    %v1005 = vand.u32 %v984, 4294901760
    %1006 = vmatpush1.msra.mxu0 %v1005
    %1007 = vmatprep.subr.mxu0 0.0
    %v1008 = vand.u32 %v985, 4294901760
    %1009 = vmatpush1.msra.mxu0 %v1008
    %1010 = vmatprep.subr.mxu0 0.0
    %v1011 = vand.u32 %v986, 4294901760
    %1012 = vmatpush1.msra.mxu0 %v1011
    %1013 = vmatprep.subr.mxu0 0.0
    %v1014 = vand.u32 %v987, 4294901760
    %1015 = vmatpush1.msra.mxu0 %v1014
    %1016 = vmatprep.subr.mxu0 0.0
    %v1017 = vand.u32 %v988, 4294901760
    %1018 = vmatpush1.msra.mxu0 %v1017
    %1019 = vmatprep.subr.mxu0 0.0
    %v1020 = vand.u32 %v989, 4294901760
    %1021 = vmatpush1.msra.mxu0 %v1020
    %1022 = vmatprep.subr.mxu0 0.0
    %v1023 = vand.u32 %v990, 4294901760
    %1024 = vmatpush1.msra.mxu0 %v1023
    %1025 = vmatprep.subr.mxu0 0.0
    %1026 = vmatpush1.msra.mxu0 0.0
    %1027 = vmatprep.subr.mxu0 0.0
    %1028 = vmatpush1.msra.mxu0 0.0
    %1029 = vmatprep.subr.mxu0 0.0
    %1030 = vmatpush1.msra.mxu0 0.0
    %1031 = vmatprep.subr.mxu0 0.0
    %1032 = vmatpush1.msra.mxu0 0.0
    %1033 = vmatprep.subr.mxu0 0.0
    %1034 = vmatpush1.msra.mxu0 0.0
    %1035 = vmatprep.subr.mxu0 0.0
    %1036 = vmatpush1.msra.mxu0 0.0
    %1037 = vmatprep.subr.mxu0 0.0
    %1038 = vmatpush1.msra.mxu0 0.0
    %1039 = vmatprep.subr.mxu0 0.0
    %1040 = vmatpush1.msra.mxu0 0.0
    %1041 = vmatprep.subr.mxu0 0.0
    %1042 = vmatpush1.msra.mxu0 0.0
    %1043 = vmatprep.subr.mxu0 0.0
    %1044 = vmatpush1.msra.mxu0 0.0
    %1045 = vmatprep.subr.mxu0 0.0
    %1046 = vmatpush1.msra.mxu0 0.0
    %1047 = vmatprep.subr.mxu0 0.0
    %1048 = vmatpush1.msra.mxu0 0.0
    %1049 = vmatprep.subr.mxu0 0.0
    %1050 = vmatpush1.msra.mxu0 0.0
    %1051 = vmatprep.subr.mxu0 0.0
    %1052 = vmatpush1.msra.mxu0 0.0
    %1053 = vmatprep.subr.mxu0 0.0
    %1054 = vmatpush1.msra.mxu0 0.0
    %1055 = vmatprep.subr.mxu0 0.0
    %1056 = vmatpush1.msra.mxu0 0.0
    %1057 = vmatprep.subr.mxu0 0.0
    %1058 = vmatpush1.msra.mxu0 0.0
    %1059 = vmatprep.subr.mxu0 0.0
    %1060 = vmatpush1.msra.mxu0 0.0
    %1061 = vmatprep.subr.mxu0 0.0
    %1062 = vmatpush1.msra.mxu0 0.0
    %1063 = vmatprep.subr.mxu0 0.0
    %1064 = vmatpush1.msra.mxu0 0.0
    %1065 = vmatprep.subr.mxu0 0.0
    %1066 = vmatpush1.msra.mxu0 0.0
    %1067 = vmatprep.subr.mxu0 0.0
    %1068 = vmatpush1.msra.mxu0 0.0
    %1069 = vmatprep.subr.mxu0 0.0
    %1070 = vmatpush1.msra.mxu0 0.0
    %1071 = vmatprep.subr.mxu0 0.0
    %1072 = vmatpush1.msra.mxu0 0.0
    %1073 = vmatprep.mubr.f32.mxu0 0.0
    %v1074 = vand.u32 %v999, 4294901760
    %v1075 = vsub.f32 %v999, %v1074
    %v1076 = vand.u32 %v1075, 4294901760
    %v1077 = vsub.f32 %v1075, %v1076
    %v1078 = vand.u32 %v1077, 4294901760
    %1079 = vmatmul.mubr.f32.gmra.mrb[0].mxu0 %v1078
    %v1080 = vpop.f32.mrb[0].mxu0
    %v1081 = vadd.f32 %v996, %v1080
    %v1082 = vpop.f32.mrb[0].mxu0
    %1083 = vdwg.mxu0
    %1084 = vmatprep.subr.mxu0 0.0
    %v1085 = vand.u32 %v983, 4294901760
    %v1086 = vsub.f32 %v983, %v1085
    %v1087 = vand.u32 %v1086, 4294901760
    %v1088 = vsub.f32 %v1086, %v1087
    %v1089 = vand.u32 %v1088, 4294901760
    %1090 = vmatpush1.msra.mxu0 %v1089
    %1091 = vmatprep.subr.mxu0 0.0
    %v1092 = vand.u32 %v984, 4294901760
    %v1093 = vsub.f32 %v984, %v1092
    %v1094 = vand.u32 %v1093, 4294901760
    %v1095 = vsub.f32 %v1093, %v1094
    %v1096 = vand.u32 %v1095, 4294901760
    %1097 = vmatpush1.msra.mxu0 %v1096
    %1098 = vmatprep.subr.mxu0 0.0
    %v1099 = vand.u32 %v985, 4294901760
    %v1100 = vsub.f32 %v985, %v1099
    %v1101 = vand.u32 %v1100, 4294901760
    %v1102 = vsub.f32 %v1100, %v1101
    %v1103 = vand.u32 %v1102, 4294901760
    %1104 = vmatpush1.msra.mxu0 %v1103
    %1105 = vmatprep.subr.mxu0 0.0
    %v1106 = vand.u32 %v986, 4294901760
    %v1107 = vsub.f32 %v986, %v1106
    %v1108 = vand.u32 %v1107, 4294901760
    %v1109 = vsub.f32 %v1107, %v1108
    %v1110 = vand.u32 %v1109, 4294901760
    %1111 = vmatpush1.msra.mxu0 %v1110
    %1112 = vmatprep.subr.mxu0 0.0
    %v1113 = vand.u32 %v987, 4294901760
    %v1114 = vsub.f32 %v987, %v1113
    %v1115 = vand.u32 %v1114, 4294901760
    %v1116 = vsub.f32 %v1114, %v1115
    %v1117 = vand.u32 %v1116, 4294901760
    %1118 = vmatpush1.msra.mxu0 %v1117
    %1119 = vmatprep.subr.mxu0 0.0
    %v1120 = vand.u32 %v988, 4294901760
    %v1121 = vsub.f32 %v988, %v1120
    %v1122 = vand.u32 %v1121, 4294901760
    %v1123 = vsub.f32 %v1121, %v1122
    %v1124 = vand.u32 %v1123, 4294901760
    %1125 = vmatpush1.msra.mxu0 %v1124
    %1126 = vmatprep.subr.mxu0 0.0
    %v1127 = vand.u32 %v989, 4294901760
    %v1128 = vsub.f32 %v989, %v1127
    %v1129 = vand.u32 %v1128, 4294901760
    %v1130 = vsub.f32 %v1128, %v1129
    %v1131 = vand.u32 %v1130, 4294901760
    %1132 = vmatpush1.msra.mxu0 %v1131
    %1133 = vmatprep.subr.mxu0 0.0
    %v1134 = vand.u32 %v990, 4294901760
    %v1135 = vsub.f32 %v990, %v1134
    %v1136 = vand.u32 %v1135, 4294901760
    %v1137 = vsub.f32 %v1135, %v1136
    %v1138 = vand.u32 %v1137, 4294901760
    %1139 = vmatpush1.msra.mxu0 %v1138
    %1140 = vmatprep.subr.mxu0 0.0
    %1141 = vmatpush1.msra.mxu0 0.0
    %1142 = vmatprep.subr.mxu0 0.0
    %1143 = vmatpush1.msra.mxu0 0.0
    %1144 = vmatprep.subr.mxu0 0.0
    %1145 = vmatpush1.msra.mxu0 0.0
    %1146 = vmatprep.subr.mxu0 0.0
    %1147 = vmatpush1.msra.mxu0 0.0
    %1148 = vmatprep.subr.mxu0 0.0
    %1149 = vmatpush1.msra.mxu0 0.0
    %1150 = vmatprep.subr.mxu0 0.0
    %1151 = vmatpush1.msra.mxu0 0.0
    %1152 = vmatprep.subr.mxu0 0.0
    %1153 = vmatpush1.msra.mxu0 0.0
    %1154 = vmatprep.subr.mxu0 0.0
    %1155 = vmatpush1.msra.mxu0 0.0
    %1156 = vmatprep.subr.mxu0 0.0
    %1157 = vmatpush1.msra.mxu0 0.0
    %1158 = vmatprep.subr.mxu0 0.0
    %1159 = vmatpush1.msra.mxu0 0.0
    %1160 = vmatprep.subr.mxu0 0.0
    %1161 = vmatpush1.msra.mxu0 0.0
    %1162 = vmatprep.subr.mxu0 0.0
    %1163 = vmatpush1.msra.mxu0 0.0
    %1164 = vmatprep.subr.mxu0 0.0
    %1165 = vmatpush1.msra.mxu0 0.0
    %1166 = vmatprep.subr.mxu0 0.0
    %1167 = vmatpush1.msra.mxu0 0.0
    %1168 = vmatprep.subr.mxu0 0.0
    %1169 = vmatpush1.msra.mxu0 0.0
    %1170 = vmatprep.subr.mxu0 0.0
    %1171 = vmatpush1.msra.mxu0 0.0
    %1172 = vmatprep.subr.mxu0 0.0
    %1173 = vmatpush1.msra.mxu0 0.0
    %1174 = vmatprep.subr.mxu0 0.0
    %1175 = vmatpush1.msra.mxu0 0.0
    %1176 = vmatprep.subr.mxu0 0.0
    %1177 = vmatpush1.msra.mxu0 0.0
    %1178 = vmatprep.subr.mxu0 0.0
    %1179 = vmatpush1.msra.mxu0 0.0
    %1180 = vmatprep.subr.mxu0 0.0
    %1181 = vmatpush1.msra.mxu0 0.0
    %1182 = vmatprep.subr.mxu0 0.0
    %1183 = vmatpush1.msra.mxu0 0.0
    %1184 = vmatprep.subr.mxu0 0.0
    %1185 = vmatpush1.msra.mxu0 0.0
    %1186 = vmatprep.subr.mxu0 0.0
    %1187 = vmatpush1.msra.mxu0 0.0
    %1188 = vmatprep.mubr.f32.mxu0 0.0
    %v1189 = vand.u32 %v999, 4294901760
    %1190 = vmatmul.mubr.f32.gmra.mrb[0].mxu0 %v1189
    %v1191 = vpop.f32.mrb[0].mxu0
    %v1192 = vadd.f32 %v1081, %v1191
    %v1193 = vpop.f32.mrb[0].mxu0
    %1194 = vdwg.mxu0
    %1195 = vmatprep.subr.mxu0 0.0
    %v1196 = vand.u32 %v983, 4294901760
    %v1197 = vsub.f32 %v983, %v1196
    %1198 = vmatpush1.msra.mxu0 %v1197
    %1199 = vmatprep.subr.mxu0 0.0
    %v1200 = vand.u32 %v984, 4294901760
    %v1201 = vsub.f32 %v984, %v1200
    %1202 = vmatpush1.msra.mxu0 %v1201
    %1203 = vmatprep.subr.mxu0 0.0
    %v1204 = vand.u32 %v985, 4294901760
    %v1205 = vsub.f32 %v985, %v1204
    %1206 = vmatpush1.msra.mxu0 %v1205
    %1207 = vmatprep.subr.mxu0 0.0
    %v1208 = vand.u32 %v986, 4294901760
    %v1209 = vsub.f32 %v986, %v1208
    %1210 = vmatpush1.msra.mxu0 %v1209
    %1211 = vmatprep.subr.mxu0 0.0
    %v1212 = vand.u32 %v987, 4294901760
    %v1213 = vsub.f32 %v987, %v1212
    %1214 = vmatpush1.msra.mxu0 %v1213
    %1215 = vmatprep.subr.mxu0 0.0
    %v1216 = vand.u32 %v988, 4294901760
    %v1217 = vsub.f32 %v988, %v1216
    %1218 = vmatpush1.msra.mxu0 %v1217
    %1219 = vmatprep.subr.mxu0 0.0
    %v1220 = vand.u32 %v989, 4294901760
    %v1221 = vsub.f32 %v989, %v1220
    %1222 = vmatpush1.msra.mxu0 %v1221
    %1223 = vmatprep.subr.mxu0 0.0
    %v1224 = vand.u32 %v990, 4294901760
    %v1225 = vsub.f32 %v990, %v1224
    %1226 = vmatpush1.msra.mxu0 %v1225
    %1227 = vmatprep.subr.mxu0 0.0
    %1228 = vmatpush1.msra.mxu0 0.0
    %1229 = vmatprep.subr.mxu0 0.0
    %1230 = vmatpush1.msra.mxu0 0.0
    %1231 = vmatprep.subr.mxu0 0.0
    %1232 = vmatpush1.msra.mxu0 0.0
    %1233 = vmatprep.subr.mxu0 0.0
    %1234 = vmatpush1.msra.mxu0 0.0
    %1235 = vmatprep.subr.mxu0 0.0
    %1236 = vmatpush1.msra.mxu0 0.0
    %1237 = vmatprep.subr.mxu0 0.0
    %1238 = vmatpush1.msra.mxu0 0.0
    %1239 = vmatprep.subr.mxu0 0.0
    %1240 = vmatpush1.msra.mxu0 0.0
    %1241 = vmatprep.subr.mxu0 0.0
    %1242 = vmatpush1.msra.mxu0 0.0
    %1243 = vmatprep.subr.mxu0 0.0
    %1244 = vmatpush1.msra.mxu0 0.0
    %1245 = vmatprep.subr.mxu0 0.0
    %1246 = vmatpush1.msra.mxu0 0.0
    %1247 = vmatprep.subr.mxu0 0.0
    %1248 = vmatpush1.msra.mxu0 0.0
    %1249 = vmatprep.subr.mxu0 0.0
    %1250 = vmatpush1.msra.mxu0 0.0
    %1251 = vmatprep.subr.mxu0 0.0
    %1252 = vmatpush1.msra.mxu0 0.0
    %1253 = vmatprep.subr.mxu0 0.0
    %1254 = vmatpush1.msra.mxu0 0.0
    %1255 = vmatprep.subr.mxu0 0.0
    %1256 = vmatpush1.msra.mxu0 0.0
    %1257 = vmatprep.subr.mxu0 0.0
    %1258 = vmatpush1.msra.mxu0 0.0
    %1259 = vmatprep.subr.mxu0 0.0
    %1260 = vmatpush1.msra.mxu0 0.0
    %1261 = vmatprep.subr.mxu0 0.0
    %1262 = vmatpush1.msra.mxu0 0.0
    %1263 = vmatprep.subr.mxu0 0.0
    %1264 = vmatpush1.msra.mxu0 0.0
    %1265 = vmatprep.subr.mxu0 0.0
    %1266 = vmatpush1.msra.mxu0 0.0
    %1267 = vmatprep.subr.mxu0 0.0
    %1268 = vmatpush1.msra.mxu0 0.0
    %1269 = vmatprep.subr.mxu0 0.0
    %1270 = vmatpush1.msra.mxu0 0.0
    %1271 = vmatprep.subr.mxu0 0.0
    %1272 = vmatpush1.msra.mxu0 0.0
    %1273 = vmatprep.subr.mxu0 0.0
    %1274 = vmatpush1.msra.mxu0 0.0
    %1275 = vmatprep.mubr.f32.mxu0 0.0
    %v1276 = vand.u32 %v999, 4294901760
    %v1277 = vsub.f32 %v999, %v1276
    %1278 = vmatmul.mubr.f32.gmra.mrb[0].mxu0 %v1277
    %v1279 = vpop.f32.mrb[0].mxu0
    %v1280 = vadd.f32 %v1192, %v1279
    %v1281 = vpop.f32.mrb[0].mxu0
    %1282 = vdwg.mxu0
    %1283 = vmatprep.subr.mxu0 0.0
    %v1284 = vand.u32 %v983, 4294901760
    %1285 = vmatpush1.msra.mxu0 %v1284
    %1286 = vmatprep.subr.mxu0 0.0
    %v1287 = vand.u32 %v984, 4294901760
    %1288 = vmatpush1.msra.mxu0 %v1287
    %1289 = vmatprep.subr.mxu0 0.0
    %v1290 = vand.u32 %v985, 4294901760
    %1291 = vmatpush1.msra.mxu0 %v1290
    %1292 = vmatprep.subr.mxu0 0.0
    %v1293 = vand.u32 %v986, 4294901760
    %1294 = vmatpush1.msra.mxu0 %v1293
    %1295 = vmatprep.subr.mxu0 0.0
    %v1296 = vand.u32 %v987, 4294901760
    %1297 = vmatpush1.msra.mxu0 %v1296
    %1298 = vmatprep.subr.mxu0 0.0
    %v1299 = vand.u32 %v988, 4294901760
    %1300 = vmatpush1.msra.mxu0 %v1299
    %1301 = vmatprep.subr.mxu0 0.0
    %v1302 = vand.u32 %v989, 4294901760
    %1303 = vmatpush1.msra.mxu0 %v1302
    %1304 = vmatprep.subr.mxu0 0.0
    %v1305 = vand.u32 %v990, 4294901760
    %1306 = vmatpush1.msra.mxu0 %v1305
    %1307 = vmatprep.subr.mxu0 0.0
    %1308 = vmatpush1.msra.mxu0 0.0
    %1309 = vmatprep.subr.mxu0 0.0
    %1310 = vmatpush1.msra.mxu0 0.0
    %1311 = vmatprep.subr.mxu0 0.0
    %1312 = vmatpush1.msra.mxu0 0.0
    %1313 = vmatprep.subr.mxu0 0.0
    %1314 = vmatpush1.msra.mxu0 0.0
    %1315 = vmatprep.subr.mxu0 0.0
    %1316 = vmatpush1.msra.mxu0 0.0
    %1317 = vmatprep.subr.mxu0 0.0
    %1318 = vmatpush1.msra.mxu0 0.0
    %1319 = vmatprep.subr.mxu0 0.0
    %1320 = vmatpush1.msra.mxu0 0.0
    %1321 = vmatprep.subr.mxu0 0.0
    %1322 = vmatpush1.msra.mxu0 0.0
    %1323 = vmatprep.subr.mxu0 0.0
    %1324 = vmatpush1.msra.mxu0 0.0
    %1325 = vmatprep.subr.mxu0 0.0
    %1326 = vmatpush1.msra.mxu0 0.0
    %1327 = vmatprep.subr.mxu0 0.0
    %1328 = vmatpush1.msra.mxu0 0.0
    %1329 = vmatprep.subr.mxu0 0.0
    %1330 = vmatpush1.msra.mxu0 0.0
    %1331 = vmatprep.subr.mxu0 0.0
    %1332 = vmatpush1.msra.mxu0 0.0
    %1333 = vmatprep.subr.mxu0 0.0
    %1334 = vmatpush1.msra.mxu0 0.0
    %1335 = vmatprep.subr.mxu0 0.0
    %1336 = vmatpush1.msra.mxu0 0.0
    %1337 = vmatprep.subr.mxu0 0.0
    %1338 = vmatpush1.msra.mxu0 0.0
    %1339 = vmatprep.subr.mxu0 0.0
    %1340 = vmatpush1.msra.mxu0 0.0
    %1341 = vmatprep.subr.mxu0 0.0
    %1342 = vmatpush1.msra.mxu0 0.0
    %1343 = vmatprep.subr.mxu0 0.0
    %1344 = vmatpush1.msra.mxu0 0.0
    %1345 = vmatprep.subr.mxu0 0.0
    %1346 = vmatpush1.msra.mxu0 0.0
    %1347 = vmatprep.subr.mxu0 0.0
    %1348 = vmatpush1.msra.mxu0 0.0
    %1349 = vmatprep.subr.mxu0 0.0
    %1350 = vmatpush1.msra.mxu0 0.0
    %1351 = vmatprep.subr.mxu0 0.0
    %1352 = vmatpush1.msra.mxu0 0.0
    %1353 = vmatprep.subr.mxu0 0.0
    %1354 = vmatpush1.msra.mxu0 0.0
    %1355 = vmatprep.mubr.f32.mxu0 0.0
    %v1356 = vand.u32 %v999, 4294901760
    %v1357 = vsub.f32 %v999, %v1356
    %v1358 = vand.u32 %v1357, 4294901760
    %1359 = vmatmul.mubr.f32.gmra.mrb[0].mxu0 %v1358
    %v1360 = vpop.f32.mrb[0].mxu0
    %v1361 = vadd.f32 %v1280, %v1360
    %v1362 = vpop.f32.mrb[0].mxu0
    %1363 = vdwg.mxu0
    %1364 = vmatprep.subr.mxu0 0.0
    %v1365 = vand.u32 %v983, 4294901760
    %v1366 = vsub.f32 %v983, %v1365
    %v1367 = vand.u32 %v1366, 4294901760
    %1368 = vmatpush1.msra.mxu0 %v1367
    %1369 = vmatprep.subr.mxu0 0.0
    %v1370 = vand.u32 %v984, 4294901760
    %v1371 = vsub.f32 %v984, %v1370
    %v1372 = vand.u32 %v1371, 4294901760
    %1373 = vmatpush1.msra.mxu0 %v1372
    %1374 = vmatprep.subr.mxu0 0.0
    %v1375 = vand.u32 %v985, 4294901760
    %v1376 = vsub.f32 %v985, %v1375
    %v1377 = vand.u32 %v1376, 4294901760
    %1378 = vmatpush1.msra.mxu0 %v1377
    %1379 = vmatprep.subr.mxu0 0.0
    %v1380 = vand.u32 %v986, 4294901760
    %v1381 = vsub.f32 %v986, %v1380
    %v1382 = vand.u32 %v1381, 4294901760
    %1383 = vmatpush1.msra.mxu0 %v1382
    %1384 = vmatprep.subr.mxu0 0.0
    %v1385 = vand.u32 %v987, 4294901760
    %v1386 = vsub.f32 %v987, %v1385
    %v1387 = vand.u32 %v1386, 4294901760
    %1388 = vmatpush1.msra.mxu0 %v1387
    %1389 = vmatprep.subr.mxu0 0.0
    %v1390 = vand.u32 %v988, 4294901760
    %v1391 = vsub.f32 %v988, %v1390
    %v1392 = vand.u32 %v1391, 4294901760
    %1393 = vmatpush1.msra.mxu0 %v1392
    %1394 = vmatprep.subr.mxu0 0.0
    %v1395 = vand.u32 %v989, 4294901760
    %v1396 = vsub.f32 %v989, %v1395
    %v1397 = vand.u32 %v1396, 4294901760
    %1398 = vmatpush1.msra.mxu0 %v1397
    %1399 = vmatprep.subr.mxu0 0.0
    %v1400 = vand.u32 %v990, 4294901760
    %v1401 = vsub.f32 %v990, %v1400
    %v1402 = vand.u32 %v1401, 4294901760
    %1403 = vmatpush1.msra.mxu0 %v1402
    %1404 = vmatprep.subr.mxu0 0.0
    %1405 = vmatpush1.msra.mxu0 0.0
    %1406 = vmatprep.subr.mxu0 0.0
    %1407 = vmatpush1.msra.mxu0 0.0
    %1408 = vmatprep.subr.mxu0 0.0
    %1409 = vmatpush1.msra.mxu0 0.0
    %1410 = vmatprep.subr.mxu0 0.0
    %1411 = vmatpush1.msra.mxu0 0.0
    %1412 = vmatprep.subr.mxu0 0.0
    %1413 = vmatpush1.msra.mxu0 0.0
    %1414 = vmatprep.subr.mxu0 0.0
    %1415 = vmatpush1.msra.mxu0 0.0
    %1416 = vmatprep.subr.mxu0 0.0
    %1417 = vmatpush1.msra.mxu0 0.0
    %1418 = vmatprep.subr.mxu0 0.0
    %1419 = vmatpush1.msra.mxu0 0.0
    %1420 = vmatprep.subr.mxu0 0.0
    %1421 = vmatpush1.msra.mxu0 0.0
    %1422 = vmatprep.subr.mxu0 0.0
    %1423 = vmatpush1.msra.mxu0 0.0
    %1424 = vmatprep.subr.mxu0 0.0
    %1425 = vmatpush1.msra.mxu0 0.0
    %1426 = vmatprep.subr.mxu0 0.0
    %1427 = vmatpush1.msra.mxu0 0.0
    %1428 = vmatprep.subr.mxu0 0.0
    %1429 = vmatpush1.msra.mxu0 0.0
    %1430 = vmatprep.subr.mxu0 0.0
    %1431 = vmatpush1.msra.mxu0 0.0
    %1432 = vmatprep.subr.mxu0 0.0
    %1433 = vmatpush1.msra.mxu0 0.0
    %1434 = vmatprep.subr.mxu0 0.0
    %1435 = vmatpush1.msra.mxu0 0.0
    %1436 = vmatprep.subr.mxu0 0.0
    %1437 = vmatpush1.msra.mxu0 0.0
    %1438 = vmatprep.subr.mxu0 0.0
    %1439 = vmatpush1.msra.mxu0 0.0
    %1440 = vmatprep.subr.mxu0 0.0
    %1441 = vmatpush1.msra.mxu0 0.0
    %1442 = vmatprep.subr.mxu0 0.0
    %1443 = vmatpush1.msra.mxu0 0.0
    %1444 = vmatprep.subr.mxu0 0.0
    %1445 = vmatpush1.msra.mxu0 0.0
    %1446 = vmatprep.subr.mxu0 0.0
    %1447 = vmatpush1.msra.mxu0 0.0
    %1448 = vmatprep.subr.mxu0 0.0
    %1449 = vmatpush1.msra.mxu0 0.0
    %1450 = vmatprep.subr.mxu0 0.0
    %1451 = vmatpush1.msra.mxu0 0.0
    %1452 = vmatprep.mubr.f32.mxu0 0.0
    %v1453 = vand.u32 %v999, 4294901760
    %1454 = vmatmul.mubr.f32.gmra.mrb[0].mxu0 %v1453
    %v1455 = vpop.f32.mrb[0].mxu0
    %v1456 = vadd.f32 %v1361, %v1455
    %v1457 = vpop.f32.mrb[0].mxu0
    %1458 = vdwg.mxu0
    %1459 = vmatprep.subr.mxu0 0.0
    %v1460 = vand.u32 %v983, 4294901760
    %1461 = vmatpush1.msra.mxu0 %v1460
    %1462 = vmatprep.subr.mxu0 0.0
    %v1463 = vand.u32 %v984, 4294901760
    %1464 = vmatpush1.msra.mxu0 %v1463
    %1465 = vmatprep.subr.mxu0 0.0
    %v1466 = vand.u32 %v985, 4294901760
    %1467 = vmatpush1.msra.mxu0 %v1466
    %1468 = vmatprep.subr.mxu0 0.0
    %v1469 = vand.u32 %v986, 4294901760
    %1470 = vmatpush1.msra.mxu0 %v1469
    %1471 = vmatprep.subr.mxu0 0.0
    %v1472 = vand.u32 %v987, 4294901760
    %1473 = vmatpush1.msra.mxu0 %v1472
    %1474 = vmatprep.subr.mxu0 0.0
    %v1475 = vand.u32 %v988, 4294901760
    %1476 = vmatpush1.msra.mxu0 %v1475
    %1477 = vmatprep.subr.mxu0 0.0
    %v1478 = vand.u32 %v989, 4294901760
    %1479 = vmatpush1.msra.mxu0 %v1478
    %1480 = vmatprep.subr.mxu0 0.0
    %v1481 = vand.u32 %v990, 4294901760
    %1482 = vmatpush1.msra.mxu0 %v1481
    %1483 = vmatprep.subr.mxu0 0.0
    %1484 = vmatpush1.msra.mxu0 0.0
    %1485 = vmatprep.subr.mxu0 0.0
    %1486 = vmatpush1.msra.mxu0 0.0
    %1487 = vmatprep.subr.mxu0 0.0
    %1488 = vmatpush1.msra.mxu0 0.0
    %1489 = vmatprep.subr.mxu0 0.0
    %1490 = vmatpush1.msra.mxu0 0.0
    %1491 = vmatprep.subr.mxu0 0.0
    %1492 = vmatpush1.msra.mxu0 0.0
    %1493 = vmatprep.subr.mxu0 0.0
    %1494 = vmatpush1.msra.mxu0 0.0
    %1495 = vmatprep.subr.mxu0 0.0
    %1496 = vmatpush1.msra.mxu0 0.0
    %1497 = vmatprep.subr.mxu0 0.0
    %1498 = vmatpush1.msra.mxu0 0.0
    %1499 = vmatprep.subr.mxu0 0.0
    %1500 = vmatpush1.msra.mxu0 0.0
    %1501 = vmatprep.subr.mxu0 0.0
    %1502 = vmatpush1.msra.mxu0 0.0
    %1503 = vmatprep.subr.mxu0 0.0
    %1504 = vmatpush1.msra.mxu0 0.0
    %1505 = vmatprep.subr.mxu0 0.0
    %1506 = vmatpush1.msra.mxu0 0.0
    %1507 = vmatprep.subr.mxu0 0.0
    %1508 = vmatpush1.msra.mxu0 0.0
    %1509 = vmatprep.subr.mxu0 0.0
    %1510 = vmatpush1.msra.mxu0 0.0
    %1511 = vmatprep.subr.mxu0 0.0
    %1512 = vmatpush1.msra.mxu0 0.0
    %1513 = vmatprep.subr.mxu0 0.0
    %1514 = vmatpush1.msra.mxu0 0.0
    %1515 = vmatprep.subr.mxu0 0.0
    %1516 = vmatpush1.msra.mxu0 0.0
    %1517 = vmatprep.subr.mxu0 0.0
    %1518 = vmatpush1.msra.mxu0 0.0
    %1519 = vmatprep.subr.mxu0 0.0
    %1520 = vmatpush1.msra.mxu0 0.0
    %1521 = vmatprep.subr.mxu0 0.0
    %1522 = vmatpush1.msra.mxu0 0.0
    %1523 = vmatprep.subr.mxu0 0.0
    %1524 = vmatpush1.msra.mxu0 0.0
    %1525 = vmatprep.subr.mxu0 0.0
    %1526 = vmatpush1.msra.mxu0 0.0
    %1527 = vmatprep.subr.mxu0 0.0
    %1528 = vmatpush1.msra.mxu0 0.0
    %1529 = vmatprep.subr.mxu0 0.0
    %1530 = vmatpush1.msra.mxu0 0.0
    %1531 = vmatprep.mubr.f32.mxu0 0.0
    %v1532 = vand.u32 %v999, 4294901760
    %1533 = vmatmul.mubr.f32.gmra.mrb[0].mxu0 %v1532
    %v1534 = vpop.f32.mrb[0].mxu0
    %v1535 = vadd.f32 %v1456, %v1534
    %v1536 = vpop.f32.mrb[0].mxu0
    %1537 = vdwg.mxu0
    %v1538 = vmax.f32 %v1535, 0.0
    %v1539 = vld [vmem:[%s7] sm:$0xff]
    %v1540 = vld [vmem:[%s7 + $0x8] sm:$0xff]
    %v1541 = vld [vmem:[%s7 + $0x10] sm:$0xff]
    %v1542 = vld [vmem:[%s7 + $0x18] sm:$0xff]
    %v1543 = vld [vmem:[%s7 + $0x20] sm:$0xff]
    %v1544 = vld [vmem:[%s7 + $0x28] sm:$0xff]
    %v1545 = vld [vmem:[%s7 + $0x30] sm:$0xff]
    %v1546 = vld [vmem:[%s7 + $0x38] sm:$0xff]
    %v1547 = vld [vmem:[%s7 + $0x40] sm:$0xff]
    %v1548 = vld [vmem:[%s7 + $0x48] sm:$0xff]
    %v1549 = vld [vmem:[%s7 + $0x50] sm:$0xff]
    %v1550 = vld [vmem:[%s7 + $0x58] sm:$0xff]
    %v1551 = vld [vmem:[%s7 + $0x60] sm:$0xff]
    %v1552 = vld [vmem:[%s7 + $0x68] sm:$0xff]
    %v1553 = vld [vmem:[%s7 + $0x70] sm:$0xff]
    %v1554 = vld [vmem:[%s7 + $0x78] sm:$0xff]
    %v1555 = vld [vmem:[%s8] sm:$0x1]
    %v1557 = vlaneseq
    %v1558 = vshrl.u32 %v1557, 7
    %v1559 = vsub.s32 0, %v1558
    %v1560 = vrot.slane %v1555, %v1559
    %1562 = vmatprep.subr.mxu0 0.0
    %v1563 = vand.u32 %v1539, 4294901760
    %1564 = vmatpush1.msra.mxu0 %v1563
    %1565 = vmatprep.subr.mxu0 0.0
    %v1566 = vand.u32 %v1540, 4294901760
    %1567 = vmatpush1.msra.mxu0 %v1566
    %1568 = vmatprep.subr.mxu0 0.0
    %v1569 = vand.u32 %v1541, 4294901760
    %1570 = vmatpush1.msra.mxu0 %v1569
    %1571 = vmatprep.subr.mxu0 0.0
    %v1572 = vand.u32 %v1542, 4294901760
    %1573 = vmatpush1.msra.mxu0 %v1572
    %1574 = vmatprep.subr.mxu0 0.0
    %v1575 = vand.u32 %v1543, 4294901760
    %1576 = vmatpush1.msra.mxu0 %v1575
    %1577 = vmatprep.subr.mxu0 0.0
    %v1578 = vand.u32 %v1544, 4294901760
    %1579 = vmatpush1.msra.mxu0 %v1578
    %1580 = vmatprep.subr.mxu0 0.0
    %v1581 = vand.u32 %v1545, 4294901760
    %1582 = vmatpush1.msra.mxu0 %v1581
    %1583 = vmatprep.subr.mxu0 0.0
    %v1584 = vand.u32 %v1546, 4294901760
    %1585 = vmatpush1.msra.mxu0 %v1584
    %1586 = vmatprep.subr.mxu0 0.0
    %v1587 = vand.u32 %v1547, 4294901760
    %1588 = vmatpush1.msra.mxu0 %v1587
    %1589 = vmatprep.subr.mxu0 0.0
    %v1590 = vand.u32 %v1548, 4294901760
    %1591 = vmatpush1.msra.mxu0 %v1590
    %1592 = vmatprep.subr.mxu0 0.0
    %v1593 = vand.u32 %v1549, 4294901760
    %1594 = vmatpush1.msra.mxu0 %v1593
    %1595 = vmatprep.subr.mxu0 0.0
    %v1596 = vand.u32 %v1550, 4294901760
    %1597 = vmatpush1.msra.mxu0 %v1596
    %1598 = vmatprep.subr.mxu0 0.0
    %v1599 = vand.u32 %v1551, 4294901760
    %1600 = vmatpush1.msra.mxu0 %v1599
    %1601 = vmatprep.subr.mxu0 0.0
    %v1602 = vand.u32 %v1552, 4294901760
    %1603 = vmatpush1.msra.mxu0 %v1602
    %1604 = vmatprep.subr.mxu0 0.0
    %v1605 = vand.u32 %v1553, 4294901760
    %1606 = vmatpush1.msra.mxu0 %v1605
    %1607 = vmatprep.subr.mxu0 0.0
    %v1608 = vand.u32 %v1554, 4294901760
    %1609 = vmatpush1.msra.mxu0 %v1608
    %1610 = vmatprep.subr.mxu0 0.0
    %1611 = vmatpush1.msra.mxu0 0.0
    %1612 = vmatprep.subr.mxu0 0.0
    %1613 = vmatpush1.msra.mxu0 0.0
    %1614 = vmatprep.subr.mxu0 0.0
    %1615 = vmatpush1.msra.mxu0 0.0
    %1616 = vmatprep.subr.mxu0 0.0
    %1617 = vmatpush1.msra.mxu0 0.0
    %1618 = vmatprep.subr.mxu0 0.0
    %1619 = vmatpush1.msra.mxu0 0.0
    %1620 = vmatprep.subr.mxu0 0.0
    %1621 = vmatpush1.msra.mxu0 0.0
    %1622 = vmatprep.subr.mxu0 0.0
    %1623 = vmatpush1.msra.mxu0 0.0
    %1624 = vmatprep.subr.mxu0 0.0
    %1625 = vmatpush1.msra.mxu0 0.0
    %1626 = vmatprep.subr.mxu0 0.0
    %1627 = vmatpush1.msra.mxu0 0.0
    %1628 = vmatprep.subr.mxu0 0.0
    %1629 = vmatpush1.msra.mxu0 0.0
    %1630 = vmatprep.subr.mxu0 0.0
    %1631 = vmatpush1.msra.mxu0 0.0
    %1632 = vmatprep.subr.mxu0 0.0
    %1633 = vmatpush1.msra.mxu0 0.0
    %1634 = vmatprep.subr.mxu0 0.0
    %1635 = vmatpush1.msra.mxu0 0.0
    %1636 = vmatprep.subr.mxu0 0.0
    %1637 = vmatpush1.msra.mxu0 0.0
    %1638 = vmatprep.subr.mxu0 0.0
    %1639 = vmatpush1.msra.mxu0 0.0
    %1640 = vmatprep.subr.mxu0 0.0
    %1641 = vmatpush1.msra.mxu0 0.0
    %1642 = vmatprep.mubr.f32.mxu0 0.0
    %v1643 = vand.u32 %v1538, 4294901760
    %v1644 = vsub.f32 %v1538, %v1643
    %v1645 = vand.u32 %v1644, 4294901760
    %v1646 = vsub.f32 %v1644, %v1645
    %v1647 = vand.u32 %v1646, 4294901760
    %1648 = vmatmul.mubr.f32.gmra.mrb[0].mxu0 %v1647
    %v1649 = vpop.f32.mrb[0].mxu0
    %v1650 = vadd.f32 %v1560, %v1649
    %v1651 = vpop.f32.mrb[0].mxu0
    %1652 = vdwg.mxu0
    %1653 = vmatprep.subr.mxu0 0.0
    %v1654 = vand.u32 %v1539, 4294901760
    %v1655 = vsub.f32 %v1539, %v1654
    %v1656 = vand.u32 %v1655, 4294901760
    %v1657 = vsub.f32 %v1655, %v1656
    %v1658 = vand.u32 %v1657, 4294901760
    %1659 = vmatpush1.msra.mxu0 %v1658
    %1660 = vmatprep.subr.mxu0 0.0
    %v1661 = vand.u32 %v1540, 4294901760
    %v1662 = vsub.f32 %v1540, %v1661
    %v1663 = vand.u32 %v1662, 4294901760
    %v1664 = vsub.f32 %v1662, %v1663
    %v1665 = vand.u32 %v1664, 4294901760
    %1666 = vmatpush1.msra.mxu0 %v1665
    %1667 = vmatprep.subr.mxu0 0.0
    %v1668 = vand.u32 %v1541, 4294901760
    %v1669 = vsub.f32 %v1541, %v1668
    %v1670 = vand.u32 %v1669, 4294901760
    %v1671 = vsub.f32 %v1669, %v1670
    %v1672 = vand.u32 %v1671, 4294901760
    %1673 = vmatpush1.msra.mxu0 %v1672
    %1674 = vmatprep.subr.mxu0 0.0
    %v1675 = vand.u32 %v1542, 4294901760
    %v1676 = vsub.f32 %v1542, %v1675
    %v1677 = vand.u32 %v1676, 4294901760
    %v1678 = vsub.f32 %v1676, %v1677
    %v1679 = vand.u32 %v1678, 4294901760
    %1680 = vmatpush1.msra.mxu0 %v1679
    %1681 = vmatprep.subr.mxu0 0.0
    %v1682 = vand.u32 %v1543, 4294901760
    %v1683 = vsub.f32 %v1543, %v1682
    %v1684 = vand.u32 %v1683, 4294901760
    %v1685 = vsub.f32 %v1683, %v1684
    %v1686 = vand.u32 %v1685, 4294901760
    %1687 = vmatpush1.msra.mxu0 %v1686
    %1688 = vmatprep.subr.mxu0 0.0
    %v1689 = vand.u32 %v1544, 4294901760
    %v1690 = vsub.f32 %v1544, %v1689
    %v1691 = vand.u32 %v1690, 4294901760
    %v1692 = vsub.f32 %v1690, %v1691
    %v1693 = vand.u32 %v1692, 4294901760
    %1694 = vmatpush1.msra.mxu0 %v1693
    %1695 = vmatprep.subr.mxu0 0.0
    %v1696 = vand.u32 %v1545, 4294901760
    %v1697 = vsub.f32 %v1545, %v1696
    %v1698 = vand.u32 %v1697, 4294901760
    %v1699 = vsub.f32 %v1697, %v1698
    %v1700 = vand.u32 %v1699, 4294901760
    %1701 = vmatpush1.msra.mxu0 %v1700
    %1702 = vmatprep.subr.mxu0 0.0
    %v1703 = vand.u32 %v1546, 4294901760
    %v1704 = vsub.f32 %v1546, %v1703
    %v1705 = vand.u32 %v1704, 4294901760
    %v1706 = vsub.f32 %v1704, %v1705
    %v1707 = vand.u32 %v1706, 4294901760
    %1708 = vmatpush1.msra.mxu0 %v1707
    %1709 = vmatprep.subr.mxu0 0.0
    %v1710 = vand.u32 %v1547, 4294901760
    %v1711 = vsub.f32 %v1547, %v1710
    %v1712 = vand.u32 %v1711, 4294901760
    %v1713 = vsub.f32 %v1711, %v1712
    %v1714 = vand.u32 %v1713, 4294901760
    %1715 = vmatpush1.msra.mxu0 %v1714
    %1716 = vmatprep.subr.mxu0 0.0
    %v1717 = vand.u32 %v1548, 4294901760
    %v1718 = vsub.f32 %v1548, %v1717
    %v1719 = vand.u32 %v1718, 4294901760
    %v1720 = vsub.f32 %v1718, %v1719
    %v1721 = vand.u32 %v1720, 4294901760
    %1722 = vmatpush1.msra.mxu0 %v1721
    %1723 = vmatprep.subr.mxu0 0.0
    %v1724 = vand.u32 %v1549, 4294901760
    %v1725 = vsub.f32 %v1549, %v1724
    %v1726 = vand.u32 %v1725, 4294901760
    %v1727 = vsub.f32 %v1725, %v1726
    %v1728 = vand.u32 %v1727, 4294901760
    %1729 = vmatpush1.msra.mxu0 %v1728
    %1730 = vmatprep.subr.mxu0 0.0
    %v1731 = vand.u32 %v1550, 4294901760
    %v1732 = vsub.f32 %v1550, %v1731
    %v1733 = vand.u32 %v1732, 4294901760
    %v1734 = vsub.f32 %v1732, %v1733
    %v1735 = vand.u32 %v1734, 4294901760
    %1736 = vmatpush1.msra.mxu0 %v1735
    %1737 = vmatprep.subr.mxu0 0.0
    %v1738 = vand.u32 %v1551, 4294901760
    %v1739 = vsub.f32 %v1551, %v1738
    %v1740 = vand.u32 %v1739, 4294901760
    %v1741 = vsub.f32 %v1739, %v1740
    %v1742 = vand.u32 %v1741, 4294901760
    %1743 = vmatpush1.msra.mxu0 %v1742
    %1744 = vmatprep.subr.mxu0 0.0
    %v1745 = vand.u32 %v1552, 4294901760
    %v1746 = vsub.f32 %v1552, %v1745
    %v1747 = vand.u32 %v1746, 4294901760
    %v1748 = vsub.f32 %v1746, %v1747
    %v1749 = vand.u32 %v1748, 4294901760
    %1750 = vmatpush1.msra.mxu0 %v1749
    %1751 = vmatprep.subr.mxu0 0.0
    %v1752 = vand.u32 %v1553, 4294901760
    %v1753 = vsub.f32 %v1553, %v1752
    %v1754 = vand.u32 %v1753, 4294901760
    %v1755 = vsub.f32 %v1753, %v1754
    %v1756 = vand.u32 %v1755, 4294901760
    %1757 = vmatpush1.msra.mxu0 %v1756
    %1758 = vmatprep.subr.mxu0 0.0
    %v1759 = vand.u32 %v1554, 4294901760
    %v1760 = vsub.f32 %v1554, %v1759
    %v1761 = vand.u32 %v1760, 4294901760
    %v1762 = vsub.f32 %v1760, %v1761
    %v1763 = vand.u32 %v1762, 4294901760
    %1764 = vmatpush1.msra.mxu0 %v1763
    %1765 = vmatprep.subr.mxu0 0.0
    %1766 = vmatpush1.msra.mxu0 0.0
    %1767 = vmatprep.subr.mxu0 0.0
    %1768 = vmatpush1.msra.mxu0 0.0
    %1769 = vmatprep.subr.mxu0 0.0
    %1770 = vmatpush1.msra.mxu0 0.0
    %1771 = vmatprep.subr.mxu0 0.0
    %1772 = vmatpush1.msra.mxu0 0.0
    %1773 = vmatprep.subr.mxu0 0.0
    %1774 = vmatpush1.msra.mxu0 0.0
    %1775 = vmatprep.subr.mxu0 0.0
    %1776 = vmatpush1.msra.mxu0 0.0
    %1777 = vmatprep.subr.mxu0 0.0
    %1778 = vmatpush1.msra.mxu0 0.0
    %1779 = vmatprep.subr.mxu0 0.0
    %1780 = vmatpush1.msra.mxu0 0.0
    %1781 = vmatprep.subr.mxu0 0.0
    %1782 = vmatpush1.msra.mxu0 0.0
    %1783 = vmatprep.subr.mxu0 0.0
    %1784 = vmatpush1.msra.mxu0 0.0
    %1785 = vmatprep.subr.mxu0 0.0
    %1786 = vmatpush1.msra.mxu0 0.0
    %1787 = vmatprep.subr.mxu0 0.0
    %1788 = vmatpush1.msra.mxu0 0.0
    %1789 = vmatprep.subr.mxu0 0.0
    %1790 = vmatpush1.msra.mxu0 0.0
    %1791 = vmatprep.subr.mxu0 0.0
    %1792 = vmatpush1.msra.mxu0 0.0
    %1793 = vmatprep.subr.mxu0 0.0
    %1794 = vmatpush1.msra.mxu0 0.0
    %1795 = vmatprep.subr.mxu0 0.0
    %1796 = vmatpush1.msra.mxu0 0.0
    %1797 = vmatprep.mubr.f32.mxu0 0.0
    %v1798 = vand.u32 %v1538, 4294901760
    %1799 = vmatmul.mubr.f32.gmra.mrb[0].mxu0 %v1798
    %v1800 = vpop.f32.mrb[0].mxu0
    %v1801 = vadd.f32 %v1650, %v1800
    %v1802 = vpop.f32.mrb[0].mxu0
    %1803 = vdwg.mxu0
    %1804 = vmatprep.subr.mxu0 0.0
    %v1805 = vand.u32 %v1539, 4294901760
    %v1806 = vsub.f32 %v1539, %v1805
    %1807 = vmatpush1.msra.mxu0 %v1806
    %1808 = vmatprep.subr.mxu0 0.0
    %v1809 = vand.u32 %v1540, 4294901760
    %v1810 = vsub.f32 %v1540, %v1809
    %1811 = vmatpush1.msra.mxu0 %v1810
    %1812 = vmatprep.subr.mxu0 0.0
    %v1813 = vand.u32 %v1541, 4294901760
    %v1814 = vsub.f32 %v1541, %v1813
    %1815 = vmatpush1.msra.mxu0 %v1814
    %1816 = vmatprep.subr.mxu0 0.0
    %v1817 = vand.u32 %v1542, 4294901760
    %v1818 = vsub.f32 %v1542, %v1817
    %1819 = vmatpush1.msra.mxu0 %v1818
    %1820 = vmatprep.subr.mxu0 0.0
    %v1821 = vand.u32 %v1543, 4294901760
    %v1822 = vsub.f32 %v1543, %v1821
    %1823 = vmatpush1.msra.mxu0 %v1822
    %1824 = vmatprep.subr.mxu0 0.0
    %v1825 = vand.u32 %v1544, 4294901760
    %v1826 = vsub.f32 %v1544, %v1825
    %1827 = vmatpush1.msra.mxu0 %v1826
    %1828 = vmatprep.subr.mxu0 0.0
    %v1829 = vand.u32 %v1545, 4294901760
    %v1830 = vsub.f32 %v1545, %v1829
    %1831 = vmatpush1.msra.mxu0 %v1830
    %1832 = vmatprep.subr.mxu0 0.0
    %v1833 = vand.u32 %v1546, 4294901760
    %v1834 = vsub.f32 %v1546, %v1833
    %1835 = vmatpush1.msra.mxu0 %v1834
    %1836 = vmatprep.subr.mxu0 0.0
    %v1837 = vand.u32 %v1547, 4294901760
    %v1838 = vsub.f32 %v1547, %v1837
    %1839 = vmatpush1.msra.mxu0 %v1838
    %1840 = vmatprep.subr.mxu0 0.0
    %v1841 = vand.u32 %v1548, 4294901760
    %v1842 = vsub.f32 %v1548, %v1841
    %1843 = vmatpush1.msra.mxu0 %v1842
    %1844 = vmatprep.subr.mxu0 0.0
    %v1845 = vand.u32 %v1549, 4294901760
    %v1846 = vsub.f32 %v1549, %v1845
    %1847 = vmatpush1.msra.mxu0 %v1846
    %1848 = vmatprep.subr.mxu0 0.0
    %v1849 = vand.u32 %v1550, 4294901760
    %v1850 = vsub.f32 %v1550, %v1849
    %1851 = vmatpush1.msra.mxu0 %v1850
    %1852 = vmatprep.subr.mxu0 0.0
    %v1853 = vand.u32 %v1551, 4294901760
    %v1854 = vsub.f32 %v1551, %v1853
    %1855 = vmatpush1.msra.mxu0 %v1854
    %1856 = vmatprep.subr.mxu0 0.0
    %v1857 = vand.u32 %v1552, 4294901760
    %v1858 = vsub.f32 %v1552, %v1857
    %1859 = vmatpush1.msra.mxu0 %v1858
    %1860 = vmatprep.subr.mxu0 0.0
    %v1861 = vand.u32 %v1553, 4294901760
    %v1862 = vsub.f32 %v1553, %v1861
    %1863 = vmatpush1.msra.mxu0 %v1862
    %1864 = vmatprep.subr.mxu0 0.0
    %v1865 = vand.u32 %v1554, 4294901760
    %v1866 = vsub.f32 %v1554, %v1865
    %1867 = vmatpush1.msra.mxu0 %v1866
    %1868 = vmatprep.subr.mxu0 0.0
    %1869 = vmatpush1.msra.mxu0 0.0
    %1870 = vmatprep.subr.mxu0 0.0
    %1871 = vmatpush1.msra.mxu0 0.0
    %1872 = vmatprep.subr.mxu0 0.0
    %1873 = vmatpush1.msra.mxu0 0.0
    %1874 = vmatprep.subr.mxu0 0.0
    %1875 = vmatpush1.msra.mxu0 0.0
    %1876 = vmatprep.subr.mxu0 0.0
    %1877 = vmatpush1.msra.mxu0 0.0
    %1878 = vmatprep.subr.mxu0 0.0
    %1879 = vmatpush1.msra.mxu0 0.0
    %1880 = vmatprep.subr.mxu0 0.0
    %1881 = vmatpush1.msra.mxu0 0.0
    %1882 = vmatprep.subr.mxu0 0.0
    %1883 = vmatpush1.msra.mxu0 0.0
    %1884 = vmatprep.subr.mxu0 0.0
    %1885 = vmatpush1.msra.mxu0 0.0
    %1886 = vmatprep.subr.mxu0 0.0
    %1887 = vmatpush1.msra.mxu0 0.0
    %1888 = vmatprep.subr.mxu0 0.0
    %1889 = vmatpush1.msra.mxu0 0.0
    %1890 = vmatprep.subr.mxu0 0.0
    %1891 = vmatpush1.msra.mxu0 0.0
    %1892 = vmatprep.subr.mxu0 0.0
    %1893 = vmatpush1.msra.mxu0 0.0
    %1894 = vmatprep.subr.mxu0 0.0
    %1895 = vmatpush1.msra.mxu0 0.0
    %1896 = vmatprep.subr.mxu0 0.0
    %1897 = vmatpush1.msra.mxu0 0.0
    %1898 = vmatprep.subr.mxu0 0.0
    %1899 = vmatpush1.msra.mxu0 0.0
    %1900 = vmatprep.mubr.f32.mxu0 0.0
    %v1901 = vand.u32 %v1538, 4294901760
    %v1902 = vsub.f32 %v1538, %v1901
    %1903 = vmatmul.mubr.f32.gmra.mrb[0].mxu0 %v1902
    %v1904 = vpop.f32.mrb[0].mxu0
    %v1905 = vadd.f32 %v1801, %v1904
    %v1906 = vpop.f32.mrb[0].mxu0
    %1907 = vdwg.mxu0
    %1908 = vmatprep.subr.mxu0 0.0
    %v1909 = vand.u32 %v1539, 4294901760
    %1910 = vmatpush1.msra.mxu0 %v1909
    %1911 = vmatprep.subr.mxu0 0.0
    %v1912 = vand.u32 %v1540, 4294901760
    %1913 = vmatpush1.msra.mxu0 %v1912
    %1914 = vmatprep.subr.mxu0 0.0
    %v1915 = vand.u32 %v1541, 4294901760
    %1916 = vmatpush1.msra.mxu0 %v1915
    %1917 = vmatprep.subr.mxu0 0.0
    %v1918 = vand.u32 %v1542, 4294901760
    %1919 = vmatpush1.msra.mxu0 %v1918
    %1920 = vmatprep.subr.mxu0 0.0
    %v1921 = vand.u32 %v1543, 4294901760
    %1922 = vmatpush1.msra.mxu0 %v1921
    %1923 = vmatprep.subr.mxu0 0.0
    %v1924 = vand.u32 %v1544, 4294901760
    %1925 = vmatpush1.msra.mxu0 %v1924
    %1926 = vmatprep.subr.mxu0 0.0
    %v1927 = vand.u32 %v1545, 4294901760
    %1928 = vmatpush1.msra.mxu0 %v1927
    %1929 = vmatprep.subr.mxu0 0.0
    %v1930 = vand.u32 %v1546, 4294901760
    %1931 = vmatpush1.msra.mxu0 %v1930
    %1932 = vmatprep.subr.mxu0 0.0
    %v1933 = vand.u32 %v1547, 4294901760
    %1934 = vmatpush1.msra.mxu0 %v1933
    %1935 = vmatprep.subr.mxu0 0.0
    %v1936 = vand.u32 %v1548, 4294901760
    %1937 = vmatpush1.msra.mxu0 %v1936
    %1938 = vmatprep.subr.mxu0 0.0
    %v1939 = vand.u32 %v1549, 4294901760
    %1940 = vmatpush1.msra.mxu0 %v1939
    %1941 = vmatprep.subr.mxu0 0.0
    %v1942 = vand.u32 %v1550, 4294901760
    %1943 = vmatpush1.msra.mxu0 %v1942
    %1944 = vmatprep.subr.mxu0 0.0
    %v1945 = vand.u32 %v1551, 4294901760
    %1946 = vmatpush1.msra.mxu0 %v1945
    %1947 = vmatprep.subr.mxu0 0.0
    %v1948 = vand.u32 %v1552, 4294901760
    %1949 = vmatpush1.msra.mxu0 %v1948
    %1950 = vmatprep.subr.mxu0 0.0
    %v1951 = vand.u32 %v1553, 4294901760
    %1952 = vmatpush1.msra.mxu0 %v1951
    %1953 = vmatprep.subr.mxu0 0.0
    %v1954 = vand.u32 %v1554, 4294901760
    %1955 = vmatpush1.msra.mxu0 %v1954
    %1956 = vmatprep.subr.mxu0 0.0
    %1957 = vmatpush1.msra.mxu0 0.0
    %1958 = vmatprep.subr.mxu0 0.0
    %1959 = vmatpush1.msra.mxu0 0.0
    %1960 = vmatprep.subr.mxu0 0.0
    %1961 = vmatpush1.msra.mxu0 0.0
    %1962 = vmatprep.subr.mxu0 0.0
    %1963 = vmatpush1.msra.mxu0 0.0
    %1964 = vmatprep.subr.mxu0 0.0
    %1965 = vmatpush1.msra.mxu0 0.0
    %1966 = vmatprep.subr.mxu0 0.0
    %1967 = vmatpush1.msra.mxu0 0.0
    %1968 = vmatprep.subr.mxu0 0.0
    %1969 = vmatpush1.msra.mxu0 0.0
    %1970 = vmatprep.subr.mxu0 0.0
    %1971 = vmatpush1.msra.mxu0 0.0
    %1972 = vmatprep.subr.mxu0 0.0
    %1973 = vmatpush1.msra.mxu0 0.0
    %1974 = vmatprep.subr.mxu0 0.0
    %1975 = vmatpush1.msra.mxu0 0.0
    %1976 = vmatprep.subr.mxu0 0.0
    %1977 = vmatpush1.msra.mxu0 0.0
    %1978 = vmatprep.subr.mxu0 0.0
    %1979 = vmatpush1.msra.mxu0 0.0
    %1980 = vmatprep.subr.mxu0 0.0
    %1981 = vmatpush1.msra.mxu0 0.0
    %1982 = vmatprep.subr.mxu0 0.0
    %1983 = vmatpush1.msra.mxu0 0.0
    %1984 = vmatprep.subr.mxu0 0.0
    %1985 = vmatpush1.msra.mxu0 0.0
    %1986 = vmatprep.subr.mxu0 0.0
    %1987 = vmatpush1.msra.mxu0 0.0
    %1988 = vmatprep.mubr.f32.mxu0 0.0
    %v1989 = vand.u32 %v1538, 4294901760
    %v1990 = vsub.f32 %v1538, %v1989
    %v1991 = vand.u32 %v1990, 4294901760
    %1992 = vmatmul.mubr.f32.gmra.mrb[0].mxu0 %v1991
    %v1993 = vpop.f32.mrb[0].mxu0
    %v1994 = vadd.f32 %v1905, %v1993
    %v1995 = vpop.f32.mrb[0].mxu0
    %1996 = vdwg.mxu0
    %1997 = vmatprep.subr.mxu0 0.0
    %v1998 = vand.u32 %v1539, 4294901760
    %v1999 = vsub.f32 %v1539, %v1998
    %v2000 = vand.u32 %v1999, 4294901760
    %2001 = vmatpush1.msra.mxu0 %v2000
    %2002 = vmatprep.subr.mxu0 0.0
    %v2003 = vand.u32 %v1540, 4294901760
    %v2004 = vsub.f32 %v1540, %v2003
    %v2005 = vand.u32 %v2004, 4294901760
    %2006 = vmatpush1.msra.mxu0 %v2005
    %2007 = vmatprep.subr.mxu0 0.0
    %v2008 = vand.u32 %v1541, 4294901760
    %v2009 = vsub.f32 %v1541, %v2008
    %v2010 = vand.u32 %v2009, 4294901760
    %2011 = vmatpush1.msra.mxu0 %v2010
    %2012 = vmatprep.subr.mxu0 0.0
    %v2013 = vand.u32 %v1542, 4294901760
    %v2014 = vsub.f32 %v1542, %v2013
    %v2015 = vand.u32 %v2014, 4294901760
    %2016 = vmatpush1.msra.mxu0 %v2015
    %2017 = vmatprep.subr.mxu0 0.0
    %v2018 = vand.u32 %v1543, 4294901760
    %v2019 = vsub.f32 %v1543, %v2018
    %v2020 = vand.u32 %v2019, 4294901760
    %2021 = vmatpush1.msra.mxu0 %v2020
    %2022 = vmatprep.subr.mxu0 0.0
    %v2023 = vand.u32 %v1544, 4294901760
    %v2024 = vsub.f32 %v1544, %v2023
    %v2025 = vand.u32 %v2024, 4294901760
    %2026 = vmatpush1.msra.mxu0 %v2025
    %2027 = vmatprep.subr.mxu0 0.0
    %v2028 = vand.u32 %v1545, 4294901760
    %v2029 = vsub.f32 %v1545, %v2028
    %v2030 = vand.u32 %v2029, 4294901760
    %2031 = vmatpush1.msra.mxu0 %v2030
    %2032 = vmatprep.subr.mxu0 0.0
    %v2033 = vand.u32 %v1546, 4294901760
    %v2034 = vsub.f32 %v1546, %v2033
    %v2035 = vand.u32 %v2034, 4294901760
    %2036 = vmatpush1.msra.mxu0 %v2035
    %2037 = vmatprep.subr.mxu0 0.0
    %v2038 = vand.u32 %v1547, 4294901760
    %v2039 = vsub.f32 %v1547, %v2038
    %v2040 = vand.u32 %v2039, 4294901760
    %2041 = vmatpush1.msra.mxu0 %v2040
    %2042 = vmatprep.subr.mxu0 0.0
    %v2043 = vand.u32 %v1548, 4294901760
    %v2044 = vsub.f32 %v1548, %v2043
    %v2045 = vand.u32 %v2044, 4294901760
    %2046 = vmatpush1.msra.mxu0 %v2045
    %2047 = vmatprep.subr.mxu0 0.0
    %v2048 = vand.u32 %v1549, 4294901760
    %v2049 = vsub.f32 %v1549, %v2048
    %v2050 = vand.u32 %v2049, 4294901760
    %2051 = vmatpush1.msra.mxu0 %v2050
    %2052 = vmatprep.subr.mxu0 0.0
    %v2053 = vand.u32 %v1550, 4294901760
    %v2054 = vsub.f32 %v1550, %v2053
    %v2055 = vand.u32 %v2054, 4294901760
    %2056 = vmatpush1.msra.mxu0 %v2055
    %2057 = vmatprep.subr.mxu0 0.0
    %v2058 = vand.u32 %v1551, 4294901760
    %v2059 = vsub.f32 %v1551, %v2058
    %v2060 = vand.u32 %v2059, 4294901760
    %2061 = vmatpush1.msra.mxu0 %v2060
    %2062 = vmatprep.subr.mxu0 0.0
    %v2063 = vand.u32 %v1552, 4294901760
    %v2064 = vsub.f32 %v1552, %v2063
    %v2065 = vand.u32 %v2064, 4294901760
    %2066 = vmatpush1.msra.mxu0 %v2065
    %2067 = vmatprep.subr.mxu0 0.0
    %v2068 = vand.u32 %v1553, 4294901760
    %v2069 = vsub.f32 %v1553, %v2068
    %v2070 = vand.u32 %v2069, 4294901760
    %2071 = vmatpush1.msra.mxu0 %v2070
    %2072 = vmatprep.subr.mxu0 0.0
    %v2073 = vand.u32 %v1554, 4294901760
    %v2074 = vsub.f32 %v1554, %v2073
    %v2075 = vand.u32 %v2074, 4294901760
    %2076 = vmatpush1.msra.mxu0 %v2075
    %2077 = vmatprep.subr.mxu0 0.0
    %2078 = vmatpush1.msra.mxu0 0.0
    %2079 = vmatprep.subr.mxu0 0.0
    %2080 = vmatpush1.msra.mxu0 0.0
    %2081 = vmatprep.subr.mxu0 0.0
    %2082 = vmatpush1.msra.mxu0 0.0
    %2083 = vmatprep.subr.mxu0 0.0
    %2084 = vmatpush1.msra.mxu0 0.0
    %2085 = vmatprep.subr.mxu0 0.0
    %2086 = vmatpush1.msra.mxu0 0.0
    %2087 = vmatprep.subr.mxu0 0.0
    %2088 = vmatpush1.msra.mxu0 0.0
    %2089 = vmatprep.subr.mxu0 0.0
    %2090 = vmatpush1.msra.mxu0 0.0
    %2091 = vmatprep.subr.mxu0 0.0
    %2092 = vmatpush1.msra.mxu0 0.0
    %2093 = vmatprep.subr.mxu0 0.0
    %2094 = vmatpush1.msra.mxu0 0.0
    %2095 = vmatprep.subr.mxu0 0.0
    %2096 = vmatpush1.msra.mxu0 0.0
    %2097 = vmatprep.subr.mxu0 0.0
    %2098 = vmatpush1.msra.mxu0 0.0
    %2099 = vmatprep.subr.mxu0 0.0
    %2100 = vmatpush1.msra.mxu0 0.0
    %2101 = vmatprep.subr.mxu0 0.0
    %2102 = vmatpush1.msra.mxu0 0.0
    %2103 = vmatprep.subr.mxu0 0.0
    %2104 = vmatpush1.msra.mxu0 0.0
    %2105 = vmatprep.subr.mxu0 0.0
    %2106 = vmatpush1.msra.mxu0 0.0
    %2107 = vmatprep.subr.mxu0 0.0
    %2108 = vmatpush1.msra.mxu0 0.0
    %2109 = vmatprep.mubr.f32.mxu0 0.0
    %v2110 = vand.u32 %v1538, 4294901760
    %2111 = vmatmul.mubr.f32.gmra.mrb[0].mxu0 %v2110
    %v2112 = vpop.f32.mrb[0].mxu0
    %v2113 = vadd.f32 %v1994, %v2112
    %v2114 = vpop.f32.mrb[0].mxu0
    %2115 = vdwg.mxu0
    %2116 = vmatprep.subr.mxu0 0.0
    %v2117 = vand.u32 %v1539, 4294901760
    %2118 = vmatpush1.msra.mxu0 %v2117
    %2119 = vmatprep.subr.mxu0 0.0
    %v2120 = vand.u32 %v1540, 4294901760
    %2121 = vmatpush1.msra.mxu0 %v2120
    %2122 = vmatprep.subr.mxu0 0.0
    %v2123 = vand.u32 %v1541, 4294901760
    %2124 = vmatpush1.msra.mxu0 %v2123
    %2125 = vmatprep.subr.mxu0 0.0
    %v2126 = vand.u32 %v1542, 4294901760
    %2127 = vmatpush1.msra.mxu0 %v2126
    %2128 = vmatprep.subr.mxu0 0.0
    %v2129 = vand.u32 %v1543, 4294901760
    %2130 = vmatpush1.msra.mxu0 %v2129
    %2131 = vmatprep.subr.mxu0 0.0
    %v2132 = vand.u32 %v1544, 4294901760
    %2133 = vmatpush1.msra.mxu0 %v2132
    %2134 = vmatprep.subr.mxu0 0.0
    %v2135 = vand.u32 %v1545, 4294901760
    %2136 = vmatpush1.msra.mxu0 %v2135
    %2137 = vmatprep.subr.mxu0 0.0
    %v2138 = vand.u32 %v1546, 4294901760
    %2139 = vmatpush1.msra.mxu0 %v2138
    %2140 = vmatprep.subr.mxu0 0.0
    %v2141 = vand.u32 %v1547, 4294901760
    %2142 = vmatpush1.msra.mxu0 %v2141
    %2143 = vmatprep.subr.mxu0 0.0
    %v2144 = vand.u32 %v1548, 4294901760
    %2145 = vmatpush1.msra.mxu0 %v2144
    %2146 = vmatprep.subr.mxu0 0.0
    %v2147 = vand.u32 %v1549, 4294901760
    %2148 = vmatpush1.msra.mxu0 %v2147
    %2149 = vmatprep.subr.mxu0 0.0
    %v2150 = vand.u32 %v1550, 4294901760
    %2151 = vmatpush1.msra.mxu0 %v2150
    %2152 = vmatprep.subr.mxu0 0.0
    %v2153 = vand.u32 %v1551, 4294901760
    %2154 = vmatpush1.msra.mxu0 %v2153
    %2155 = vmatprep.subr.mxu0 0.0
    %v2156 = vand.u32 %v1552, 4294901760
    %2157 = vmatpush1.msra.mxu0 %v2156
    %2158 = vmatprep.subr.mxu0 0.0
    %v2159 = vand.u32 %v1553, 4294901760
    %2160 = vmatpush1.msra.mxu0 %v2159
    %2161 = vmatprep.subr.mxu0 0.0
    %v2162 = vand.u32 %v1554, 4294901760
    %2163 = vmatpush1.msra.mxu0 %v2162
    %2164 = vmatprep.subr.mxu0 0.0
    %2165 = vmatpush1.msra.mxu0 0.0
    %2166 = vmatprep.subr.mxu0 0.0
    %2167 = vmatpush1.msra.mxu0 0.0
    %2168 = vmatprep.subr.mxu0 0.0
    %2169 = vmatpush1.msra.mxu0 0.0
    %2170 = vmatprep.subr.mxu0 0.0
    %2171 = vmatpush1.msra.mxu0 0.0
    %2172 = vmatprep.subr.mxu0 0.0
    %2173 = vmatpush1.msra.mxu0 0.0
    %2174 = vmatprep.subr.mxu0 0.0
    %2175 = vmatpush1.msra.mxu0 0.0
    %2176 = vmatprep.subr.mxu0 0.0
    %2177 = vmatpush1.msra.mxu0 0.0
    %2178 = vmatprep.subr.mxu0 0.0
    %2179 = vmatpush1.msra.mxu0 0.0
    %2180 = vmatprep.subr.mxu0 0.0
    %2181 = vmatpush1.msra.mxu0 0.0
    %2182 = vmatprep.subr.mxu0 0.0
    %2183 = vmatpush1.msra.mxu0 0.0
    %2184 = vmatprep.subr.mxu0 0.0
    %2185 = vmatpush1.msra.mxu0 0.0
    %2186 = vmatprep.subr.mxu0 0.0
    %2187 = vmatpush1.msra.mxu0 0.0
    %2188 = vmatprep.subr.mxu0 0.0
    %2189 = vmatpush1.msra.mxu0 0.0
    %2190 = vmatprep.subr.mxu0 0.0
    %2191 = vmatpush1.msra.mxu0 0.0
    %2192 = vmatprep.subr.mxu0 0.0
    %2193 = vmatpush1.msra.mxu0 0.0
    %2194 = vmatprep.subr.mxu0 0.0
    %2195 = vmatpush1.msra.mxu0 0.0
    %2196 = vmatprep.mubr.f32.mxu0 0.0
    %v2197 = vand.u32 %v1538, 4294901760
    %2198 = vmatmul.mubr.f32.gmra.mrb[0].mxu0 %v2197
    %v2199 = vpop.f32.mrb[0].mxu0
    %v2200 = vadd.f32 %v2113, %v2199
    %v2201 = vpop.f32.mrb[0].mxu0
    %2202 = vdwg.mxu0
    %v2203 = vmax.f32 %v2200, 0.0
    %v2204 = vld [vmem:[%s9] sm:$0xff]
    %v2205 = vld [vmem:[%s9 + $0x8] sm:$0xff]
    %v2206 = vld [vmem:[%s9 + $0x10] sm:$0xff]
    %v2207 = vld [vmem:[%s9 + $0x18] sm:$0xff]
    %v2208 = vld [vmem:[%s9 + $0x20] sm:$0xff]
    %v2209 = vld [vmem:[%s9 + $0x28] sm:$0xff]
    %v2210 = vld [vmem:[%s9 + $0x30] sm:$0xff]
    %v2211 = vld [vmem:[%s9 + $0x38] sm:$0xff]
    %v2212 = vld [vmem:[%s9 + $0x40] sm:$0xff]
    %v2213 = vld [vmem:[%s9 + $0x48] sm:$0xff]
    %v2214 = vld [vmem:[%s9 + $0x50] sm:$0xff]
    %v2215 = vld [vmem:[%s9 + $0x58] sm:$0xff]
    %v2216 = vld [vmem:[%s9 + $0x60] sm:$0xff]
    %v2217 = vld [vmem:[%s9 + $0x68] sm:$0xff]
    %v2218 = vld [vmem:[%s9 + $0x70] sm:$0xff]
    %v2219 = vld [vmem:[%s9 + $0x78] sm:$0xff]
    %v2220 = vld [vmem:[%s10] sm:$0x1]
    %v2222 = vlaneseq
    %v2223 = vshrl.u32 %v2222, 7
    %v2224 = vsub.s32 0, %v2223
    %v2225 = vrot.slane %v2220, %v2224
    %2227 = vmatprep.subr.mxu0 0.0
    %v2228 = vand.u32 %v2204, 4294901760
    %2229 = vmatpush1.msra.mxu0 %v2228
    %2230 = vmatprep.subr.mxu0 0.0
    %v2231 = vand.u32 %v2205, 4294901760
    %2232 = vmatpush1.msra.mxu0 %v2231
    %2233 = vmatprep.subr.mxu0 0.0
    %v2234 = vand.u32 %v2206, 4294901760
    %2235 = vmatpush1.msra.mxu0 %v2234
    %2236 = vmatprep.subr.mxu0 0.0
    %v2237 = vand.u32 %v2207, 4294901760
    %2238 = vmatpush1.msra.mxu0 %v2237
    %2239 = vmatprep.subr.mxu0 0.0
    %v2240 = vand.u32 %v2208, 4294901760
    %2241 = vmatpush1.msra.mxu0 %v2240
    %2242 = vmatprep.subr.mxu0 0.0
    %v2243 = vand.u32 %v2209, 4294901760
    %2244 = vmatpush1.msra.mxu0 %v2243
    %2245 = vmatprep.subr.mxu0 0.0
    %v2246 = vand.u32 %v2210, 4294901760
    %2247 = vmatpush1.msra.mxu0 %v2246
    %2248 = vmatprep.subr.mxu0 0.0
    %v2249 = vand.u32 %v2211, 4294901760
    %2250 = vmatpush1.msra.mxu0 %v2249
    %2251 = vmatprep.subr.mxu0 0.0
    %v2252 = vand.u32 %v2212, 4294901760
    %2253 = vmatpush1.msra.mxu0 %v2252
    %2254 = vmatprep.subr.mxu0 0.0
    %v2255 = vand.u32 %v2213, 4294901760
    %2256 = vmatpush1.msra.mxu0 %v2255
    %2257 = vmatprep.subr.mxu0 0.0
    %v2258 = vand.u32 %v2214, 4294901760
    %2259 = vmatpush1.msra.mxu0 %v2258
    %2260 = vmatprep.subr.mxu0 0.0
    %v2261 = vand.u32 %v2215, 4294901760
    %2262 = vmatpush1.msra.mxu0 %v2261
    %2263 = vmatprep.subr.mxu0 0.0
    %v2264 = vand.u32 %v2216, 4294901760
    %2265 = vmatpush1.msra.mxu0 %v2264
    %2266 = vmatprep.subr.mxu0 0.0
    %v2267 = vand.u32 %v2217, 4294901760
    %2268 = vmatpush1.msra.mxu0 %v2267
    %2269 = vmatprep.subr.mxu0 0.0
    %v2270 = vand.u32 %v2218, 4294901760
    %2271 = vmatpush1.msra.mxu0 %v2270
    %2272 = vmatprep.subr.mxu0 0.0
    %v2273 = vand.u32 %v2219, 4294901760
    %2274 = vmatpush1.msra.mxu0 %v2273
    %2275 = vmatprep.subr.mxu0 0.0
    %2276 = vmatpush1.msra.mxu0 0.0
    %2277 = vmatprep.subr.mxu0 0.0
    %2278 = vmatpush1.msra.mxu0 0.0
    %2279 = vmatprep.subr.mxu0 0.0
    %2280 = vmatpush1.msra.mxu0 0.0
    %2281 = vmatprep.subr.mxu0 0.0
    %2282 = vmatpush1.msra.mxu0 0.0
    %2283 = vmatprep.subr.mxu0 0.0
    %2284 = vmatpush1.msra.mxu0 0.0
    %2285 = vmatprep.subr.mxu0 0.0
    %2286 = vmatpush1.msra.mxu0 0.0
    %2287 = vmatprep.subr.mxu0 0.0
    %2288 = vmatpush1.msra.mxu0 0.0
    %2289 = vmatprep.subr.mxu0 0.0
    %2290 = vmatpush1.msra.mxu0 0.0
    %2291 = vmatprep.subr.mxu0 0.0
    %2292 = vmatpush1.msra.mxu0 0.0
    %2293 = vmatprep.subr.mxu0 0.0
    %2294 = vmatpush1.msra.mxu0 0.0
    %2295 = vmatprep.subr.mxu0 0.0
    %2296 = vmatpush1.msra.mxu0 0.0
    %2297 = vmatprep.subr.mxu0 0.0
    %2298 = vmatpush1.msra.mxu0 0.0
    %2299 = vmatprep.subr.mxu0 0.0
    %2300 = vmatpush1.msra.mxu0 0.0
    %2301 = vmatprep.subr.mxu0 0.0
    %2302 = vmatpush1.msra.mxu0 0.0
    %2303 = vmatprep.subr.mxu0 0.0
    %2304 = vmatpush1.msra.mxu0 0.0
    %2305 = vmatprep.subr.mxu0 0.0
    %2306 = vmatpush1.msra.mxu0 0.0
    %2307 = vmatprep.mubr.f32.mxu0 0.0
    %v2308 = vand.u32 %v2203, 4294901760
    %v2309 = vsub.f32 %v2203, %v2308
    %v2310 = vand.u32 %v2309, 4294901760
    %v2311 = vsub.f32 %v2309, %v2310
    %v2312 = vand.u32 %v2311, 4294901760
    %2313 = vmatmul.mubr.f32.gmra.mrb[0].mxu0 %v2312
    %v2314 = vpop.f32.mrb[0].mxu0
    %v2315 = vadd.f32 %v2225, %v2314
    %v2316 = vpop.f32.mrb[0].mxu0
    %2317 = vdwg.mxu0
    %2318 = vmatprep.subr.mxu0 0.0
    %v2319 = vand.u32 %v2204, 4294901760
    %v2320 = vsub.f32 %v2204, %v2319
    %v2321 = vand.u32 %v2320, 4294901760
    %v2322 = vsub.f32 %v2320, %v2321
    %v2323 = vand.u32 %v2322, 4294901760
    %2324 = vmatpush1.msra.mxu0 %v2323
    %2325 = vmatprep.subr.mxu0 0.0
    %v2326 = vand.u32 %v2205, 4294901760
    %v2327 = vsub.f32 %v2205, %v2326
    %v2328 = vand.u32 %v2327, 4294901760
    %v2329 = vsub.f32 %v2327, %v2328
    %v2330 = vand.u32 %v2329, 4294901760
    %2331 = vmatpush1.msra.mxu0 %v2330
    %2332 = vmatprep.subr.mxu0 0.0
    %v2333 = vand.u32 %v2206, 4294901760
    %v2334 = vsub.f32 %v2206, %v2333
    %v2335 = vand.u32 %v2334, 4294901760
    %v2336 = vsub.f32 %v2334, %v2335
    %v2337 = vand.u32 %v2336, 4294901760
    %2338 = vmatpush1.msra.mxu0 %v2337
    %2339 = vmatprep.subr.mxu0 0.0
    %v2340 = vand.u32 %v2207, 4294901760
    %v2341 = vsub.f32 %v2207, %v2340
    %v2342 = vand.u32 %v2341, 4294901760
    %v2343 = vsub.f32 %v2341, %v2342
    %v2344 = vand.u32 %v2343, 4294901760
    %2345 = vmatpush1.msra.mxu0 %v2344
    %2346 = vmatprep.subr.mxu0 0.0
    %v2347 = vand.u32 %v2208, 4294901760
    %v2348 = vsub.f32 %v2208, %v2347
    %v2349 = vand.u32 %v2348, 4294901760
    %v2350 = vsub.f32 %v2348, %v2349
    %v2351 = vand.u32 %v2350, 4294901760
    %2352 = vmatpush1.msra.mxu0 %v2351
    %2353 = vmatprep.subr.mxu0 0.0
    %v2354 = vand.u32 %v2209, 4294901760
    %v2355 = vsub.f32 %v2209, %v2354
    %v2356 = vand.u32 %v2355, 4294901760
    %v2357 = vsub.f32 %v2355, %v2356
    %v2358 = vand.u32 %v2357, 4294901760
    %2359 = vmatpush1.msra.mxu0 %v2358
    %2360 = vmatprep.subr.mxu0 0.0
    %v2361 = vand.u32 %v2210, 4294901760
    %v2362 = vsub.f32 %v2210, %v2361
    %v2363 = vand.u32 %v2362, 4294901760
    %v2364 = vsub.f32 %v2362, %v2363
    %v2365 = vand.u32 %v2364, 4294901760
    %2366 = vmatpush1.msra.mxu0 %v2365
    %2367 = vmatprep.subr.mxu0 0.0
    %v2368 = vand.u32 %v2211, 4294901760
    %v2369 = vsub.f32 %v2211, %v2368
    %v2370 = vand.u32 %v2369, 4294901760
    %v2371 = vsub.f32 %v2369, %v2370
    %v2372 = vand.u32 %v2371, 4294901760
    %2373 = vmatpush1.msra.mxu0 %v2372
    %2374 = vmatprep.subr.mxu0 0.0
    %v2375 = vand.u32 %v2212, 4294901760
    %v2376 = vsub.f32 %v2212, %v2375
    %v2377 = vand.u32 %v2376, 4294901760
    %v2378 = vsub.f32 %v2376, %v2377
    %v2379 = vand.u32 %v2378, 4294901760
    %2380 = vmatpush1.msra.mxu0 %v2379
    %2381 = vmatprep.subr.mxu0 0.0
    %v2382 = vand.u32 %v2213, 4294901760
    %v2383 = vsub.f32 %v2213, %v2382
    %v2384 = vand.u32 %v2383, 4294901760
    %v2385 = vsub.f32 %v2383, %v2384
    %v2386 = vand.u32 %v2385, 4294901760
    %2387 = vmatpush1.msra.mxu0 %v2386
    %2388 = vmatprep.subr.mxu0 0.0
    %v2389 = vand.u32 %v2214, 4294901760
    %v2390 = vsub.f32 %v2214, %v2389
    %v2391 = vand.u32 %v2390, 4294901760
    %v2392 = vsub.f32 %v2390, %v2391
    %v2393 = vand.u32 %v2392, 4294901760
    %2394 = vmatpush1.msra.mxu0 %v2393
    %2395 = vmatprep.subr.mxu0 0.0
    %v2396 = vand.u32 %v2215, 4294901760
    %v2397 = vsub.f32 %v2215, %v2396
    %v2398 = vand.u32 %v2397, 4294901760
    %v2399 = vsub.f32 %v2397, %v2398
    %v2400 = vand.u32 %v2399, 4294901760
    %2401 = vmatpush1.msra.mxu0 %v2400
    %2402 = vmatprep.subr.mxu0 0.0
    %v2403 = vand.u32 %v2216, 4294901760
    %v2404 = vsub.f32 %v2216, %v2403
    %v2405 = vand.u32 %v2404, 4294901760
    %v2406 = vsub.f32 %v2404, %v2405
    %v2407 = vand.u32 %v2406, 4294901760
    %2408 = vmatpush1.msra.mxu0 %v2407
    %2409 = vmatprep.subr.mxu0 0.0
    %v2410 = vand.u32 %v2217, 4294901760
    %v2411 = vsub.f32 %v2217, %v2410
    %v2412 = vand.u32 %v2411, 4294901760
    %v2413 = vsub.f32 %v2411, %v2412
    %v2414 = vand.u32 %v2413, 4294901760
    %2415 = vmatpush1.msra.mxu0 %v2414
    %2416 = vmatprep.subr.mxu0 0.0
    %v2417 = vand.u32 %v2218, 4294901760
    %v2418 = vsub.f32 %v2218, %v2417
    %v2419 = vand.u32 %v2418, 4294901760
    %v2420 = vsub.f32 %v2418, %v2419
    %v2421 = vand.u32 %v2420, 4294901760
    %2422 = vmatpush1.msra.mxu0 %v2421
    %2423 = vmatprep.subr.mxu0 0.0
    %v2424 = vand.u32 %v2219, 4294901760
    %v2425 = vsub.f32 %v2219, %v2424
    %v2426 = vand.u32 %v2425, 4294901760
    %v2427 = vsub.f32 %v2425, %v2426
    %v2428 = vand.u32 %v2427, 4294901760
    %2429 = vmatpush1.msra.mxu0 %v2428
    %2430 = vmatprep.subr.mxu0 0.0
    %2431 = vmatpush1.msra.mxu0 0.0
    %2432 = vmatprep.subr.mxu0 0.0
    %2433 = vmatpush1.msra.mxu0 0.0
    %2434 = vmatprep.subr.mxu0 0.0
    %2435 = vmatpush1.msra.mxu0 0.0
    %2436 = vmatprep.subr.mxu0 0.0
    %2437 = vmatpush1.msra.mxu0 0.0
    %2438 = vmatprep.subr.mxu0 0.0
    %2439 = vmatpush1.msra.mxu0 0.0
    %2440 = vmatprep.subr.mxu0 0.0
    %2441 = vmatpush1.msra.mxu0 0.0
    %2442 = vmatprep.subr.mxu0 0.0
    %2443 = vmatpush1.msra.mxu0 0.0
    %2444 = vmatprep.subr.mxu0 0.0
    %2445 = vmatpush1.msra.mxu0 0.0
    %2446 = vmatprep.subr.mxu0 0.0
    %2447 = vmatpush1.msra.mxu0 0.0
    %2448 = vmatprep.subr.mxu0 0.0
    %2449 = vmatpush1.msra.mxu0 0.0
    %2450 = vmatprep.subr.mxu0 0.0
    %2451 = vmatpush1.msra.mxu0 0.0
    %2452 = vmatprep.subr.mxu0 0.0
    %2453 = vmatpush1.msra.mxu0 0.0
    %2454 = vmatprep.subr.mxu0 0.0
    %2455 = vmatpush1.msra.mxu0 0.0
    %2456 = vmatprep.subr.mxu0 0.0
    %2457 = vmatpush1.msra.mxu0 0.0
    %2458 = vmatprep.subr.mxu0 0.0
    %2459 = vmatpush1.msra.mxu0 0.0
    %2460 = vmatprep.subr.mxu0 0.0
    %2461 = vmatpush1.msra.mxu0 0.0
    %2462 = vmatprep.mubr.f32.mxu0 0.0
    %v2463 = vand.u32 %v2203, 4294901760
    %2464 = vmatmul.mubr.f32.gmra.mrb[0].mxu0 %v2463
    %v2465 = vpop.f32.mrb[0].mxu0
    %v2466 = vadd.f32 %v2315, %v2465
    %v2467 = vpop.f32.mrb[0].mxu0
    %2468 = vdwg.mxu0
    %2469 = vmatprep.subr.mxu0 0.0
    %v2470 = vand.u32 %v2204, 4294901760
    %v2471 = vsub.f32 %v2204, %v2470
    %2472 = vmatpush1.msra.mxu0 %v2471
    %2473 = vmatprep.subr.mxu0 0.0
    %v2474 = vand.u32 %v2205, 4294901760
    %v2475 = vsub.f32 %v2205, %v2474
    %2476 = vmatpush1.msra.mxu0 %v2475
    %2477 = vmatprep.subr.mxu0 0.0
    %v2478 = vand.u32 %v2206, 4294901760
    %v2479 = vsub.f32 %v2206, %v2478
    %2480 = vmatpush1.msra.mxu0 %v2479
    %2481 = vmatprep.subr.mxu0 0.0
    %v2482 = vand.u32 %v2207, 4294901760
    %v2483 = vsub.f32 %v2207, %v2482
    %2484 = vmatpush1.msra.mxu0 %v2483
    %2485 = vmatprep.subr.mxu0 0.0
    %v2486 = vand.u32 %v2208, 4294901760
    %v2487 = vsub.f32 %v2208, %v2486
    %2488 = vmatpush1.msra.mxu0 %v2487
    %2489 = vmatprep.subr.mxu0 0.0
    %v2490 = vand.u32 %v2209, 4294901760
    %v2491 = vsub.f32 %v2209, %v2490
    %2492 = vmatpush1.msra.mxu0 %v2491
    %2493 = vmatprep.subr.mxu0 0.0
    %v2494 = vand.u32 %v2210, 4294901760
    %v2495 = vsub.f32 %v2210, %v2494
    %2496 = vmatpush1.msra.mxu0 %v2495
    %2497 = vmatprep.subr.mxu0 0.0
    %v2498 = vand.u32 %v2211, 4294901760
    %v2499 = vsub.f32 %v2211, %v2498
    %2500 = vmatpush1.msra.mxu0 %v2499
    %2501 = vmatprep.subr.mxu0 0.0
    %v2502 = vand.u32 %v2212, 4294901760
    %v2503 = vsub.f32 %v2212, %v2502
    %2504 = vmatpush1.msra.mxu0 %v2503
    %2505 = vmatprep.subr.mxu0 0.0
    %v2506 = vand.u32 %v2213, 4294901760
    %v2507 = vsub.f32 %v2213, %v2506
    %2508 = vmatpush1.msra.mxu0 %v2507
    %2509 = vmatprep.subr.mxu0 0.0
    %v2510 = vand.u32 %v2214, 4294901760
    %v2511 = vsub.f32 %v2214, %v2510
    %2512 = vmatpush1.msra.mxu0 %v2511
    %2513 = vmatprep.subr.mxu0 0.0
    %v2514 = vand.u32 %v2215, 4294901760
    %v2515 = vsub.f32 %v2215, %v2514
    %2516 = vmatpush1.msra.mxu0 %v2515
    %2517 = vmatprep.subr.mxu0 0.0
    %v2518 = vand.u32 %v2216, 4294901760
    %v2519 = vsub.f32 %v2216, %v2518
    %2520 = vmatpush1.msra.mxu0 %v2519
    %2521 = vmatprep.subr.mxu0 0.0
    %v2522 = vand.u32 %v2217, 4294901760
    %v2523 = vsub.f32 %v2217, %v2522
    %2524 = vmatpush1.msra.mxu0 %v2523
    %2525 = vmatprep.subr.mxu0 0.0
    %v2526 = vand.u32 %v2218, 4294901760
    %v2527 = vsub.f32 %v2218, %v2526
    %2528 = vmatpush1.msra.mxu0 %v2527
    %2529 = vmatprep.subr.mxu0 0.0
    %v2530 = vand.u32 %v2219, 4294901760
    %v2531 = vsub.f32 %v2219, %v2530
    %2532 = vmatpush1.msra.mxu0 %v2531
    %2533 = vmatprep.subr.mxu0 0.0
    %2534 = vmatpush1.msra.mxu0 0.0
    %2535 = vmatprep.subr.mxu0 0.0
    %2536 = vmatpush1.msra.mxu0 0.0
    %2537 = vmatprep.subr.mxu0 0.0
    %2538 = vmatpush1.msra.mxu0 0.0
    %2539 = vmatprep.subr.mxu0 0.0
    %2540 = vmatpush1.msra.mxu0 0.0
    %2541 = vmatprep.subr.mxu0 0.0
    %2542 = vmatpush1.msra.mxu0 0.0
    %2543 = vmatprep.subr.mxu0 0.0
    %2544 = vmatpush1.msra.mxu0 0.0
    %2545 = vmatprep.subr.mxu0 0.0
    %2546 = vmatpush1.msra.mxu0 0.0
    %2547 = vmatprep.subr.mxu0 0.0
    %2548 = vmatpush1.msra.mxu0 0.0
    %2549 = vmatprep.subr.mxu0 0.0
    %2550 = vmatpush1.msra.mxu0 0.0
    %2551 = vmatprep.subr.mxu0 0.0
    %2552 = vmatpush1.msra.mxu0 0.0
    %2553 = vmatprep.subr.mxu0 0.0
    %2554 = vmatpush1.msra.mxu0 0.0
    %2555 = vmatprep.subr.mxu0 0.0
    %2556 = vmatpush1.msra.mxu0 0.0
    %2557 = vmatprep.subr.mxu0 0.0
    %2558 = vmatpush1.msra.mxu0 0.0
    %2559 = vmatprep.subr.mxu0 0.0
    %2560 = vmatpush1.msra.mxu0 0.0
    %2561 = vmatprep.subr.mxu0 0.0
    %2562 = vmatpush1.msra.mxu0 0.0
    %2563 = vmatprep.subr.mxu0 0.0
    %2564 = vmatpush1.msra.mxu0 0.0
    %2565 = vmatprep.mubr.f32.mxu0 0.0
    %v2566 = vand.u32 %v2203, 4294901760
    %v2567 = vsub.f32 %v2203, %v2566
    %2568 = vmatmul.mubr.f32.gmra.mrb[0].mxu0 %v2567
    %v2569 = vpop.f32.mrb[0].mxu0
    %v2570 = vadd.f32 %v2466, %v2569
    %v2571 = vpop.f32.mrb[0].mxu0
    %2572 = vdwg.mxu0
    %2573 = vmatprep.subr.mxu0 0.0
    %v2574 = vand.u32 %v2204, 4294901760
    %2575 = vmatpush1.msra.mxu0 %v2574
    %2576 = vmatprep.subr.mxu0 0.0
    %v2577 = vand.u32 %v2205, 4294901760
    %2578 = vmatpush1.msra.mxu0 %v2577
    %2579 = vmatprep.subr.mxu0 0.0
    %v2580 = vand.u32 %v2206, 4294901760
    %2581 = vmatpush1.msra.mxu0 %v2580
    %2582 = vmatprep.subr.mxu0 0.0
    %v2583 = vand.u32 %v2207, 4294901760
    %2584 = vmatpush1.msra.mxu0 %v2583
    %2585 = vmatprep.subr.mxu0 0.0
    %v2586 = vand.u32 %v2208, 4294901760
    %2587 = vmatpush1.msra.mxu0 %v2586
    %2588 = vmatprep.subr.mxu0 0.0
    %v2589 = vand.u32 %v2209, 4294901760
    %2590 = vmatpush1.msra.mxu0 %v2589
    %2591 = vmatprep.subr.mxu0 0.0
    %v2592 = vand.u32 %v2210, 4294901760
    %2593 = vmatpush1.msra.mxu0 %v2592
    %2594 = vmatprep.subr.mxu0 0.0
    %v2595 = vand.u32 %v2211, 4294901760
    %2596 = vmatpush1.msra.mxu0 %v2595
    %2597 = vmatprep.subr.mxu0 0.0
    %v2598 = vand.u32 %v2212, 4294901760
    %2599 = vmatpush1.msra.mxu0 %v2598
    %2600 = vmatprep.subr.mxu0 0.0
    %v2601 = vand.u32 %v2213, 4294901760
    %2602 = vmatpush1.msra.mxu0 %v2601
    %2603 = vmatprep.subr.mxu0 0.0
    %v2604 = vand.u32 %v2214, 4294901760
    %2605 = vmatpush1.msra.mxu0 %v2604
    %2606 = vmatprep.subr.mxu0 0.0
    %v2607 = vand.u32 %v2215, 4294901760
    %2608 = vmatpush1.msra.mxu0 %v2607
    %2609 = vmatprep.subr.mxu0 0.0
    %v2610 = vand.u32 %v2216, 4294901760
    %2611 = vmatpush1.msra.mxu0 %v2610
    %2612 = vmatprep.subr.mxu0 0.0
    %v2613 = vand.u32 %v2217, 4294901760
    %2614 = vmatpush1.msra.mxu0 %v2613
    %2615 = vmatprep.subr.mxu0 0.0
    %v2616 = vand.u32 %v2218, 4294901760
    %2617 = vmatpush1.msra.mxu0 %v2616
    %2618 = vmatprep.subr.mxu0 0.0
    %v2619 = vand.u32 %v2219, 4294901760
    %2620 = vmatpush1.msra.mxu0 %v2619
    %2621 = vmatprep.subr.mxu0 0.0
    %2622 = vmatpush1.msra.mxu0 0.0
    %2623 = vmatprep.subr.mxu0 0.0
    %2624 = vmatpush1.msra.mxu0 0.0
    %2625 = vmatprep.subr.mxu0 0.0
    %2626 = vmatpush1.msra.mxu0 0.0
    %2627 = vmatprep.subr.mxu0 0.0
    %2628 = vmatpush1.msra.mxu0 0.0
    %2629 = vmatprep.subr.mxu0 0.0
    %2630 = vmatpush1.msra.mxu0 0.0
    %2631 = vmatprep.subr.mxu0 0.0
    %2632 = vmatpush1.msra.mxu0 0.0
    %2633 = vmatprep.subr.mxu0 0.0
    %2634 = vmatpush1.msra.mxu0 0.0
    %2635 = vmatprep.subr.mxu0 0.0
    %2636 = vmatpush1.msra.mxu0 0.0
    %2637 = vmatprep.subr.mxu0 0.0
    %2638 = vmatpush1.msra.mxu0 0.0
    %2639 = vmatprep.subr.mxu0 0.0
    %2640 = vmatpush1.msra.mxu0 0.0
    %2641 = vmatprep.subr.mxu0 0.0
    %2642 = vmatpush1.msra.mxu0 0.0
    %2643 = vmatprep.subr.mxu0 0.0
    %2644 = vmatpush1.msra.mxu0 0.0
    %2645 = vmatprep.subr.mxu0 0.0
    %2646 = vmatpush1.msra.mxu0 0.0
    %2647 = vmatprep.subr.mxu0 0.0
    %2648 = vmatpush1.msra.mxu0 0.0
    %2649 = vmatprep.subr.mxu0 0.0
    %2650 = vmatpush1.msra.mxu0 0.0
    %2651 = vmatprep.subr.mxu0 0.0
    %2652 = vmatpush1.msra.mxu0 0.0
    %2653 = vmatprep.mubr.f32.mxu0 0.0
    %v2654 = vand.u32 %v2203, 4294901760
    %v2655 = vsub.f32 %v2203, %v2654
    %v2656 = vand.u32 %v2655, 4294901760
    %2657 = vmatmul.mubr.f32.gmra.mrb[0].mxu0 %v2656
    %v2658 = vpop.f32.mrb[0].mxu0
    %v2659 = vadd.f32 %v2570, %v2658
    %v2660 = vpop.f32.mrb[0].mxu0
    %2661 = vdwg.mxu0
    %2662 = vmatprep.subr.mxu0 0.0
    %v2663 = vand.u32 %v2204, 4294901760
    %v2664 = vsub.f32 %v2204, %v2663
    %v2665 = vand.u32 %v2664, 4294901760
    %2666 = vmatpush1.msra.mxu0 %v2665
    %2667 = vmatprep.subr.mxu0 0.0
    %v2668 = vand.u32 %v2205, 4294901760
    %v2669 = vsub.f32 %v2205, %v2668
    %v2670 = vand.u32 %v2669, 4294901760
    %2671 = vmatpush1.msra.mxu0 %v2670
    %2672 = vmatprep.subr.mxu0 0.0
    %v2673 = vand.u32 %v2206, 4294901760
    %v2674 = vsub.f32 %v2206, %v2673
    %v2675 = vand.u32 %v2674, 4294901760
    %2676 = vmatpush1.msra.mxu0 %v2675
    %2677 = vmatprep.subr.mxu0 0.0
    %v2678 = vand.u32 %v2207, 4294901760
    %v2679 = vsub.f32 %v2207, %v2678
    %v2680 = vand.u32 %v2679, 4294901760
    %2681 = vmatpush1.msra.mxu0 %v2680
    %2682 = vmatprep.subr.mxu0 0.0
    %v2683 = vand.u32 %v2208, 4294901760
    %v2684 = vsub.f32 %v2208, %v2683
    %v2685 = vand.u32 %v2684, 4294901760
    %2686 = vmatpush1.msra.mxu0 %v2685
    %2687 = vmatprep.subr.mxu0 0.0
    %v2688 = vand.u32 %v2209, 4294901760
    %v2689 = vsub.f32 %v2209, %v2688
    %v2690 = vand.u32 %v2689, 4294901760
    %2691 = vmatpush1.msra.mxu0 %v2690
    %2692 = vmatprep.subr.mxu0 0.0
    %v2693 = vand.u32 %v2210, 4294901760
    %v2694 = vsub.f32 %v2210, %v2693
    %v2695 = vand.u32 %v2694, 4294901760
    %2696 = vmatpush1.msra.mxu0 %v2695
    %2697 = vmatprep.subr.mxu0 0.0
    %v2698 = vand.u32 %v2211, 4294901760
    %v2699 = vsub.f32 %v2211, %v2698
    %v2700 = vand.u32 %v2699, 4294901760
    %2701 = vmatpush1.msra.mxu0 %v2700
    %2702 = vmatprep.subr.mxu0 0.0
    %v2703 = vand.u32 %v2212, 4294901760
    %v2704 = vsub.f32 %v2212, %v2703
    %v2705 = vand.u32 %v2704, 4294901760
    %2706 = vmatpush1.msra.mxu0 %v2705
    %2707 = vmatprep.subr.mxu0 0.0
    %v2708 = vand.u32 %v2213, 4294901760
    %v2709 = vsub.f32 %v2213, %v2708
    %v2710 = vand.u32 %v2709, 4294901760
    %2711 = vmatpush1.msra.mxu0 %v2710
    %2712 = vmatprep.subr.mxu0 0.0
    %v2713 = vand.u32 %v2214, 4294901760
    %v2714 = vsub.f32 %v2214, %v2713
    %v2715 = vand.u32 %v2714, 4294901760
    %2716 = vmatpush1.msra.mxu0 %v2715
    %2717 = vmatprep.subr.mxu0 0.0
    %v2718 = vand.u32 %v2215, 4294901760
    %v2719 = vsub.f32 %v2215, %v2718
    %v2720 = vand.u32 %v2719, 4294901760
    %2721 = vmatpush1.msra.mxu0 %v2720
    %2722 = vmatprep.subr.mxu0 0.0
    %v2723 = vand.u32 %v2216, 4294901760
    %v2724 = vsub.f32 %v2216, %v2723
    %v2725 = vand.u32 %v2724, 4294901760
    %2726 = vmatpush1.msra.mxu0 %v2725
    %2727 = vmatprep.subr.mxu0 0.0
    %v2728 = vand.u32 %v2217, 4294901760
    %v2729 = vsub.f32 %v2217, %v2728
    %v2730 = vand.u32 %v2729, 4294901760
    %2731 = vmatpush1.msra.mxu0 %v2730
    %2732 = vmatprep.subr.mxu0 0.0
    %v2733 = vand.u32 %v2218, 4294901760
    %v2734 = vsub.f32 %v2218, %v2733
    %v2735 = vand.u32 %v2734, 4294901760
    %2736 = vmatpush1.msra.mxu0 %v2735
    %2737 = vmatprep.subr.mxu0 0.0
    %v2738 = vand.u32 %v2219, 4294901760
    %v2739 = vsub.f32 %v2219, %v2738
    %v2740 = vand.u32 %v2739, 4294901760
    %2741 = vmatpush1.msra.mxu0 %v2740
    %2742 = vmatprep.subr.mxu0 0.0
    %2743 = vmatpush1.msra.mxu0 0.0
    %2744 = vmatprep.subr.mxu0 0.0
    %2745 = vmatpush1.msra.mxu0 0.0
    %2746 = vmatprep.subr.mxu0 0.0
    %2747 = vmatpush1.msra.mxu0 0.0
    %2748 = vmatprep.subr.mxu0 0.0
    %2749 = vmatpush1.msra.mxu0 0.0
    %2750 = vmatprep.subr.mxu0 0.0
    %2751 = vmatpush1.msra.mxu0 0.0
    %2752 = vmatprep.subr.mxu0 0.0
    %2753 = vmatpush1.msra.mxu0 0.0
    %2754 = vmatprep.subr.mxu0 0.0
    %2755 = vmatpush1.msra.mxu0 0.0
    %2756 = vmatprep.subr.mxu0 0.0
    %2757 = vmatpush1.msra.mxu0 0.0
    %2758 = vmatprep.subr.mxu0 0.0
    %2759 = vmatpush1.msra.mxu0 0.0
    %2760 = vmatprep.subr.mxu0 0.0
    %2761 = vmatpush1.msra.mxu0 0.0
    %2762 = vmatprep.subr.mxu0 0.0
    %2763 = vmatpush1.msra.mxu0 0.0
    %2764 = vmatprep.subr.mxu0 0.0
    %2765 = vmatpush1.msra.mxu0 0.0
    %2766 = vmatprep.subr.mxu0 0.0
    %2767 = vmatpush1.msra.mxu0 0.0
    %2768 = vmatprep.subr.mxu0 0.0
    %2769 = vmatpush1.msra.mxu0 0.0
    %2770 = vmatprep.subr.mxu0 0.0
    %2771 = vmatpush1.msra.mxu0 0.0
    %2772 = vmatprep.subr.mxu0 0.0
    %2773 = vmatpush1.msra.mxu0 0.0
    %2774 = vmatprep.mubr.f32.mxu0 0.0
    %v2775 = vand.u32 %v2203, 4294901760
    %2776 = vmatmul.mubr.f32.gmra.mrb[0].mxu0 %v2775
    %v2777 = vpop.f32.mrb[0].mxu0
    %v2778 = vadd.f32 %v2659, %v2777
    %v2779 = vpop.f32.mrb[0].mxu0
    %2780 = vdwg.mxu0
    %2781 = vmatprep.subr.mxu0 0.0
    %v2782 = vand.u32 %v2204, 4294901760
    %2783 = vmatpush1.msra.mxu0 %v2782
    %2784 = vmatprep.subr.mxu0 0.0
    %v2785 = vand.u32 %v2205, 4294901760
    %2786 = vmatpush1.msra.mxu0 %v2785
    %2787 = vmatprep.subr.mxu0 0.0
    %v2788 = vand.u32 %v2206, 4294901760
    %2789 = vmatpush1.msra.mxu0 %v2788
    %2790 = vmatprep.subr.mxu0 0.0
    %v2791 = vand.u32 %v2207, 4294901760
    %2792 = vmatpush1.msra.mxu0 %v2791
    %2793 = vmatprep.subr.mxu0 0.0
    %v2794 = vand.u32 %v2208, 4294901760
    %2795 = vmatpush1.msra.mxu0 %v2794
    %2796 = vmatprep.subr.mxu0 0.0
    %v2797 = vand.u32 %v2209, 4294901760
    %2798 = vmatpush1.msra.mxu0 %v2797
    %2799 = vmatprep.subr.mxu0 0.0
    %v2800 = vand.u32 %v2210, 4294901760
    %2801 = vmatpush1.msra.mxu0 %v2800
    %2802 = vmatprep.subr.mxu0 0.0
    %v2803 = vand.u32 %v2211, 4294901760
    %2804 = vmatpush1.msra.mxu0 %v2803
    %2805 = vmatprep.subr.mxu0 0.0
    %v2806 = vand.u32 %v2212, 4294901760
    %2807 = vmatpush1.msra.mxu0 %v2806
    %2808 = vmatprep.subr.mxu0 0.0
    %v2809 = vand.u32 %v2213, 4294901760
    %2810 = vmatpush1.msra.mxu0 %v2809
    %2811 = vmatprep.subr.mxu0 0.0
    %v2812 = vand.u32 %v2214, 4294901760
    %2813 = vmatpush1.msra.mxu0 %v2812
    %2814 = vmatprep.subr.mxu0 0.0
    %v2815 = vand.u32 %v2215, 4294901760
    %2816 = vmatpush1.msra.mxu0 %v2815
    %2817 = vmatprep.subr.mxu0 0.0
    %v2818 = vand.u32 %v2216, 4294901760
    %2819 = vmatpush1.msra.mxu0 %v2818
    %2820 = vmatprep.subr.mxu0 0.0
    %v2821 = vand.u32 %v2217, 4294901760
    %2822 = vmatpush1.msra.mxu0 %v2821
    %2823 = vmatprep.subr.mxu0 0.0
    %v2824 = vand.u32 %v2218, 4294901760
    %2825 = vmatpush1.msra.mxu0 %v2824
    %2826 = vmatprep.subr.mxu0 0.0
    %v2827 = vand.u32 %v2219, 4294901760
    %2828 = vmatpush1.msra.mxu0 %v2827
    %2829 = vmatprep.subr.mxu0 0.0
    %2830 = vmatpush1.msra.mxu0 0.0
    %2831 = vmatprep.subr.mxu0 0.0
    %2832 = vmatpush1.msra.mxu0 0.0
    %2833 = vmatprep.subr.mxu0 0.0
    %2834 = vmatpush1.msra.mxu0 0.0
    %2835 = vmatprep.subr.mxu0 0.0
    %2836 = vmatpush1.msra.mxu0 0.0
    %2837 = vmatprep.subr.mxu0 0.0
    %2838 = vmatpush1.msra.mxu0 0.0
    %2839 = vmatprep.subr.mxu0 0.0
    %2840 = vmatpush1.msra.mxu0 0.0
    %2841 = vmatprep.subr.mxu0 0.0
    %2842 = vmatpush1.msra.mxu0 0.0
    %2843 = vmatprep.subr.mxu0 0.0
    %2844 = vmatpush1.msra.mxu0 0.0
    %2845 = vmatprep.subr.mxu0 0.0
    %2846 = vmatpush1.msra.mxu0 0.0
    %2847 = vmatprep.subr.mxu0 0.0
    %2848 = vmatpush1.msra.mxu0 0.0
    %2849 = vmatprep.subr.mxu0 0.0
    %2850 = vmatpush1.msra.mxu0 0.0
    %2851 = vmatprep.subr.mxu0 0.0
    %2852 = vmatpush1.msra.mxu0 0.0
    %2853 = vmatprep.subr.mxu0 0.0
    %2854 = vmatpush1.msra.mxu0 0.0
    %2855 = vmatprep.subr.mxu0 0.0
    %2856 = vmatpush1.msra.mxu0 0.0
    %2857 = vmatprep.subr.mxu0 0.0
    %2858 = vmatpush1.msra.mxu0 0.0
    %2859 = vmatprep.subr.mxu0 0.0
    %2860 = vmatpush1.msra.mxu0 0.0
    %2861 = vmatprep.mubr.f32.mxu0 0.0
    %v2862 = vand.u32 %v2203, 4294901760
    %2863 = vmatmul.mubr.f32.gmra.mrb[0].mxu0 %v2862
    %v2864 = vpop.f32.mrb[0].mxu0
    %v2865 = vadd.f32 %v2778, %v2864
    %v2866 = vpop.f32.mrb[0].mxu0
    %2867 = vdwg.mxu0
    %2868 = vst [vmem:[#allocation2] sm:$0x3] %v2865
    // Predicated region
    $region46: #{net_forward.1} parent=1 // pred_check
      _
    $region47: #{net_forward.1} parent=1 // pred_check_branch
      %2870 = sbr.rel (0) target = $region49
    $region48: #{net_forward.1} parent=1 // pred_region
      %s2872 = ssub.s32 32, 32
      %2873 = vsyncadd [#allocation3], %s2872
      %s2875 = sshll.u32 [#allocation2], 4
      %s2876 = int_to_ptr.vmem [resolvable:$true] %s2875
      %2878 = dma.vmem_to_hbm [thread:$0]  %s2876, 32, %s11, [#allocation3]
    $region49: #{net_forward.1} parent=1 // pred_fallthru
      _
    // Predicated region
    $region50: #{net_forward.1} parent=1 // pred_check
      _
    $region51: #{net_forward.1} parent=1 // pred_check_branch
      %2880 = sbr.rel (0) target = $region53
    $region52: #{net_forward.1} parent=1 // pred_region
      %2881 = dma.done [#allocation3], 32
    $region53: #{net_forward.1} parent=1 // pred_fallthru
      _
    %2882 = vsyncpa [#allocation3], 1

</llo_original>
